<compile_context>
chip_gen: v7x
topology: tpu7x:2x2x1
jax: 0.10.0
libtpu: 0.0.40
codegen_flags: <defaults>
</compile_context>

<pallas_src>
import jax
import jax.numpy as jnp
from jax import lax
from jax.experimental import pallas as pl
from jax.experimental.pallas import tpu as pltpu

_VMEM = pl.BlockSpec(memory_space=pltpu.MemorySpace.VMEM)
_SMEM = pl.BlockSpec(memory_space=pltpu.MemorySpace.SMEM)


# ---------------------------------------------------------------------------
# Fused bidirectional LSTM layer kernel: the time recurrence runs inside the
# kernel; both directions are interleaved in one loop so their MXU/VPU work
# can overlap; recurrent state lives in VMEM scratch.
# ---------------------------------------------------------------------------
def _bilstm_layer_kernel(gin_f_ref, gin_b_ref, whh_f_ref, whh_b_ref, out_ref,
                         h_f, c_f, h_b, c_b):
    """One bidirectional LSTM layer.

    gin_f_ref, gin_b_ref : (T, B, 4H)  precomputed x @ W_ih + b (f32)
    whh_f_ref, whh_b_ref : (H, 4H)     recurrent weights (f32)
    out_ref              : (T, B, 2H)  [:, :, :H]=forward, [:, :, H:]=backward
    h_*, c_*             : (B, H)      VMEM scratch recurrent state
    """
    T = gin_f_ref.shape[0]
    H = h_f.shape[-1]

    h_f[...] = jnp.zeros_like(h_f)
    c_f[...] = jnp.zeros_like(c_f)
    h_b[...] = jnp.zeros_like(h_b)
    c_b[...] = jnp.zeros_like(c_b)

    # Load the (small) recurrent weights once; they stay resident for the loop.
    w_f = whh_f_ref[...]
    w_b = whh_b_ref[...]

    def cell(pre_gates, h, c, w_hh):
        gates = pre_gates + jnp.dot(h, w_hh, preferred_element_type=jnp.float32)
        # PyTorch gate order: i, f, g, o
        i_g = jax.nn.sigmoid(gates[:, 0 * H:1 * H])
        f_g = jax.nn.sigmoid(gates[:, 1 * H:2 * H])
        g_g = jnp.tanh(gates[:, 2 * H:3 * H])
        o_g = jax.nn.sigmoid(gates[:, 3 * H:4 * H])
        c_new = f_g * c + i_g * g_g
        h_new = o_g * jnp.tanh(c_new)
        return h_new, c_new

    def step(t, carry):
        # forward direction processes input time t
        hf, cf = cell(gin_f_ref[t], h_f[...], c_f[...], w_f)
        h_f[...] = hf
        c_f[...] = cf
        out_ref[t, :, 0:H] = hf

        # backward direction processes input time T-1-t (independent work)
        tb = T - 1 - t
        hb, cb = cell(gin_b_ref[tb], h_b[...], c_b[...], w_b)
        h_b[...] = hb
        c_b[...] = cb
        out_ref[tb, :, H:2 * H] = hb
        return carry

    lax.fori_loop(0, T, step, 0, unroll=(T <= 32))


def bilstm_layer(x_tbd, layer_params, hidden_size):
    """x_tbd: (T, B, D_in) f32 -> (T, B, 2H) f32 (output aligned to input time)."""
    T, B, _ = x_tbd.shape
    H = hidden_size
    p = layer_params

    # Hoisted input projection: one big (T*B, D) x (D, 4H) matmul per direction
    # (plain XLA), instead of T tiny per-step matmuls inside the recurrence.
    gin_f = jnp.einsum('tbd,dg->tbg', x_tbd, p['w_ih_f']) + p['b_f']   # (T,B,4H)
    gin_b = jnp.einsum('tbd,dg->tbg', x_tbd, p['w_ih_b']) + p['b_b']   # (T,B,4H)

    # TODO(synk): for large T, chunk the time axis (grid over T-chunks with the
    # state carried in scratch) to bound VMEM; whole-T residency is fine here.
    return pl.pallas_call(
        _bilstm_layer_kernel,
        out_shape=jax.ShapeDtypeStruct((T, B, 2 * H), jnp.float32),
        in_specs=[_VMEM, _VMEM, _VMEM, _VMEM],
        out_specs=_VMEM,
        scratch_shapes=[pltpu.VMEM((B, H), jnp.float32)] * 4,
    )(gin_f, gin_b, p['w_hh_f'], p['w_hh_b'])


# ---------------------------------------------------------------------------
# Attention (+ final FC) kernel, batch-first so the (B, T) attention weights
# and (B, O) output are written directly (no wrapper-side transpose of the
# results; scalar attention bias sits in SMEM).
# ---------------------------------------------------------------------------
def _attn_fc_kernel(lstm_ref, v_ref, vb_ref, mask_ref, fcw_ref, fcb_ref,
                    out_ref, attn_ref):
    """lstm_ref: (B,T,D2)  v_ref: (1,D2)  vb_ref: (1,1) SMEM  mask_ref: (1,T)
    fcw_ref: (D2,O)  fcb_ref: (1,O)  ->  out_ref: (B,O), attn_ref: (B,T)."""
    lstm = lstm_ref[...]                                             # (B, T, D2)
    v = v_ref[...]                                                   # (1, D2)

    # attention scores: Linear(D2 -> 1) applied per (b, t)
    scores = jnp.sum(lstm * v[None, :, :], axis=-1) + vb_ref[0, 0]   # (B, T)

    # softmax over time (last axis)
    m = jnp.max(scores, axis=-1, keepdims=True)
    e = jnp.exp(scores - m)
    w = e / jnp.sum(e, axis=-1, keepdims=True)                       # (B, T)

    # boost special time indices, then renormalize
    w = w * mask_ref[...]                                            # (1,T) bcast
    w = w / jnp.sum(w, axis=-1, keepdims=True)

    # context vector = weighted sum over time
    context = jnp.sum(w[:, :, None] * lstm, axis=1)                  # (B, D2)

    out_ref[...] = (jnp.dot(context, fcw_ref[...],
                            preferred_element_type=jnp.float32)
                    + fcb_ref[...])                                  # (B, O)
    attn_ref[...] = w                                                # (B, T)


def attention_fc(lstm_btd, attn_v, attn_b, mask, fc_w, fc_b):
    B, T, _ = lstm_btd.shape
    O = fc_w.shape[1]
    return pl.pallas_call(
        _attn_fc_kernel,
        out_shape=(jax.ShapeDtypeStruct((B, O), jnp.float32),
                   jax.ShapeDtypeStruct((B, T), jnp.float32)),
        in_specs=[_VMEM, _VMEM, _SMEM, _VMEM, _VMEM, _VMEM],
        out_specs=(_VMEM, _VMEM),
    )(lstm_btd, attn_v, attn_b, mask, fc_w, fc_b)


# ---------------------------------------------------------------------------
# Full forward pass (matches BiLSTMWithAttention.forward)
# ---------------------------------------------------------------------------
def bilstm_with_attention(x, params, *, hidden_size, num_layers,
                          special_indices, special_weight):
    """x: (B, T, input_size) float32 (batch_first, like the PyTorch module)."""
    B, T, _ = x.shape
    h = jnp.transpose(x, (1, 0, 2)).astype(jnp.float32)              # (T, B, D)

    for layer in range(num_layers):
        h = bilstm_layer(h, params['lstm'][layer], hidden_size)      # (T, B, 2H)
    # TODO(synk): PyTorch applies inter-layer dropout when configured; assumed 0.

    lstm_btd = jnp.transpose(h, (1, 0, 2))                           # (B, T, 2H)

    mask = jnp.ones((1, T), jnp.float32)
    mask = mask.at[0, jnp.asarray(special_indices)].set(special_weight)

    out, attention_weights = attention_fc(
        lstm_btd, params['attn_v'], params['attn_b'], mask,
        params['fc_w'], params['fc_b'])

    # torch .squeeze(-1): drop the last dim only when output_size == 1
    output = out[..., 0] if out.shape[-1] == 1 else out
    return output, attention_weights


# ---------------------------------------------------------------------------
# Deterministic parameter construction (PyTorch-style init: two bias vectors
# per direction, summed since the cell only ever uses b_ih + b_hh).
# ---------------------------------------------------------------------------
def make_params(key, input_size, hidden_size, num_layers, output_size):
    H = hidden_size
    bound = 1.0 / jnp.sqrt(jnp.float32(H))

    def unif(k, shape):
        return jax.random.uniform(k, shape, jnp.float32, -bound, bound)

    params = {'lstm': []}
    for layer in range(num_layers):
        d_in = input_size if layer == 0 else 2 * H
        key, *ks = jax.random.split(key, 9)
        params['lstm'].append({
            'w_ih_f': unif(ks[0], (d_in, 4 * H)),
            'w_hh_f': unif(ks[1], (H, 4 * H)),
            'b_f':    unif(ks[2], (1, 4 * H)) + unif(ks[3], (1, 4 * H)),
            'w_ih_b': unif(ks[4], (d_in, 4 * H)),
            'w_hh_b': unif(ks[5], (H, 4 * H)),
            'b_b':    unif(ks[6], (1, 4 * H)) + unif(ks[7], (1, 4 * H)),
        })
    key, k1, k2, k3, k4 = jax.random.split(key, 5)
    params['attn_v'] = unif(k1, (1, 2 * H))      # Linear(2H -> 1) weight
    params['attn_b'] = unif(k2, (1, 1))          # scalar bias (SMEM in kernel)
    params['fc_w'] = unif(k3, (2 * H, output_size))
    params['fc_b'] = unif(k4, (1, output_size))
    return params


if __name__ == '__main__':
    # Small, module-consistent shapes.
    B, T = 2, 8
    input_size, hidden_size, num_layers, output_size = 16, 32, 2, 1
    special_indices = [1, 3]
    special_weight = 10.0

    key = jax.random.PRNGKey(0)
    key, kx = jax.random.split(key)
    x = jax.random.normal(kx, (B, T, input_size), jnp.float32)
    params = make_params(key, input_size, hidden_size, num_layers, output_size)

    fwd = jax.jit(lambda xx, pp: bilstm_with_attention(
        xx, pp, hidden_size=hidden_size, num_layers=num_layers,
        special_indices=special_indices, special_weight=special_weight))

    output, attn_w = fwd(x, params)
    jax.block_until_ready((output, attn_w))

    assert output.shape == (B,)
    assert attn_w.shape == (B, T)
    assert bool(jnp.all(jnp.isfinite(output)))
    assert bool(jnp.allclose(jnp.sum(attn_w, axis=-1), 1.0, atol=1e-5))
    print("KERNEL_OK")
</pallas_src>

<mosaic_0001>
module attributes {stable_mosaic.version = 11 : i64} {
  func.func @_attn_fc_kernel(%arg0: memref<2x8x64xf32, #tpu.memory_space<vmem>>, %arg1: memref<1x64xf32, #tpu.memory_space<vmem>>, %arg2: memref<1x1xf32, #tpu.memory_space<smem>>, %arg3: memref<1x8xf32, #tpu.memory_space<vmem>>, %arg4: memref<64x1xf32, #tpu.memory_space<vmem>>, %arg5: memref<1x1xf32, #tpu.memory_space<vmem>>, %arg6: memref<2x1xf32, #tpu.memory_space<vmem>>, %arg7: memref<2x8xf32, #tpu.memory_space<vmem>>) attributes {dimension_semantics = [], scalar_prefetch = 0 : i64, scratch_operands = 0 : i64, tpu.core_type = #tpu.core_type<tc>} {
    %c0 = arith.constant 0 : index
    %c0_0 = arith.constant 0 : index
    %c0_1 = arith.constant 0 : index
    %0 = vector.load %arg0[%c0, %c0_0, %c0_1] : memref<2x8x64xf32, #tpu.memory_space<vmem>>, vector<2x8x64xf32>
    %c0_2 = arith.constant 0 : index
    %c0_3 = arith.constant 0 : index
    %1 = vector.load %arg1[%c0_2, %c0_3] : memref<1x64xf32, #tpu.memory_space<vmem>>, vector<1x64xf32>
    %2 = vector.shape_cast %1 : vector<1x64xf32> to vector<1x1x64xf32>
    %3 = vector.broadcast %2 : vector<1x1x64xf32> to vector<2x8x64xf32>
    %4 = arith.mulf %0, %3 : vector<2x8x64xf32>
    %cst = arith.constant dense<0.000000e+00> : vector<2x8xf32>
    %5 = vector.multi_reduction <add>, %4, %cst [2] : vector<2x8x64xf32> to vector<2x8xf32>
    %c0_4 = arith.constant 0 : index
    %c0_5 = arith.constant 0 : index
    %6 = memref.load %arg2[%c0_4, %c0_5] : memref<1x1xf32, #tpu.memory_space<smem>>
    %7 = vector.broadcast %6 : f32 to vector<2x8xf32>
    %8 = arith.addf %5, %7 : vector<2x8xf32>
    %cst_6 = arith.constant dense<0xFF800000> : vector<2xf32>
    %9 = vector.multi_reduction <maximumf>, %8, %cst_6 [1] : vector<2x8xf32> to vector<2xf32>
    %10 = vector.shape_cast %9 : vector<2xf32> to vector<2x1xf32>
    %11 = vector.broadcast %10 : vector<2x1xf32> to vector<2x8xf32>
    %12 = arith.subf %8, %11 : vector<2x8xf32>
    %13 = math.exp %12 : vector<2x8xf32>
    %cst_7 = arith.constant dense<0.000000e+00> : vector<2xf32>
    %14 = vector.multi_reduction <add>, %13, %cst_7 [1] : vector<2x8xf32> to vector<2xf32>
    %15 = vector.shape_cast %14 : vector<2xf32> to vector<2x1xf32>
    %16 = vector.broadcast %15 : vector<2x1xf32> to vector<2x8xf32>
    %17 = arith.divf %13, %16 : vector<2x8xf32>
    %c0_8 = arith.constant 0 : index
    %c0_9 = arith.constant 0 : index
    %18 = vector.load %arg3[%c0_8, %c0_9] : memref<1x8xf32, #tpu.memory_space<vmem>>, vector<1x8xf32>
    %19 = vector.broadcast %18 : vector<1x8xf32> to vector<2x8xf32>
    %20 = arith.mulf %17, %19 : vector<2x8xf32>
    %cst_10 = arith.constant dense<0.000000e+00> : vector<2xf32>
    %21 = vector.multi_reduction <add>, %20, %cst_10 [1] : vector<2x8xf32> to vector<2xf32>
    %22 = vector.shape_cast %21 : vector<2xf32> to vector<2x1xf32>
    %23 = vector.broadcast %22 : vector<2x1xf32> to vector<2x8xf32>
    %24 = arith.divf %20, %23 : vector<2x8xf32>
    %25 = vector.shape_cast %24 : vector<2x8xf32> to vector<2x8x1xf32>
    %26 = vector.broadcast %25 : vector<2x8x1xf32> to vector<2x8x64xf32>
    %27 = arith.mulf %26, %0 : vector<2x8x64xf32>
    %cst_11 = arith.constant dense<0.000000e+00> : vector<2x64xf32>
    %28 = vector.multi_reduction <add>, %27, %cst_11 [1] : vector<2x8x64xf32> to vector<2x64xf32>
    %c0_12 = arith.constant 0 : index
    %c0_13 = arith.constant 0 : index
    %29 = vector.load %arg4[%c0_12, %c0_13] : memref<64x1xf32, #tpu.memory_space<vmem>>, vector<64x1xf32>
    %cst_14 = arith.constant dense<0.000000e+00> : vector<2x1xf32>
    %30 = tpu.matmul %28, %29, %cst_14 {dimension_numbers = #tpu.dot_dimension_numbers<[1], [0], [0], [1], [0, 0, 1, 1], [], []>} : vector<2x64xf32>, vector<64x1xf32>, vector<2x1xf32> -> vector<2x1xf32>
    %c0_15 = arith.constant 0 : index
    %c0_16 = arith.constant 0 : index
    %31 = vector.load %arg5[%c0_15, %c0_16] : memref<1x1xf32, #tpu.memory_space<vmem>>, vector<1x1xf32>
    %32 = vector.broadcast %31 : vector<1x1xf32> to vector<2x1xf32>
    %33 = arith.addf %30, %32 : vector<2x1xf32>
    %c0_17 = arith.constant 0 : index
    %c0_18 = arith.constant 0 : index
    %34 = vector.load %arg6[%c0_17, %c0_18] : memref<2x1xf32, #tpu.memory_space<vmem>>, vector<2x1xf32>
    tpu.vector_store %arg6[%c0_17, %c0_18], %33 {strides = array<i32>} : memref<2x1xf32, #tpu.memory_space<vmem>>, vector<2x1xf32>,
    %c0_19 = arith.constant 0 : index
    %c0_20 = arith.constant 0 : index
    %35 = vector.load %arg7[%c0_19, %c0_20] : memref<2x8xf32, #tpu.memory_space<vmem>>, vector<2x8xf32>
    tpu.vector_store %arg7[%c0_19, %c0_20], %24 {strides = array<i32>} : memref<2x8xf32, #tpu.memory_space<vmem>>, vector<2x8xf32>,
    return
  }
}

module attributes {stable_mosaic.version = 11 : i64} {
  func.func @_bilstm_layer_kernel(%arg0: memref<8x2x128xf32, #tpu.memory_space<vmem>>, %arg1: memref<8x2x128xf32, #tpu.memory_space<vmem>>, %arg2: memref<32x128xf32, #tpu.memory_space<vmem>>, %arg3: memref<32x128xf32, #tpu.memory_space<vmem>>, %arg4: memref<8x2x64xf32, #tpu.memory_space<vmem>>, %arg5: memref<2x32xf32, #tpu.memory_space<vmem>>, %arg6: memref<2x32xf32, #tpu.memory_space<vmem>>, %arg7: memref<2x32xf32, #tpu.memory_space<vmem>>, %arg8: memref<2x32xf32, #tpu.memory_space<vmem>>) attributes {dimension_semantics = [], scalar_prefetch = 0 : i64, scratch_operands = 4 : i64, tpu.core_type = #tpu.core_type<tc>} {
    %cst = arith.constant 0.000000e+00 : f32
    %0 = vector.broadcast %cst : f32 to vector<2x32xf32>
    %c0 = arith.constant 0 : index
    %c0_0 = arith.constant 0 : index
    %1 = vector.load %arg5[%c0, %c0_0] : memref<2x32xf32, #tpu.memory_space<vmem>>, vector<2x32xf32>
    tpu.vector_store %arg5[%c0, %c0_0], %0 {strides = array<i32>} : memref<2x32xf32, #tpu.memory_space<vmem>>, vector<2x32xf32>,
    %cst_1 = arith.constant 0.000000e+00 : f32
    %2 = vector.broadcast %cst_1 : f32 to vector<2x32xf32>
    %c0_2 = arith.constant 0 : index
    %c0_3 = arith.constant 0 : index
    %3 = vector.load %arg6[%c0_2, %c0_3] : memref<2x32xf32, #tpu.memory_space<vmem>>, vector<2x32xf32>
    tpu.vector_store %arg6[%c0_2, %c0_3], %2 {strides = array<i32>} : memref<2x32xf32, #tpu.memory_space<vmem>>, vector<2x32xf32>,
    %cst_4 = arith.constant 0.000000e+00 : f32
    %4 = vector.broadcast %cst_4 : f32 to vector<2x32xf32>
    %c0_5 = arith.constant 0 : index
    %c0_6 = arith.constant 0 : index
    %5 = vector.load %arg7[%c0_5, %c0_6] : memref<2x32xf32, #tpu.memory_space<vmem>>, vector<2x32xf32>
    tpu.vector_store %arg7[%c0_5, %c0_6], %4 {strides = array<i32>} : memref<2x32xf32, #tpu.memory_space<vmem>>, vector<2x32xf32>,
    %cst_7 = arith.constant 0.000000e+00 : f32
    %6 = vector.broadcast %cst_7 : f32 to vector<2x32xf32>
    %c0_8 = arith.constant 0 : index
    %c0_9 = arith.constant 0 : index
    %7 = vector.load %arg8[%c0_8, %c0_9] : memref<2x32xf32, #tpu.memory_space<vmem>>, vector<2x32xf32>
    tpu.vector_store %arg8[%c0_8, %c0_9], %6 {strides = array<i32>} : memref<2x32xf32, #tpu.memory_space<vmem>>, vector<2x32xf32>,
    %c0_10 = arith.constant 0 : index
    %c0_11 = arith.constant 0 : index
    %8 = vector.load %arg2[%c0_10, %c0_11] : memref<32x128xf32, #tpu.memory_space<vmem>>, vector<32x128xf32>
    %c0_12 = arith.constant 0 : index
    %c0_13 = arith.constant 0 : index
    %9 = vector.load %arg3[%c0_12, %c0_13] : memref<32x128xf32, #tpu.memory_space<vmem>>, vector<32x128xf32>
    %c0_i32 = arith.constant 0 : i32
    %10 = arith.index_cast %c0_i32 : i32 to index
    %c0_14 = arith.constant 0 : index
    %c0_15 = arith.constant 0 : index
    %11 = vector.load %arg0[%10, %c0_14, %c0_15] : memref<8x2x128xf32, #tpu.memory_space<vmem>>, vector<1x2x128xf32>
    %12 = vector.shape_cast %11 : vector<1x2x128xf32> to vector<2x128xf32>
    %c0_16 = arith.constant 0 : index
    %c0_17 = arith.constant 0 : index
    %13 = vector.load %arg5[%c0_16, %c0_17] : memref<2x32xf32, #tpu.memory_space<vmem>>, vector<2x32xf32>
    %c0_18 = arith.constant 0 : index
    %c0_19 = arith.constant 0 : index
    %14 = vector.load %arg6[%c0_18, %c0_19] : memref<2x32xf32, #tpu.memory_space<vmem>>, vector<2x32xf32>
    %cst_20 = arith.constant dense<0.000000e+00> : vector<2x128xf32>
    %15 = tpu.matmul %13, %8, %cst_20 {dimension_numbers = #tpu.dot_dimension_numbers<[1], [0], [0], [1], [0, 0, 1, 1], [], []>} : vector<2x32xf32>, vector<32x128xf32>, vector<2x128xf32> -> vector<2x128xf32>
    %16 = arith.addf %12, %15 : vector<2x128xf32>
    %17 = vector.extract_strided_slice %16 {offsets = [0, 0], sizes = [2, 32], strides = [1, 1]} : vector<2x128xf32> to vector<2x32xf32>
    %18 = arith.negf %17 : vector<2x32xf32>
    %19 = math.exp %18 : vector<2x32xf32>
    %cst_21 = arith.constant 1.000000e+00 : f32
    %20 = vector.broadcast %cst_21 : f32 to vector<2x32xf32>
    %21 = arith.addf %20, %19 : vector<2x32xf32>
    %22 = arith.divf %20, %21 : vector<2x32xf32>
    %23 = vector.extract_strided_slice %16 {offsets = [0, 32], sizes = [2, 32], strides = [1, 1]} : vector<2x128xf32> to vector<2x32xf32>
    %24 = arith.negf %23 : vector<2x32xf32>
    %25 = math.exp %24 : vector<2x32xf32>
    %cst_22 = arith.constant 1.000000e+00 : f32
    %26 = vector.broadcast %cst_22 : f32 to vector<2x32xf32>
    %27 = arith.addf %26, %25 : vector<2x32xf32>
    %28 = arith.divf %26, %27 : vector<2x32xf32>
    %29 = vector.extract_strided_slice %16 {offsets = [0, 64], sizes = [2, 32], strides = [1, 1]} : vector<2x128xf32> to vector<2x32xf32>
    %30 = math.tanh %29 : vector<2x32xf32>
    %31 = vector.extract_strided_slice %16 {offsets = [0, 96], sizes = [2, 32], strides = [1, 1]} : vector<2x128xf32> to vector<2x32xf32>
    %32 = arith.negf %31 : vector<2x32xf32>
    %33 = math.exp %32 : vector<2x32xf32>
    %cst_23 = arith.constant 1.000000e+00 : f32
    %34 = vector.broadcast %cst_23 : f32 to vector<2x32xf32>
    %35 = arith.addf %34, %33 : vector<2x32xf32>
    %36 = arith.divf %34, %35 : vector<2x32xf32>
    %37 = arith.mulf %28, %14 : vector<2x32xf32>
    %38 = arith.mulf %22, %30 : vector<2x32xf32>
    %39 = arith.addf %37, %38 : vector<2x32xf32>
    %40 = math.tanh %39 : vector<2x32xf32>
    %41 = arith.mulf %36, %40 : vector<2x32xf32>
    %c0_24 = arith.constant 0 : index
    %c0_25 = arith.constant 0 : index
    %42 = vector.load %arg5[%c0_24, %c0_25] : memref<2x32xf32, #tpu.memory_space<vmem>>, vector<2x32xf32>
    tpu.vector_store %arg5[%c0_24, %c0_25], %41 {strides = array<i32>} : memref<2x32xf32, #tpu.memory_space<vmem>>, vector<2x32xf32>,
    %c0_26 = arith.constant 0 : index
    %c0_27 = arith.constant 0 : index
    %43 = vector.load %arg6[%c0_26, %c0_27] : memref<2x32xf32, #tpu.memory_space<vmem>>, vector<2x32xf32>
    tpu.vector_store %arg6[%c0_26, %c0_27], %39 {strides = array<i32>} : memref<2x32xf32, #tpu.memory_space<vmem>>, vector<2x32xf32>,
    %44 = arith.index_cast %c0_i32 : i32 to index
    %c0_28 = arith.constant 0 : index
    %c0_29 = arith.constant 0 : index
    %45 = vector.load %arg4[%44, %c0_28, %c0_29] : memref<8x2x64xf32, #tpu.memory_space<vmem>>, vector<1x2x32xf32>
    %46 = vector.shape_cast %45 : vector<1x2x32xf32> to vector<2x32xf32>
    %47 = vector.shape_cast %41 : vector<2x32xf32> to vector<1x2x32xf32>
    tpu.vector_store %arg4[%44, %c0_28, %c0_29], %47 {strides = array<i32>} : memref<8x2x64xf32, #tpu.memory_space<vmem>>, vector<1x2x32xf32>,
    %c7_i32 = arith.constant 7 : i32
    %48 = arith.subi %c7_i32, %c0_i32 : i32
    %49 = arith.index_cast %48 : i32 to index
    %c0_30 = arith.constant 0 : index
    %c0_31 = arith.constant 0 : index
    %50 = vector.load %arg1[%49, %c0_30, %c0_31] : memref<8x2x128xf32, #tpu.memory_space<vmem>>, vector<1x2x128xf32>
    %51 = vector.shape_cast %50 : vector<1x2x128xf32> to vector<2x128xf32>
    %c0_32 = arith.constant 0 : index
    %c0_33 = arith.constant 0 : index
    %52 = vector.load %arg7[%c0_32, %c0_33] : memref<2x32xf32, #tpu.memory_space<vmem>>, vector<2x32xf32>
    %c0_34 = arith.constant 0 : index
    %c0_35 = arith.constant 0 : index
    %53 = vector.load %arg8[%c0_34, %c0_35] : memref<2x32xf32, #tpu.memory_space<vmem>>, vector<2x32xf32>
    %cst_36 = arith.constant dense<0.000000e+00> : vector<2x128xf32>
    %54 = tpu.matmul %52, %9, %cst_36 {dimension_numbers = #tpu.dot_dimension_numbers<[1], [0], [0], [1], [0, 0, 1, 1], [], []>} : vector<2x32xf32>, vector<32x128xf32>, vector<2x128xf32> -> vector<2x128xf32>
    %55 = arith.addf %51, %54 : vector<2x128xf32>
    %56 = vector.extract_strided_slice %55 {offsets = [0, 0], sizes = [2, 32], strides = [1, 1]} : vector<2x128xf32> to vector<2x32xf32>
    %57 = arith.negf %56 : vector<2x32xf32>
    %58 = math.exp %57 : vector<2x32xf32>
    %cst_37 = arith.constant 1.000000e+00 : f32
    %59 = vector.broadcast %cst_37 : f32 to vector<2x32xf32>
    %60 = arith.addf %59, %58 : vector<2x32xf32>
    %61 = arith.divf %59, %60 : vector<2x32xf32>
    %62 = vector.extract_strided_slice %55 {offsets = [0, 32], sizes = [2, 32], strides = [1, 1]} : vector<2x128xf32> to vector<2x32xf32>
    %63 = arith.negf %62 : vector<2x32xf32>
    %64 = math.exp %63 : vector<2x32xf32>
    %cst_38 = arith.constant 1.000000e+00 : f32
    %65 = vector.broadcast %cst_38 : f32 to vector<2x32xf32>
    %66 = arith.addf %65, %64 : vector<2x32xf32>
    %67 = arith.divf %65, %66 : vector<2x32xf32>
    %68 = vector.extract_strided_slice %55 {offsets = [0, 64], sizes = [2, 32], strides = [1, 1]} : vector<2x128xf32> to vector<2x32xf32>
    %69 = math.tanh %68 : vector<2x32xf32>
    %70 = vector.extract_strided_slice %55 {offsets = [0, 96], sizes = [2, 32], strides = [1, 1]} : vector<2x128xf32> to vector<2x32xf32>
    %71 = arith.negf %70 : vector<2x32xf32>
    %72 = math.exp %71 : vector<2x32xf32>
    %cst_39 = arith.constant 1.000000e+00 : f32
    %73 = vector.broadcast %cst_39 : f32 to vector<2x32xf32>
    %74 = arith.addf %73, %72 : vector<2x32xf32>
    %75 = arith.divf %73, %74 : vector<2x32xf32>
    %76 = arith.mulf %67, %53 : vector<2x32xf32>
    %77 = arith.mulf %61, %69 : vector<2x32xf32>
    %78 = arith.addf %76, %77 : vector<2x32xf32>
    %79 = math.tanh %78 : vector<2x32xf32>
    %80 = arith.mulf %75, %79 : vector<2x32xf32>
    %c0_40 = arith.constant 0 : index
    %c0_41 = arith.constant 0 : index
    %81 = vector.load %arg7[%c0_40, %c0_41] : memref<2x32xf32, #tpu.memory_space<vmem>>, vector<2x32xf32>
    tpu.vector_store %arg7[%c0_40, %c0_41], %80 {strides = array<i32>} : memref<2x32xf32, #tpu.memory_space<vmem>>, vector<2x32xf32>,
    %c0_42 = arith.constant 0 : index
    %c0_43 = arith.constant 0 : index
    %82 = vector.load %arg8[%c0_42, %c0_43] : memref<2x32xf32, #tpu.memory_space<vmem>>, vector<2x32xf32>
    tpu.vector_store %arg8[%c0_42, %c0_43], %78 {strides = array<i32>} : memref<2x32xf32, #tpu.memory_space<vmem>>, vector<2x32xf32>,
    %83 = arith.index_cast %48 : i32 to index
    %c0_44 = arith.constant 0 : index
    %c32 = arith.constant 32 : index
    %84 = vector.load %arg4[%83, %c0_44, %c32] : memref<8x2x64xf32, #tpu.memory_space<vmem>>, vector<1x2x32xf32>
    %85 = vector.shape_cast %84 : vector<1x2x32xf32> to vector<2x32xf32>
    %86 = vector.shape_cast %80 : vector<2x32xf32> to vector<1x2x32xf32>
    tpu.vector_store %arg4[%83, %c0_44, %c32], %86 {strides = array<i32>} : memref<8x2x64xf32, #tpu.memory_space<vmem>>, vector<1x2x32xf32>,
    %c1_i32 = arith.constant 1 : i32
    %87 = arith.index_cast %c1_i32 : i32 to index
    %c0_45 = arith.constant 0 : index
    %c0_46 = arith.constant 0 : index
    %88 = vector.load %arg0[%87, %c0_45, %c0_46] : memref<8x2x128xf32, #tpu.memory_space<vmem>>, vector<1x2x128xf32>
    %89 = vector.shape_cast %88 : vector<1x2x128xf32> to vector<2x128xf32>
    %c0_47 = arith.constant 0 : index
    %c0_48 = arith.constant 0 : index
    %90 = vector.load %arg5[%c0_47, %c0_48] : memref<2x32xf32, #tpu.memory_space<vmem>>, vector<2x32xf32>
    %c0_49 = arith.constant 0 : index
    %c0_50 = arith.constant 0 : index
    %91 = vector.load %arg6[%c0_49, %c0_50] : memref<2x32xf32, #tpu.memory_space<vmem>>, vector<2x32xf32>
    %cst_51 = arith.constant dense<0.000000e+00> : vector<2x128xf32>
    %92 = tpu.matmul %90, %8, %cst_51 {dimension_numbers = #tpu.dot_dimension_numbers<[1], [0], [0], [1], [0, 0, 1, 1], [], []>} : vector<2x32xf32>, vector<32x128xf32>, vector<2x128xf32> -> vector<2x128xf32>
    %93 = arith.addf %89, %92 : vector<2x128xf32>
    %94 = vector.extract_strided_slice %93 {offsets = [0, 0], sizes = [2, 32], strides = [1, 1]} : vector<2x128xf32> to vector<2x32xf32>
    %95 = arith.negf %94 : vector<2x32xf32>
    %96 = math.exp %95 : vector<2x32xf32>
    %cst_52 = arith.constant 1.000000e+00 : f32
    %97 = vector.broadcast %cst_52 : f32 to vector<2x32xf32>
    %98 = arith.addf %97, %96 : vector<2x32xf32>
    %99 = arith.divf %97, %98 : vector<2x32xf32>
    %100 = vector.extract_strided_slice %93 {offsets = [0, 32], sizes = [2, 32], strides = [1, 1]} : vector<2x128xf32> to vector<2x32xf32>
    %101 = arith.negf %100 : vector<2x32xf32>
    %102 = math.exp %101 : vector<2x32xf32>
    %cst_53 = arith.constant 1.000000e+00 : f32
    %103 = vector.broadcast %cst_53 : f32 to vector<2x32xf32>
    %104 = arith.addf %103, %102 : vector<2x32xf32>
    %105 = arith.divf %103, %104 : vector<2x32xf32>
    %106 = vector.extract_strided_slice %93 {offsets = [0, 64], sizes = [2, 32], strides = [1, 1]} : vector<2x128xf32> to vector<2x32xf32>
    %107 = math.tanh %106 : vector<2x32xf32>
    %108 = vector.extract_strided_slice %93 {offsets = [0, 96], sizes = [2, 32], strides = [1, 1]} : vector<2x128xf32> to vector<2x32xf32>
    %109 = arith.negf %108 : vector<2x32xf32>
    %110 = math.exp %109 : vector<2x32xf32>
    %cst_54 = arith.constant 1.000000e+00 : f32
    %111 = vector.broadcast %cst_54 : f32 to vector<2x32xf32>
    %112 = arith.addf %111, %110 : vector<2x32xf32>
    %113 = arith.divf %111, %112 : vector<2x32xf32>
    %114 = arith.mulf %105, %91 : vector<2x32xf32>
    %115 = arith.mulf %99, %107 : vector<2x32xf32>
    %116 = arith.addf %114, %115 : vector<2x32xf32>
    %117 = math.tanh %116 : vector<2x32xf32>
    %118 = arith.mulf %113, %117 : vector<2x32xf32>
    %c0_55 = arith.constant 0 : index
    %c0_56 = arith.constant 0 : index
    %119 = vector.load %arg5[%c0_55, %c0_56] : memref<2x32xf32, #tpu.memory_space<vmem>>, vector<2x32xf32>
    tpu.vector_store %arg5[%c0_55, %c0_56], %118 {strides = array<i32>} : memref<2x32xf32, #tpu.memory_space<vmem>>, vector<2x32xf32>,
    %c0_57 = arith.constant 0 : index
    %c0_58 = arith.constant 0 : index
    %120 = vector.load %arg6[%c0_57, %c0_58] : memref<2x32xf32, #tpu.memory_space<vmem>>, vector<2x32xf32>
    tpu.vector_store %arg6[%c0_57, %c0_58], %116 {strides = array<i32>} : memref<2x32xf32, #tpu.memory_space<vmem>>, vector<2x32xf32>,
    %121 = arith.index_cast %c1_i32 : i32 to index
    %c0_59 = arith.constant 0 : index
    %c0_60 = arith.constant 0 : index
    %122 = vector.load %arg4[%121, %c0_59, %c0_60] : memref<8x2x64xf32, #tpu.memory_space<vmem>>, vector<1x2x32xf32>
    %123 = vector.shape_cast %122 : vector<1x2x32xf32> to vector<2x32xf32>
    %124 = vector.shape_cast %118 : vector<2x32xf32> to vector<1x2x32xf32>
    tpu.vector_store %arg4[%121, %c0_59, %c0_60], %124 {strides = array<i32>} : memref<8x2x64xf32, #tpu.memory_space<vmem>>, vector<1x2x32xf32>,
    %c7_i32_61 = arith.constant 7 : i32
    %125 = arith.subi %c7_i32_61, %c1_i32 : i32
    %126 = arith.index_cast %125 : i32 to index
    %c0_62 = arith.constant 0 : index
    %c0_63 = arith.constant 0 : index
    %127 = vector.load %arg1[%126, %c0_62, %c0_63] : memref<8x2x128xf32, #tpu.memory_space<vmem>>, vector<1x2x128xf32>
    %128 = vector.shape_cast %127 : vector<1x2x128xf32> to vector<2x128xf32>
    %c0_64 = arith.constant 0 : index
    %c0_65 = arith.constant 0 : index
    %129 = vector.load %arg7[%c0_64, %c0_65] : memref<2x32xf32, #tpu.memory_space<vmem>>, vector<2x32xf32>
    %c0_66 = arith.constant 0 : index
    %c0_67 = arith.constant 0 : index
    %130 = vector.load %arg8[%c0_66, %c0_67] : memref<2x32xf32, #tpu.memory_space<vmem>>, vector<2x32xf32>
    %cst_68 = arith.constant dense<0.000000e+00> : vector<2x128xf32>
    %131 = tpu.matmul %129, %9, %cst_68 {dimension_numbers = #tpu.dot_dimension_numbers<[1], [0], [0], [1], [0, 0, 1, 1], [], []>} : vector<2x32xf32>, vector<32x128xf32>, vector<2x128xf32> -> vector<2x128xf32>
    %132 = arith.addf %128, %131 : vector<2x128xf32>
    %133 = vector.extract_strided_slice %132 {offsets = [0, 0], sizes = [2, 32], strides = [1, 1]} : vector<2x128xf32> to vector<2x32xf32>
    %134 = arith.negf %133 : vector<2x32xf32>
    %135 = math.exp %134 : vector<2x32xf32>
    %cst_69 = arith.constant 1.000000e+00 : f32
    %136 = vector.broadcast %cst_69 : f32 to vector<2x32xf32>
    %137 = arith.addf %136, %135 : vector<2x32xf32>
    %138 = arith.divf %136, %137 : vector<2x32xf32>
    %139 = vector.extract_strided_slice %132 {offsets = [0, 32], sizes = [2, 32], strides = [1, 1]} : vector<2x128xf32> to vector<2x32xf32>
    %140 = arith.negf %139 : vector<2x32xf32>
    %141 = math.exp %140 : vector<2x32xf32>
    %cst_70 = arith.constant 1.000000e+00 : f32
    %142 = vector.broadcast %cst_70 : f32 to vector<2x32xf32>
    %143 = arith.addf %142, %141 : vector<2x32xf32>
    %144 = arith.divf %142, %143 : vector<2x32xf32>
    %145 = vector.extract_strided_slice %132 {offsets = [0, 64], sizes = [2, 32], strides = [1, 1]} : vector<2x128xf32> to vector<2x32xf32>
    %146 = math.tanh %145 : vector<2x32xf32>
    %147 = vector.extract_strided_slice %132 {offsets = [0, 96], sizes = [2, 32], strides = [1, 1]} : vector<2x128xf32> to vector<2x32xf32>
    %148 = arith.negf %147 : vector<2x32xf32>
    %149 = math.exp %148 : vector<2x32xf32>
    %cst_71 = arith.constant 1.000000e+00 : f32
    %150 = vector.broadcast %cst_71 : f32 to vector<2x32xf32>
    %151 = arith.addf %150, %149 : vector<2x32xf32>
    %152 = arith.divf %150, %151 : vector<2x32xf32>
    %153 = arith.mulf %144, %130 : vector<2x32xf32>
    %154 = arith.mulf %138, %146 : vector<2x32xf32>
    %155 = arith.addf %153, %154 : vector<2x32xf32>
    %156 = math.tanh %155 : vector<2x32xf32>
    %157 = arith.mulf %152, %156 : vector<2x32xf32>
    %c0_72 = arith.constant 0 : index
    %c0_73 = arith.constant 0 : index
    %158 = vector.load %arg7[%c0_72, %c0_73] : memref<2x32xf32, #tpu.memory_space<vmem>>, vector<2x32xf32>
    tpu.vector_store %arg7[%c0_72, %c0_73], %157 {strides = array<i32>} : memref<2x32xf32, #tpu.memory_space<vmem>>, vector<2x32xf32>,
    %c0_74 = arith.constant 0 : index
    %c0_75 = arith.constant 0 : index
    %159 = vector.load %arg8[%c0_74, %c0_75] : memref<2x32xf32, #tpu.memory_space<vmem>>, vector<2x32xf32>
    tpu.vector_store %arg8[%c0_74, %c0_75], %155 {strides = array<i32>} : memref<2x32xf32, #tpu.memory_space<vmem>>, vector<2x32xf32>,
    %160 = arith.index_cast %125 : i32 to index
    %c0_76 = arith.constant 0 : index
    %c32_77 = arith.constant 32 : index
    %161 = vector.load %arg4[%160, %c0_76, %c32_77] : memref<8x2x64xf32, #tpu.memory_space<vmem>>, vector<1x2x32xf32>
    %162 = vector.shape_cast %161 : vector<1x2x32xf32> to vector<2x32xf32>
    %163 = vector.shape_cast %157 : vector<2x32xf32> to vector<1x2x32xf32>
    tpu.vector_store %arg4[%160, %c0_76, %c32_77], %163 {strides = array<i32>} : memref<8x2x64xf32, #tpu.memory_space<vmem>>, vector<1x2x32xf32>,
    %c2_i32 = arith.constant 2 : i32
    %164 = arith.index_cast %c2_i32 : i32 to index
    %c0_78 = arith.constant 0 : index
    %c0_79 = arith.constant 0 : index
    %165 = vector.load %arg0[%164, %c0_78, %c0_79] : memref<8x2x128xf32, #tpu.memory_space<vmem>>, vector<1x2x128xf32>
    %166 = vector.shape_cast %165 : vector<1x2x128xf32> to vector<2x128xf32>
    %c0_80 = arith.constant 0 : index
    %c0_81 = arith.constant 0 : index
    %167 = vector.load %arg5[%c0_80, %c0_81] : memref<2x32xf32, #tpu.memory_space<vmem>>, vector<2x32xf32>
    %c0_82 = arith.constant 0 : index
    %c0_83 = arith.constant 0 : index
    %168 = vector.load %arg6[%c0_82, %c0_83] : memref<2x32xf32, #tpu.memory_space<vmem>>, vector<2x32xf32>
    %cst_84 = arith.constant dense<0.000000e+00> : vector<2x128xf32>
    %169 = tpu.matmul %167, %8, %cst_84 {dimension_numbers = #tpu.dot_dimension_numbers<[1], [0], [0], [1], [0, 0, 1, 1], [], []>} : vector<2x32xf32>, vector<32x128xf32>, vector<2x128xf32> -> vector<2x128xf32>
    %170 = arith.addf %166, %169 : vector<2x128xf32>
    %171 = vector.extract_strided_slice %170 {offsets = [0, 0], sizes = [2, 32], strides = [1, 1]} : vector<2x128xf32> to vector<2x32xf32>
    %172 = arith.negf %171 : vector<2x32xf32>
    %173 = math.exp %172 : vector<2x32xf32>
    %cst_85 = arith.constant 1.000000e+00 : f32
    %174 = vector.broadcast %cst_85 : f32 to vector<2x32xf32>
    %175 = arith.addf %174, %173 : vector<2x32xf32>
    %176 = arith.divf %174, %175 : vector<2x32xf32>
    %177 = vector.extract_strided_slice %170 {offsets = [0, 32], sizes = [2, 32], strides = [1, 1]} : vector<2x128xf32> to vector<2x32xf32>
    %178 = arith.negf %177 : vector<2x32xf32>
    %179 = math.exp %178 : vector<2x32xf32>
    %cst_86 = arith.constant 1.000000e+00 : f32
    %180 = vector.broadcast %cst_86 : f32 to vector<2x32xf32>
    %181 = arith.addf %180, %179 : vector<2x32xf32>
    %182 = arith.divf %180, %181 : vector<2x32xf32>
    %183 = vector.extract_strided_slice %170 {offsets = [0, 64], sizes = [2, 32], strides = [1, 1]} : vector<2x128xf32> to vector<2x32xf32>
    %184 = math.tanh %183 : vector<2x32xf32>
    %185 = vector.extract_strided_slice %170 {offsets = [0, 96], sizes = [2, 32], strides = [1, 1]} : vector<2x128xf32> to vector<2x32xf32>
    %186 = arith.negf %185 : vector<2x32xf32>
    %187 = math.exp %186 : vector<2x32xf32>
    %cst_87 = arith.constant 1.000000e+00 : f32
    %188 = vector.broadcast %cst_87 : f32 to vector<2x32xf32>
    %189 = arith.addf %188, %187 : vector<2x32xf32>
    %190 = arith.divf %188, %189 : vector<2x32xf32>
    %191 = arith.mulf %182, %168 : vector<2x32xf32>
    %192 = arith.mulf %176, %184 : vector<2x32xf32>
    %193 = arith.addf %191, %192 : vector<2x32xf32>
    %194 = math.tanh %193 : vector<2x32xf32>
    %195 = arith.mulf %190, %194 : vector<2x32xf32>
    %c0_88 = arith.constant 0 : index
    %c0_89 = arith.constant 0 : index
    %196 = vector.load %arg5[%c0_88, %c0_89] : memref<2x32xf32, #tpu.memory_space<vmem>>, vector<2x32xf32>
    tpu.vector_store %arg5[%c0_88, %c0_89], %195 {strides = array<i32>} : memref<2x32xf32, #tpu.memory_space<vmem>>, vector<2x32xf32>,
    %c0_90 = arith.constant 0 : index
    %c0_91 = arith.constant 0 : index
    %197 = vector.load %arg6[%c0_90, %c0_91] : memref<2x32xf32, #tpu.memory_space<vmem>>, vector<2x32xf32>
    tpu.vector_store %arg6[%c0_90, %c0_91], %193 {strides = array<i32>} : memref<2x32xf32, #tpu.memory_space<vmem>>, vector<2x32xf32>,
    %198 = arith.index_cast %c2_i32 : i32 to index
    %c0_92 = arith.constant 0 : index
    %c0_93 = arith.constant 0 : index
    %199 = vector.load %arg4[%198, %c0_92, %c0_93] : memref<8x2x64xf32, #tpu.memory_space<vmem>>, vector<1x2x32xf32>
    %200 = vector.shape_cast %199 : vector<1x2x32xf32> to vector<2x32xf32>
    %201 = vector.shape_cast %195 : vector<2x32xf32> to vector<1x2x32xf32>
    tpu.vector_store %arg4[%198, %c0_92, %c0_93], %201 {strides = array<i32>} : memref<8x2x64xf32, #tpu.memory_space<vmem>>, vector<1x2x32xf32>,
    %c7_i32_94 = arith.constant 7 : i32
    %202 = arith.subi %c7_i32_94, %c2_i32 : i32
    %203 = arith.index_cast %202 : i32 to index
    %c0_95 = arith.constant 0 : index
    %c0_96 = arith.constant 0 : index
    %204 = vector.load %arg1[%203, %c0_95, %c0_96] : memref<8x2x128xf32, #tpu.memory_space<vmem>>, vector<1x2x128xf32>
    %205 = vector.shape_cast %204 : vector<1x2x128xf32> to vector<2x128xf32>
    %c0_97 = arith.constant 0 : index
    %c0_98 = arith.constant 0 : index
    %206 = vector.load %arg7[%c0_97, %c0_98] : memref<2x32xf32, #tpu.memory_space<vmem>>, vector<2x32xf32>
    %c0_99 = arith.constant 0 : index
    %c0_100 = arith.constant 0 : index
    %207 = vector.load %arg8[%c0_99, %c0_100] : memref<2x32xf32, #tpu.memory_space<vmem>>, vector<2x32xf32>
    %cst_101 = arith.constant dense<0.000000e+00> : vector<2x128xf32>
    %208 = tpu.matmul %206, %9, %cst_101 {dimension_numbers = #tpu.dot_dimension_numbers<[1], [0], [0], [1], [0, 0, 1, 1], [], []>} : vector<2x32xf32>, vector<32x128xf32>, vector<2x128xf32> -> vector<2x128xf32>
    %209 = arith.addf %205, %208 : vector<2x128xf32>
    %210 = vector.extract_strided_slice %209 {offsets = [0, 0], sizes = [2, 32], strides = [1, 1]} : vector<2x128xf32> to vector<2x32xf32>
    %211 = arith.negf %210 : vector<2x32xf32>
    %212 = math.exp %211 : vector<2x32xf32>
    %cst_102 = arith.constant 1.000000e+00 : f32
    %213 = vector.broadcast %cst_102 : f32 to vector<2x32xf32>
    %214 = arith.addf %213, %212 : vector<2x32xf32>
    %215 = arith.divf %213, %214 : vector<2x32xf32>
    %216 = vector.extract_strided_slice %209 {offsets = [0, 32], sizes = [2, 32], strides = [1, 1]} : vector<2x128xf32> to vector<2x32xf32>
    %217 = arith.negf %216 : vector<2x32xf32>
    %218 = math.exp %217 : vector<2x32xf32>
    %cst_103 = arith.constant 1.000000e+00 : f32
    %219 = vector.broadcast %cst_103 : f32 to vector<2x32xf32>
    %220 = arith.addf %219, %218 : vector<2x32xf32>
    %221 = arith.divf %219, %220 : vector<2x32xf32>
    %222 = vector.extract_strided_slice %209 {offsets = [0, 64], sizes = [2, 32], strides = [1, 1]} : vector<2x128xf32> to vector<2x32xf32>
    %223 = math.tanh %222 : vector<2x32xf32>
    %224 = vector.extract_strided_slice %209 {offsets = [0, 96], sizes = [2, 32], strides = [1, 1]} : vector<2x128xf32> to vector<2x32xf32>
    %225 = arith.negf %224 : vector<2x32xf32>
    %226 = math.exp %225 : vector<2x32xf32>
    %cst_104 = arith.constant 1.000000e+00 : f32
    %227 = vector.broadcast %cst_104 : f32 to vector<2x32xf32>
    %228 = arith.addf %227, %226 : vector<2x32xf32>
    %229 = arith.divf %227, %228 : vector<2x32xf32>
    %230 = arith.mulf %221, %207 : vector<2x32xf32>
    %231 = arith.mulf %215, %223 : vector<2x32xf32>
    %232 = arith.addf %230, %231 : vector<2x32xf32>
    %233 = math.tanh %232 : vector<2x32xf32>
    %234 = arith.mulf %229, %233 : vector<2x32xf32>
    %c0_105 = arith.constant 0 : index
    %c0_106 = arith.constant 0 : index
    %235 = vector.load %arg7[%c0_105, %c0_106] : memref<2x32xf32, #tpu.memory_space<vmem>>, vector<2x32xf32>
    tpu.vector_store %arg7[%c0_105, %c0_106], %234 {strides = array<i32>} : memref<2x32xf32, #tpu.memory_space<vmem>>, vector<2x32xf32>,
    %c0_107 = arith.constant 0 : index
    %c0_108 = arith.constant 0 : index
    %236 = vector.load %arg8[%c0_107, %c0_108] : memref<2x32xf32, #tpu.memory_space<vmem>>, vector<2x32xf32>
    tpu.vector_store %arg8[%c0_107, %c0_108], %232 {strides = array<i32>} : memref<2x32xf32, #tpu.memory_space<vmem>>, vector<2x32xf32>,
    %237 = arith.index_cast %202 : i32 to index
    %c0_109 = arith.constant 0 : index
    %c32_110 = arith.constant 32 : index
    %238 = vector.load %arg4[%237, %c0_109, %c32_110] : memref<8x2x64xf32, #tpu.memory_space<vmem>>, vector<1x2x32xf32>
    %239 = vector.shape_cast %238 : vector<1x2x32xf32> to vector<2x32xf32>
    %240 = vector.shape_cast %234 : vector<2x32xf32> to vector<1x2x32xf32>
    tpu.vector_store %arg4[%237, %c0_109, %c32_110], %240 {strides = array<i32>} : memref<8x2x64xf32, #tpu.memory_space<vmem>>, vector<1x2x32xf32>,
    %c3_i32 = arith.constant 3 : i32
    %241 = arith.index_cast %c3_i32 : i32 to index
    %c0_111 = arith.constant 0 : index
    %c0_112 = arith.constant 0 : index
    %242 = vector.load %arg0[%241, %c0_111, %c0_112] : memref<8x2x128xf32, #tpu.memory_space<vmem>>, vector<1x2x128xf32>
    %243 = vector.shape_cast %242 : vector<1x2x128xf32> to vector<2x128xf32>
    %c0_113 = arith.constant 0 : index
    %c0_114 = arith.constant 0 : index
    %244 = vector.load %arg5[%c0_113, %c0_114] : memref<2x32xf32, #tpu.memory_space<vmem>>, vector<2x32xf32>
    %c0_115 = arith.constant 0 : index
    %c0_116 = arith.constant 0 : index
    %245 = vector.load %arg6[%c0_115, %c0_116] : memref<2x32xf32, #tpu.memory_space<vmem>>, vector<2x32xf32>
    %cst_117 = arith.constant dense<0.000000e+00> : vector<2x128xf32>
    %246 = tpu.matmul %244, %8, %cst_117 {dimension_numbers = #tpu.dot_dimension_numbers<[1], [0], [0], [1], [0, 0, 1, 1], [], []>} : vector<2x32xf32>, vector<32x128xf32>, vector<2x128xf32> -> vector<2x128xf32>
    %247 = arith.addf %243, %246 : vector<2x128xf32>
    %248 = vector.extract_strided_slice %247 {offsets = [0, 0], sizes = [2, 32], strides = [1, 1]} : vector<2x128xf32> to vector<2x32xf32>
    %249 = arith.negf %248 : vector<2x32xf32>
    %250 = math.exp %249 : vector<2x32xf32>
    %cst_118 = arith.constant 1.000000e+00 : f32
    %251 = vector.broadcast %cst_118 : f32 to vector<2x32xf32>
    %252 = arith.addf %251, %250 : vector<2x32xf32>
    %253 = arith.divf %251, %252 : vector<2x32xf32>
    %254 = vector.extract_strided_slice %247 {offsets = [0, 32], sizes = [2, 32], strides = [1, 1]} : vector<2x128xf32> to vector<2x32xf32>
    %255 = arith.negf %254 : vector<2x32xf32>
    %256 = math.exp %255 : vector<2x32xf32>
    %cst_119 = arith.constant 1.000000e+00 : f32
    %257 = vector.broadcast %cst_119 : f32 to vector<2x32xf32>
    %258 = arith.addf %257, %256 : vector<2x32xf32>
    %259 = arith.divf %257, %258 : vector<2x32xf32>
    %260 = vector.extract_strided_slice %247 {offsets = [0, 64], sizes = [2, 32], strides = [1, 1]} : vector<2x128xf32> to vector<2x32xf32>
    %261 = math.tanh %260 : vector<2x32xf32>
    %262 = vector.extract_strided_slice %247 {offsets = [0, 96], sizes = [2, 32], strides = [1, 1]} : vector<2x128xf32> to vector<2x32xf32>
    %263 = arith.negf %262 : vector<2x32xf32>
    %264 = math.exp %263 : vector<2x32xf32>
    %cst_120 = arith.constant 1.000000e+00 : f32
    %265 = vector.broadcast %cst_120 : f32 to vector<2x32xf32>
    %266 = arith.addf %265, %264 : vector<2x32xf32>
    %267 = arith.divf %265, %266 : vector<2x32xf32>
    %268 = arith.mulf %259, %245 : vector<2x32xf32>
    %269 = arith.mulf %253, %261 : vector<2x32xf32>
    %270 = arith.addf %268, %269 : vector<2x32xf32>
    %271 = math.tanh %270 : vector<2x32xf32>
    %272 = arith.mulf %267, %271 : vector<2x32xf32>
    %c0_121 = arith.constant 0 : index
    %c0_122 = arith.constant 0 : index
    %273 = vector.load %arg5[%c0_121, %c0_122] : memref<2x32xf32, #tpu.memory_space<vmem>>, vector<2x32xf32>
    tpu.vector_store %arg5[%c0_121, %c0_122], %272 {strides = array<i32>} : memref<2x32xf32, #tpu.memory_space<vmem>>, vector<2x32xf32>,
    %c0_123 = arith.constant 0 : index
    %c0_124 = arith.constant 0 : index
    %274 = vector.load %arg6[%c0_123, %c0_124] : memref<2x32xf32, #tpu.memory_space<vmem>>, vector<2x32xf32>
    tpu.vector_store %arg6[%c0_123, %c0_124], %270 {strides = array<i32>} : memref<2x32xf32, #tpu.memory_space<vmem>>, vector<2x32xf32>,
    %275 = arith.index_cast %c3_i32 : i32 to index
    %c0_125 = arith.constant 0 : index
    %c0_126 = arith.constant 0 : index
    %276 = vector.load %arg4[%275, %c0_125, %c0_126] : memref<8x2x64xf32, #tpu.memory_space<vmem>>, vector<1x2x32xf32>
    %277 = vector.shape_cast %276 : vector<1x2x32xf32> to vector<2x32xf32>
    %278 = vector.shape_cast %272 : vector<2x32xf32> to vector<1x2x32xf32>
    tpu.vector_store %arg4[%275, %c0_125, %c0_126], %278 {strides = array<i32>} : memref<8x2x64xf32, #tpu.memory_space<vmem>>, vector<1x2x32xf32>,
    %c7_i32_127 = arith.constant 7 : i32
    %279 = arith.subi %c7_i32_127, %c3_i32 : i32
    %280 = arith.index_cast %279 : i32 to index
    %c0_128 = arith.constant 0 : index
    %c0_129 = arith.constant 0 : index
    %281 = vector.load %arg1[%280, %c0_128, %c0_129] : memref<8x2x128xf32, #tpu.memory_space<vmem>>, vector<1x2x128xf32>
    %282 = vector.shape_cast %281 : vector<1x2x128xf32> to vector<2x128xf32>
    %c0_130 = arith.constant 0 : index
    %c0_131 = arith.constant 0 : index
    %283 = vector.load %arg7[%c0_130, %c0_131] : memref<2x32xf32, #tpu.memory_space<vmem>>, vector<2x32xf32>
    %c0_132 = arith.constant 0 : index
    %c0_133 = arith.constant 0 : index
    %284 = vector.load %arg8[%c0_132, %c0_133] : memref<2x32xf32, #tpu.memory_space<vmem>>, vector<2x32xf32>
    %cst_134 = arith.constant dense<0.000000e+00> : vector<2x128xf32>
    %285 = tpu.matmul %283, %9, %cst_134 {dimension_numbers = #tpu.dot_dimension_numbers<[1], [0], [0], [1], [0, 0, 1, 1], [], []>} : vector<2x32xf32>, vector<32x128xf32>, vector<2x128xf32> -> vector<2x128xf32>
    %286 = arith.addf %282, %285 : vector<2x128xf32>
    %287 = vector.extract_strided_slice %286 {offsets = [0, 0], sizes = [2, 32], strides = [1, 1]} : vector<2x128xf32> to vector<2x32xf32>
    %288 = arith.negf %287 : vector<2x32xf32>
    %289 = math.exp %288 : vector<2x32xf32>
    %cst_135 = arith.constant 1.000000e+00 : f32
    %290 = vector.broadcast %cst_135 : f32 to vector<2x32xf32>
    %291 = arith.addf %290, %289 : vector<2x32xf32>
    %292 = arith.divf %290, %291 : vector<2x32xf32>
    %293 = vector.extract_strided_slice %286 {offsets = [0, 32], sizes = [2, 32], strides = [1, 1]} : vector<2x128xf32> to vector<2x32xf32>
    %294 = arith.negf %293 : vector<2x32xf32>
    %295 = math.exp %294 : vector<2x32xf32>
    %cst_136 = arith.constant 1.000000e+00 : f32
    %296 = vector.broadcast %cst_136 : f32 to vector<2x32xf32>
    %297 = arith.addf %296, %295 : vector<2x32xf32>
    %298 = arith.divf %296, %297 : vector<2x32xf32>
    %299 = vector.extract_strided_slice %286 {offsets = [0, 64], sizes = [2, 32], strides = [1, 1]} : vector<2x128xf32> to vector<2x32xf32>
    %300 = math.tanh %299 : vector<2x32xf32>
    %301 = vector.extract_strided_slice %286 {offsets = [0, 96], sizes = [2, 32], strides = [1, 1]} : vector<2x128xf32> to vector<2x32xf32>
    %302 = arith.negf %301 : vector<2x32xf32>
    %303 = math.exp %302 : vector<2x32xf32>
    %cst_137 = arith.constant 1.000000e+00 : f32
    %304 = vector.broadcast %cst_137 : f32 to vector<2x32xf32>
    %305 = arith.addf %304, %303 : vector<2x32xf32>
    %306 = arith.divf %304, %305 : vector<2x32xf32>
    %307 = arith.mulf %298, %284 : vector<2x32xf32>
    %308 = arith.mulf %292, %300 : vector<2x32xf32>
    %309 = arith.addf %307, %308 : vector<2x32xf32>
    %310 = math.tanh %309 : vector<2x32xf32>
    %311 = arith.mulf %306, %310 : vector<2x32xf32>
    %c0_138 = arith.constant 0 : index
    %c0_139 = arith.constant 0 : index
    %312 = vector.load %arg7[%c0_138, %c0_139] : memref<2x32xf32, #tpu.memory_space<vmem>>, vector<2x32xf32>
    tpu.vector_store %arg7[%c0_138, %c0_139], %311 {strides = array<i32>} : memref<2x32xf32, #tpu.memory_space<vmem>>, vector<2x32xf32>,
    %c0_140 = arith.constant 0 : index
    %c0_141 = arith.constant 0 : index
    %313 = vector.load %arg8[%c0_140, %c0_141] : memref<2x32xf32, #tpu.memory_space<vmem>>, vector<2x32xf32>
    tpu.vector_store %arg8[%c0_140, %c0_141], %309 {strides = array<i32>} : memref<2x32xf32, #tpu.memory_space<vmem>>, vector<2x32xf32>,
    %314 = arith.index_cast %279 : i32 to index
    %c0_142 = arith.constant 0 : index
    %c32_143 = arith.constant 32 : index
    %315 = vector.load %arg4[%314, %c0_142, %c32_143] : memref<8x2x64xf32, #tpu.memory_space<vmem>>, vector<1x2x32xf32>
    %316 = vector.shape_cast %315 : vector<1x2x32xf32> to vector<2x32xf32>
    %317 = vector.shape_cast %311 : vector<2x32xf32> to vector<1x2x32xf32>
    tpu.vector_store %arg4[%314, %c0_142, %c32_143], %317 {strides = array<i32>} : memref<8x2x64xf32, #tpu.memory_space<vmem>>, vector<1x2x32xf32>,
    %c4_i32 = arith.constant 4 : i32
    %318 = arith.index_cast %c4_i32 : i32 to index
    %c0_144 = arith.constant 0 : index
    %c0_145 = arith.constant 0 : index
    %319 = vector.load %arg0[%318, %c0_144, %c0_145] : memref<8x2x128xf32, #tpu.memory_space<vmem>>, vector<1x2x128xf32>
    %320 = vector.shape_cast %319 : vector<1x2x128xf32> to vector<2x128xf32>
    %c0_146 = arith.constant 0 : index
    %c0_147 = arith.constant 0 : index
    %321 = vector.load %arg5[%c0_146, %c0_147] : memref<2x32xf32, #tpu.memory_space<vmem>>, vector<2x32xf32>
    %c0_148 = arith.constant 0 : index
    %c0_149 = arith.constant 0 : index
    %322 = vector.load %arg6[%c0_148, %c0_149] : memref<2x32xf32, #tpu.memory_space<vmem>>, vector<2x32xf32>
    %cst_150 = arith.constant dense<0.000000e+00> : vector<2x128xf32>
    %323 = tpu.matmul %321, %8, %cst_150 {dimension_numbers = #tpu.dot_dimension_numbers<[1], [0], [0], [1], [0, 0, 1, 1], [], []>} : vector<2x32xf32>, vector<32x128xf32>, vector<2x128xf32> -> vector<2x128xf32>
    %324 = arith.addf %320, %323 : vector<2x128xf32>
    %325 = vector.extract_strided_slice %324 {offsets = [0, 0], sizes = [2, 32], strides = [1, 1]} : vector<2x128xf32> to vector<2x32xf32>
    %326 = arith.negf %325 : vector<2x32xf32>
    %327 = math.exp %326 : vector<2x32xf32>
    %cst_151 = arith.constant 1.000000e+00 : f32
    %328 = vector.broadcast %cst_151 : f32 to vector<2x32xf32>
    %329 = arith.addf %328, %327 : vector<2x32xf32>
    %330 = arith.divf %328, %329 : vector<2x32xf32>
    %331 = vector.extract_strided_slice %324 {offsets = [0, 32], sizes = [2, 32], strides = [1, 1]} : vector<2x128xf32> to vector<2x32xf32>
    %332 = arith.negf %331 : vector<2x32xf32>
    %333 = math.exp %332 : vector<2x32xf32>
    %cst_152 = arith.constant 1.000000e+00 : f32
    %334 = vector.broadcast %cst_152 : f32 to vector<2x32xf32>
    %335 = arith.addf %334, %333 : vector<2x32xf32>
    %336 = arith.divf %334, %335 : vector<2x32xf32>
    %337 = vector.extract_strided_slice %324 {offsets = [0, 64], sizes = [2, 32], strides = [1, 1]} : vector<2x128xf32> to vector<2x32xf32>
    %338 = math.tanh %337 : vector<2x32xf32>
    %339 = vector.extract_strided_slice %324 {offsets = [0, 96], sizes = [2, 32], strides = [1, 1]} : vector<2x128xf32> to vector<2x32xf32>
    %340 = arith.negf %339 : vector<2x32xf32>
    %341 = math.exp %340 : vector<2x32xf32>
    %cst_153 = arith.constant 1.000000e+00 : f32
    %342 = vector.broadcast %cst_153 : f32 to vector<2x32xf32>
    %343 = arith.addf %342, %341 : vector<2x32xf32>
    %344 = arith.divf %342, %343 : vector<2x32xf32>
    %345 = arith.mulf %336, %322 : vector<2x32xf32>
    %346 = arith.mulf %330, %338 : vector<2x32xf32>
    %347 = arith.addf %345, %346 : vector<2x32xf32>
    %348 = math.tanh %347 : vector<2x32xf32>
    %349 = arith.mulf %344, %348 : vector<2x32xf32>
    %c0_154 = arith.constant 0 : index
    %c0_155 = arith.constant 0 : index
    %350 = vector.load %arg5[%c0_154, %c0_155] : memref<2x32xf32, #tpu.memory_space<vmem>>, vector<2x32xf32>
    tpu.vector_store %arg5[%c0_154, %c0_155], %349 {strides = array<i32>} : memref<2x32xf32, #tpu.memory_space<vmem>>, vector<2x32xf32>,
    %c0_156 = arith.constant 0 : index
    %c0_157 = arith.constant 0 : index
    %351 = vector.load %arg6[%c0_156, %c0_157] : memref<2x32xf32, #tpu.memory_space<vmem>>, vector<2x32xf32>
    tpu.vector_store %arg6[%c0_156, %c0_157], %347 {strides = array<i32>} : memref<2x32xf32, #tpu.memory_space<vmem>>, vector<2x32xf32>,
    %352 = arith.index_cast %c4_i32 : i32 to index
    %c0_158 = arith.constant 0 : index
    %c0_159 = arith.constant 0 : index
    %353 = vector.load %arg4[%352, %c0_158, %c0_159] : memref<8x2x64xf32, #tpu.memory_space<vmem>>, vector<1x2x32xf32>
    %354 = vector.shape_cast %353 : vector<1x2x32xf32> to vector<2x32xf32>
    %355 = vector.shape_cast %349 : vector<2x32xf32> to vector<1x2x32xf32>
    tpu.vector_store %arg4[%352, %c0_158, %c0_159], %355 {strides = array<i32>} : memref<8x2x64xf32, #tpu.memory_space<vmem>>, vector<1x2x32xf32>,
    %c7_i32_160 = arith.constant 7 : i32
    %356 = arith.subi %c7_i32_160, %c4_i32 : i32
    %357 = arith.index_cast %356 : i32 to index
    %c0_161 = arith.constant 0 : index
    %c0_162 = arith.constant 0 : index
    %358 = vector.load %arg1[%357, %c0_161, %c0_162] : memref<8x2x128xf32, #tpu.memory_space<vmem>>, vector<1x2x128xf32>
    %359 = vector.shape_cast %358 : vector<1x2x128xf32> to vector<2x128xf32>
    %c0_163 = arith.constant 0 : index
    %c0_164 = arith.constant 0 : index
    %360 = vector.load %arg7[%c0_163, %c0_164] : memref<2x32xf32, #tpu.memory_space<vmem>>, vector<2x32xf32>
    %c0_165 = arith.constant 0 : index
    %c0_166 = arith.constant 0 : index
    %361 = vector.load %arg8[%c0_165, %c0_166] : memref<2x32xf32, #tpu.memory_space<vmem>>, vector<2x32xf32>
    %cst_167 = arith.constant dense<0.000000e+00> : vector<2x128xf32>
    %362 = tpu.matmul %360, %9, %cst_167 {dimension_numbers = #tpu.dot_dimension_numbers<[1], [0], [0], [1], [0, 0, 1, 1], [], []>} : vector<2x32xf32>, vector<32x128xf32>, vector<2x128xf32> -> vector<2x128xf32>
    %363 = arith.addf %359, %362 : vector<2x128xf32>
    %364 = vector.extract_strided_slice %363 {offsets = [0, 0], sizes = [2, 32], strides = [1, 1]} : vector<2x128xf32> to vector<2x32xf32>
    %365 = arith.negf %364 : vector<2x32xf32>
    %366 = math.exp %365 : vector<2x32xf32>
    %cst_168 = arith.constant 1.000000e+00 : f32
    %367 = vector.broadcast %cst_168 : f32 to vector<2x32xf32>
    %368 = arith.addf %367, %366 : vector<2x32xf32>
    %369 = arith.divf %367, %368 : vector<2x32xf32>
    %370 = vector.extract_strided_slice %363 {offsets = [0, 32], sizes = [2, 32], strides = [1, 1]} : vector<2x128xf32> to vector<2x32xf32>
    %371 = arith.negf %370 : vector<2x32xf32>
    %372 = math.exp %371 : vector<2x32xf32>
    %cst_169 = arith.constant 1.000000e+00 : f32
    %373 = vector.broadcast %cst_169 : f32 to vector<2x32xf32>
    %374 = arith.addf %373, %372 : vector<2x32xf32>
    %375 = arith.divf %373, %374 : vector<2x32xf32>
    %376 = vector.extract_strided_slice %363 {offsets = [0, 64], sizes = [2, 32], strides = [1, 1]} : vector<2x128xf32> to vector<2x32xf32>
    %377 = math.tanh %376 : vector<2x32xf32>
    %378 = vector.extract_strided_slice %363 {offsets = [0, 96], sizes = [2, 32], strides = [1, 1]} : vector<2x128xf32> to vector<2x32xf32>
    %379 = arith.negf %378 : vector<2x32xf32>
    %380 = math.exp %379 : vector<2x32xf32>
    %cst_170 = arith.constant 1.000000e+00 : f32
    %381 = vector.broadcast %cst_170 : f32 to vector<2x32xf32>
    %382 = arith.addf %381, %380 : vector<2x32xf32>
    %383 = arith.divf %381, %382 : vector<2x32xf32>
    %384 = arith.mulf %375, %361 : vector<2x32xf32>
    %385 = arith.mulf %369, %377 : vector<2x32xf32>
    %386 = arith.addf %384, %385 : vector<2x32xf32>
    %387 = math.tanh %386 : vector<2x32xf32>
    %388 = arith.mulf %383, %387 : vector<2x32xf32>
    %c0_171 = arith.constant 0 : index
    %c0_172 = arith.constant 0 : index
    %389 = vector.load %arg7[%c0_171, %c0_172] : memref<2x32xf32, #tpu.memory_space<vmem>>, vector<2x32xf32>
    tpu.vector_store %arg7[%c0_171, %c0_172], %388 {strides = array<i32>} : memref<2x32xf32, #tpu.memory_space<vmem>>, vector<2x32xf32>,
    %c0_173 = arith.constant 0 : index
    %c0_174 = arith.constant 0 : index
    %390 = vector.load %arg8[%c0_173, %c0_174] : memref<2x32xf32, #tpu.memory_space<vmem>>, vector<2x32xf32>
    tpu.vector_store %arg8[%c0_173, %c0_174], %386 {strides = array<i32>} : memref<2x32xf32, #tpu.memory_space<vmem>>, vector<2x32xf32>,
    %391 = arith.index_cast %356 : i32 to index
    %c0_175 = arith.constant 0 : index
    %c32_176 = arith.constant 32 : index
    %392 = vector.load %arg4[%391, %c0_175, %c32_176] : memref<8x2x64xf32, #tpu.memory_space<vmem>>, vector<1x2x32xf32>
    %393 = vector.shape_cast %392 : vector<1x2x32xf32> to vector<2x32xf32>
    %394 = vector.shape_cast %388 : vector<2x32xf32> to vector<1x2x32xf32>
    tpu.vector_store %arg4[%391, %c0_175, %c32_176], %394 {strides = array<i32>} : memref<8x2x64xf32, #tpu.memory_space<vmem>>, vector<1x2x32xf32>,
    %c5_i32 = arith.constant 5 : i32
    %395 = arith.index_cast %c5_i32 : i32 to index
    %c0_177 = arith.constant 0 : index
    %c0_178 = arith.constant 0 : index
    %396 = vector.load %arg0[%395, %c0_177, %c0_178] : memref<8x2x128xf32, #tpu.memory_space<vmem>>, vector<1x2x128xf32>
    %397 = vector.shape_cast %396 : vector<1x2x128xf32> to vector<2x128xf32>
    %c0_179 = arith.constant 0 : index
    %c0_180 = arith.constant 0 : index
    %398 = vector.load %arg5[%c0_179, %c0_180] : memref<2x32xf32, #tpu.memory_space<vmem>>, vector<2x32xf32>
    %c0_181 = arith.constant 0 : index
    %c0_182 = arith.constant 0 : index
    %399 = vector.load %arg6[%c0_181, %c0_182] : memref<2x32xf32, #tpu.memory_space<vmem>>, vector<2x32xf32>
    %cst_183 = arith.constant dense<0.000000e+00> : vector<2x128xf32>
    %400 = tpu.matmul %398, %8, %cst_183 {dimension_numbers = #tpu.dot_dimension_numbers<[1], [0], [0], [1], [0, 0, 1, 1], [], []>} : vector<2x32xf32>, vector<32x128xf32>, vector<2x128xf32> -> vector<2x128xf32>
    %401 = arith.addf %397, %400 : vector<2x128xf32>
    %402 = vector.extract_strided_slice %401 {offsets = [0, 0], sizes = [2, 32], strides = [1, 1]} : vector<2x128xf32> to vector<2x32xf32>
    %403 = arith.negf %402 : vector<2x32xf32>
    %404 = math.exp %403 : vector<2x32xf32>
    %cst_184 = arith.constant 1.000000e+00 : f32
    %405 = vector.broadcast %cst_184 : f32 to vector<2x32xf32>
    %406 = arith.addf %405, %404 : vector<2x32xf32>
    %407 = arith.divf %405, %406 : vector<2x32xf32>
    %408 = vector.extract_strided_slice %401 {offsets = [0, 32], sizes = [2, 32], strides = [1, 1]} : vector<2x128xf32> to vector<2x32xf32>
    %409 = arith.negf %408 : vector<2x32xf32>
    %410 = math.exp %409 : vector<2x32xf32>
    %cst_185 = arith.constant 1.000000e+00 : f32
    %411 = vector.broadcast %cst_185 : f32 to vector<2x32xf32>
    %412 = arith.addf %411, %410 : vector<2x32xf32>
    %413 = arith.divf %411, %412 : vector<2x32xf32>
    %414 = vector.extract_strided_slice %401 {offsets = [0, 64], sizes = [2, 32], strides = [1, 1]} : vector<2x128xf32> to vector<2x32xf32>
    %415 = math.tanh %414 : vector<2x32xf32>
    %416 = vector.extract_strided_slice %401 {offsets = [0, 96], sizes = [2, 32], strides = [1, 1]} : vector<2x128xf32> to vector<2x32xf32>
    %417 = arith.negf %416 : vector<2x32xf32>
    %418 = math.exp %417 : vector<2x32xf32>
    %cst_186 = arith.constant 1.000000e+00 : f32
    %419 = vector.broadcast %cst_186 : f32 to vector<2x32xf32>
    %420 = arith.addf %419, %418 : vector<2x32xf32>
    %421 = arith.divf %419, %420 : vector<2x32xf32>
    %422 = arith.mulf %413, %399 : vector<2x32xf32>
    %423 = arith.mulf %407, %415 : vector<2x32xf32>
    %424 = arith.addf %422, %423 : vector<2x32xf32>
    %425 = math.tanh %424 : vector<2x32xf32>
    %426 = arith.mulf %421, %425 : vector<2x32xf32>
    %c0_187 = arith.constant 0 : index
    %c0_188 = arith.constant 0 : index
    %427 = vector.load %arg5[%c0_187, %c0_188] : memref<2x32xf32, #tpu.memory_space<vmem>>, vector<2x32xf32>
    tpu.vector_store %arg5[%c0_187, %c0_188], %426 {strides = array<i32>} : memref<2x32xf32, #tpu.memory_space<vmem>>, vector<2x32xf32>,
    %c0_189 = arith.constant 0 : index
    %c0_190 = arith.constant 0 : index
    %428 = vector.load %arg6[%c0_189, %c0_190] : memref<2x32xf32, #tpu.memory_space<vmem>>, vector<2x32xf32>
    tpu.vector_store %arg6[%c0_189, %c0_190], %424 {strides = array<i32>} : memref<2x32xf32, #tpu.memory_space<vmem>>, vector<2x32xf32>,
    %429 = arith.index_cast %c5_i32 : i32 to index
    %c0_191 = arith.constant 0 : index
    %c0_192 = arith.constant 0 : index
    %430 = vector.load %arg4[%429, %c0_191, %c0_192] : memref<8x2x64xf32, #tpu.memory_space<vmem>>, vector<1x2x32xf32>
    %431 = vector.shape_cast %430 : vector<1x2x32xf32> to vector<2x32xf32>
    %432 = vector.shape_cast %426 : vector<2x32xf32> to vector<1x2x32xf32>
    tpu.vector_store %arg4[%429, %c0_191, %c0_192], %432 {strides = array<i32>} : memref<8x2x64xf32, #tpu.memory_space<vmem>>, vector<1x2x32xf32>,
    %c7_i32_193 = arith.constant 7 : i32
    %433 = arith.subi %c7_i32_193, %c5_i32 : i32
    %434 = arith.index_cast %433 : i32 to index
    %c0_194 = arith.constant 0 : index
    %c0_195 = arith.constant 0 : index
    %435 = vector.load %arg1[%434, %c0_194, %c0_195] : memref<8x2x128xf32, #tpu.memory_space<vmem>>, vector<1x2x128xf32>
    %436 = vector.shape_cast %435 : vector<1x2x128xf32> to vector<2x128xf32>
    %c0_196 = arith.constant 0 : index
    %c0_197 = arith.constant 0 : index
    %437 = vector.load %arg7[%c0_196, %c0_197] : memref<2x32xf32, #tpu.memory_space<vmem>>, vector<2x32xf32>
    %c0_198 = arith.constant 0 : index
    %c0_199 = arith.constant 0 : index
    %438 = vector.load %arg8[%c0_198, %c0_199] : memref<2x32xf32, #tpu.memory_space<vmem>>, vector<2x32xf32>
    %cst_200 = arith.constant dense<0.000000e+00> : vector<2x128xf32>
    %439 = tpu.matmul %437, %9, %cst_200 {dimension_numbers = #tpu.dot_dimension_numbers<[1], [0], [0], [1], [0, 0, 1, 1], [], []>} : vector<2x32xf32>, vector<32x128xf32>, vector<2x128xf32> -> vector<2x128xf32>
    %440 = arith.addf %436, %439 : vector<2x128xf32>
    %441 = vector.extract_strided_slice %440 {offsets = [0, 0], sizes = [2, 32], strides = [1, 1]} : vector<2x128xf32> to vector<2x32xf32>
    %442 = arith.negf %441 : vector<2x32xf32>
    %443 = math.exp %442 : vector<2x32xf32>
    %cst_201 = arith.constant 1.000000e+00 : f32
    %444 = vector.broadcast %cst_201 : f32 to vector<2x32xf32>
    %445 = arith.addf %444, %443 : vector<2x32xf32>
    %446 = arith.divf %444, %445 : vector<2x32xf32>
    %447 = vector.extract_strided_slice %440 {offsets = [0, 32], sizes = [2, 32], strides = [1, 1]} : vector<2x128xf32> to vector<2x32xf32>
    %448 = arith.negf %447 : vector<2x32xf32>
    %449 = math.exp %448 : vector<2x32xf32>
    %cst_202 = arith.constant 1.000000e+00 : f32
    %450 = vector.broadcast %cst_202 : f32 to vector<2x32xf32>
    %451 = arith.addf %450, %449 : vector<2x32xf32>
    %452 = arith.divf %450, %451 : vector<2x32xf32>
    %453 = vector.extract_strided_slice %440 {offsets = [0, 64], sizes = [2, 32], strides = [1, 1]} : vector<2x128xf32> to vector<2x32xf32>
    %454 = math.tanh %453 : vector<2x32xf32>
    %455 = vector.extract_strided_slice %440 {offsets = [0, 96], sizes = [2, 32], strides = [1, 1]} : vector<2x128xf32> to vector<2x32xf32>
    %456 = arith.negf %455 : vector<2x32xf32>
    %457 = math.exp %456 : vector<2x32xf32>
    %cst_203 = arith.constant 1.000000e+00 : f32
    %458 = vector.broadcast %cst_203 : f32 to vector<2x32xf32>
    %459 = arith.addf %458, %457 : vector<2x32xf32>
    %460 = arith.divf %458, %459 : vector<2x32xf32>
    %461 = arith.mulf %452, %438 : vector<2x32xf32>
    %462 = arith.mulf %446, %454 : vector<2x32xf32>
    %463 = arith.addf %461, %462 : vector<2x32xf32>
    %464 = math.tanh %463 : vector<2x32xf32>
    %465 = arith.mulf %460, %464 : vector<2x32xf32>
    %c0_204 = arith.constant 0 : index
    %c0_205 = arith.constant 0 : index
    %466 = vector.load %arg7[%c0_204, %c0_205] : memref<2x32xf32, #tpu.memory_space<vmem>>, vector<2x32xf32>
    tpu.vector_store %arg7[%c0_204, %c0_205], %465 {strides = array<i32>} : memref<2x32xf32, #tpu.memory_space<vmem>>, vector<2x32xf32>,
    %c0_206 = arith.constant 0 : index
    %c0_207 = arith.constant 0 : index
    %467 = vector.load %arg8[%c0_206, %c0_207] : memref<2x32xf32, #tpu.memory_space<vmem>>, vector<2x32xf32>
    tpu.vector_store %arg8[%c0_206, %c0_207], %463 {strides = array<i32>} : memref<2x32xf32, #tpu.memory_space<vmem>>, vector<2x32xf32>,
    %468 = arith.index_cast %433 : i32 to index
    %c0_208 = arith.constant 0 : index
    %c32_209 = arith.constant 32 : index
    %469 = vector.load %arg4[%468, %c0_208, %c32_209] : memref<8x2x64xf32, #tpu.memory_space<vmem>>, vector<1x2x32xf32>
    %470 = vector.shape_cast %469 : vector<1x2x32xf32> to vector<2x32xf32>
    %471 = vector.shape_cast %465 : vector<2x32xf32> to vector<1x2x32xf32>
    tpu.vector_store %arg4[%468, %c0_208, %c32_209], %471 {strides = array<i32>} : memref<8x2x64xf32, #tpu.memory_space<vmem>>, vector<1x2x32xf32>,
    %c6_i32 = arith.constant 6 : i32
    %472 = arith.index_cast %c6_i32 : i32 to index
    %c0_210 = arith.constant 0 : index
    %c0_211 = arith.constant 0 : index
    %473 = vector.load %arg0[%472, %c0_210, %c0_211] : memref<8x2x128xf32, #tpu.memory_space<vmem>>, vector<1x2x128xf32>
    %474 = vector.shape_cast %473 : vector<1x2x128xf32> to vector<2x128xf32>
    %c0_212 = arith.constant 0 : index
    %c0_213 = arith.constant 0 : index
    %475 = vector.load %arg5[%c0_212, %c0_213] : memref<2x32xf32, #tpu.memory_space<vmem>>, vector<2x32xf32>
    %c0_214 = arith.constant 0 : index
    %c0_215 = arith.constant 0 : index
    %476 = vector.load %arg6[%c0_214, %c0_215] : memref<2x32xf32, #tpu.memory_space<vmem>>, vector<2x32xf32>
    %cst_216 = arith.constant dense<0.000000e+00> : vector<2x128xf32>
    %477 = tpu.matmul %475, %8, %cst_216 {dimension_numbers = #tpu.dot_dimension_numbers<[1], [0], [0], [1], [0, 0, 1, 1], [], []>} : vector<2x32xf32>, vector<32x128xf32>, vector<2x128xf32> -> vector<2x128xf32>
    %478 = arith.addf %474, %477 : vector<2x128xf32>
    %479 = vector.extract_strided_slice %478 {offsets = [0, 0], sizes = [2, 32], strides = [1, 1]} : vector<2x128xf32> to vector<2x32xf32>
    %480 = arith.negf %479 : vector<2x32xf32>
    %481 = math.exp %480 : vector<2x32xf32>
    %cst_217 = arith.constant 1.000000e+00 : f32
    %482 = vector.broadcast %cst_217 : f32 to vector<2x32xf32>
    %483 = arith.addf %482, %481 : vector<2x32xf32>
    %484 = arith.divf %482, %483 : vector<2x32xf32>
    %485 = vector.extract_strided_slice %478 {offsets = [0, 32], sizes = [2, 32], strides = [1, 1]} : vector<2x128xf32> to vector<2x32xf32>
    %486 = arith.negf %485 : vector<2x32xf32>
    %487 = math.exp %486 : vector<2x32xf32>
    %cst_218 = arith.constant 1.000000e+00 : f32
    %488 = vector.broadcast %cst_218 : f32 to vector<2x32xf32>
    %489 = arith.addf %488, %487 : vector<2x32xf32>
    %490 = arith.divf %488, %489 : vector<2x32xf32>
    %491 = vector.extract_strided_slice %478 {offsets = [0, 64], sizes = [2, 32], strides = [1, 1]} : vector<2x128xf32> to vector<2x32xf32>
    %492 = math.tanh %491 : vector<2x32xf32>
    %493 = vector.extract_strided_slice %478 {offsets = [0, 96], sizes = [2, 32], strides = [1, 1]} : vector<2x128xf32> to vector<2x32xf32>
    %494 = arith.negf %493 : vector<2x32xf32>
    %495 = math.exp %494 : vector<2x32xf32>
    %cst_219 = arith.constant 1.000000e+00 : f32
    %496 = vector.broadcast %cst_219 : f32 to vector<2x32xf32>
    %497 = arith.addf %496, %495 : vector<2x32xf32>
    %498 = arith.divf %496, %497 : vector<2x32xf32>
    %499 = arith.mulf %490, %476 : vector<2x32xf32>
    %500 = arith.mulf %484, %492 : vector<2x32xf32>
    %501 = arith.addf %499, %500 : vector<2x32xf32>
    %502 = math.tanh %501 : vector<2x32xf32>
    %503 = arith.mulf %498, %502 : vector<2x32xf32>
    %c0_220 = arith.constant 0 : index
    %c0_221 = arith.constant 0 : index
    %504 = vector.load %arg5[%c0_220, %c0_221] : memref<2x32xf32, #tpu.memory_space<vmem>>, vector<2x32xf32>
    tpu.vector_store %arg5[%c0_220, %c0_221], %503 {strides = array<i32>} : memref<2x32xf32, #tpu.memory_space<vmem>>, vector<2x32xf32>,
    %c0_222 = arith.constant 0 : index
    %c0_223 = arith.constant 0 : index
    %505 = vector.load %arg6[%c0_222, %c0_223] : memref<2x32xf32, #tpu.memory_space<vmem>>, vector<2x32xf32>
    tpu.vector_store %arg6[%c0_222, %c0_223], %501 {strides = array<i32>} : memref<2x32xf32, #tpu.memory_space<vmem>>, vector<2x32xf32>,
    %506 = arith.index_cast %c6_i32 : i32 to index
    %c0_224 = arith.constant 0 : index
    %c0_225 = arith.constant 0 : index
    %507 = vector.load %arg4[%506, %c0_224, %c0_225] : memref<8x2x64xf32, #tpu.memory_space<vmem>>, vector<1x2x32xf32>
    %508 = vector.shape_cast %507 : vector<1x2x32xf32> to vector<2x32xf32>
    %509 = vector.shape_cast %503 : vector<2x32xf32> to vector<1x2x32xf32>
    tpu.vector_store %arg4[%506, %c0_224, %c0_225], %509 {strides = array<i32>} : memref<8x2x64xf32, #tpu.memory_space<vmem>>, vector<1x2x32xf32>,
    %c7_i32_226 = arith.constant 7 : i32
    %510 = arith.subi %c7_i32_226, %c6_i32 : i32
    %511 = arith.index_cast %510 : i32 to index
    %c0_227 = arith.constant 0 : index
    %c0_228 = arith.constant 0 : index
    %512 = vector.load %arg1[%511, %c0_227, %c0_228] : memref<8x2x128xf32, #tpu.memory_space<vmem>>, vector<1x2x128xf32>
    %513 = vector.shape_cast %512 : vector<1x2x128xf32> to vector<2x128xf32>
    %c0_229 = arith.constant 0 : index
    %c0_230 = arith.constant 0 : index
    %514 = vector.load %arg7[%c0_229, %c0_230] : memref<2x32xf32, #tpu.memory_space<vmem>>, vector<2x32xf32>
    %c0_231 = arith.constant 0 : index
    %c0_232 = arith.constant 0 : index
    %515 = vector.load %arg8[%c0_231, %c0_232] : memref<2x32xf32, #tpu.memory_space<vmem>>, vector<2x32xf32>
    %cst_233 = arith.constant dense<0.000000e+00> : vector<2x128xf32>
    %516 = tpu.matmul %514, %9, %cst_233 {dimension_numbers = #tpu.dot_dimension_numbers<[1], [0], [0], [1], [0, 0, 1, 1], [], []>} : vector<2x32xf32>, vector<32x128xf32>, vector<2x128xf32> -> vector<2x128xf32>
    %517 = arith.addf %513, %516 : vector<2x128xf32>
    %518 = vector.extract_strided_slice %517 {offsets = [0, 0], sizes = [2, 32], strides = [1, 1]} : vector<2x128xf32> to vector<2x32xf32>
    %519 = arith.negf %518 : vector<2x32xf32>
    %520 = math.exp %519 : vector<2x32xf32>
    %cst_234 = arith.constant 1.000000e+00 : f32
    %521 = vector.broadcast %cst_234 : f32 to vector<2x32xf32>
    %522 = arith.addf %521, %520 : vector<2x32xf32>
    %523 = arith.divf %521, %522 : vector<2x32xf32>
    %524 = vector.extract_strided_slice %517 {offsets = [0, 32], sizes = [2, 32], strides = [1, 1]} : vector<2x128xf32> to vector<2x32xf32>
    %525 = arith.negf %524 : vector<2x32xf32>
    %526 = math.exp %525 : vector<2x32xf32>
    %cst_235 = arith.constant 1.000000e+00 : f32
    %527 = vector.broadcast %cst_235 : f32 to vector<2x32xf32>
    %528 = arith.addf %527, %526 : vector<2x32xf32>
    %529 = arith.divf %527, %528 : vector<2x32xf32>
    %530 = vector.extract_strided_slice %517 {offsets = [0, 64], sizes = [2, 32], strides = [1, 1]} : vector<2x128xf32> to vector<2x32xf32>
    %531 = math.tanh %530 : vector<2x32xf32>
    %532 = vector.extract_strided_slice %517 {offsets = [0, 96], sizes = [2, 32], strides = [1, 1]} : vector<2x128xf32> to vector<2x32xf32>
    %533 = arith.negf %532 : vector<2x32xf32>
    %534 = math.exp %533 : vector<2x32xf32>
    %cst_236 = arith.constant 1.000000e+00 : f32
    %535 = vector.broadcast %cst_236 : f32 to vector<2x32xf32>
    %536 = arith.addf %535, %534 : vector<2x32xf32>
    %537 = arith.divf %535, %536 : vector<2x32xf32>
    %538 = arith.mulf %529, %515 : vector<2x32xf32>
    %539 = arith.mulf %523, %531 : vector<2x32xf32>
    %540 = arith.addf %538, %539 : vector<2x32xf32>
    %541 = math.tanh %540 : vector<2x32xf32>
    %542 = arith.mulf %537, %541 : vector<2x32xf32>
    %c0_237 = arith.constant 0 : index
    %c0_238 = arith.constant 0 : index
    %543 = vector.load %arg7[%c0_237, %c0_238] : memref<2x32xf32, #tpu.memory_space<vmem>>, vector<2x32xf32>
    tpu.vector_store %arg7[%c0_237, %c0_238], %542 {strides = array<i32>} : memref<2x32xf32, #tpu.memory_space<vmem>>, vector<2x32xf32>,
    %c0_239 = arith.constant 0 : index
    %c0_240 = arith.constant 0 : index
    %544 = vector.load %arg8[%c0_239, %c0_240] : memref<2x32xf32, #tpu.memory_space<vmem>>, vector<2x32xf32>
    tpu.vector_store %arg8[%c0_239, %c0_240], %540 {strides = array<i32>} : memref<2x32xf32, #tpu.memory_space<vmem>>, vector<2x32xf32>,
    %545 = arith.index_cast %510 : i32 to index
    %c0_241 = arith.constant 0 : index
    %c32_242 = arith.constant 32 : index
    %546 = vector.load %arg4[%545, %c0_241, %c32_242] : memref<8x2x64xf32, #tpu.memory_space<vmem>>, vector<1x2x32xf32>
    %547 = vector.shape_cast %546 : vector<1x2x32xf32> to vector<2x32xf32>
    %548 = vector.shape_cast %542 : vector<2x32xf32> to vector<1x2x32xf32>
    tpu.vector_store %arg4[%545, %c0_241, %c32_242], %548 {strides = array<i32>} : memref<8x2x64xf32, #tpu.memory_space<vmem>>, vector<1x2x32xf32>,
    %c7_i32_243 = arith.constant 7 : i32
    %549 = arith.index_cast %c7_i32_243 : i32 to index
    %c0_244 = arith.constant 0 : index
    %c0_245 = arith.constant 0 : index
    %550 = vector.load %arg0[%549, %c0_244, %c0_245] : memref<8x2x128xf32, #tpu.memory_space<vmem>>, vector<1x2x128xf32>
    %551 = vector.shape_cast %550 : vector<1x2x128xf32> to vector<2x128xf32>
    %c0_246 = arith.constant 0 : index
    %c0_247 = arith.constant 0 : index
    %552 = vector.load %arg5[%c0_246, %c0_247] : memref<2x32xf32, #tpu.memory_space<vmem>>, vector<2x32xf32>
    %c0_248 = arith.constant 0 : index
    %c0_249 = arith.constant 0 : index
    %553 = vector.load %arg6[%c0_248, %c0_249] : memref<2x32xf32, #tpu.memory_space<vmem>>, vector<2x32xf32>
    %cst_250 = arith.constant dense<0.000000e+00> : vector<2x128xf32>
    %554 = tpu.matmul %552, %8, %cst_250 {dimension_numbers = #tpu.dot_dimension_numbers<[1], [0], [0], [1], [0, 0, 1, 1], [], []>} : vector<2x32xf32>, vector<32x128xf32>, vector<2x128xf32> -> vector<2x128xf32>
    %555 = arith.addf %551, %554 : vector<2x128xf32>
    %556 = vector.extract_strided_slice %555 {offsets = [0, 0], sizes = [2, 32], strides = [1, 1]} : vector<2x128xf32> to vector<2x32xf32>
    %557 = arith.negf %556 : vector<2x32xf32>
    %558 = math.exp %557 : vector<2x32xf32>
    %cst_251 = arith.constant 1.000000e+00 : f32
    %559 = vector.broadcast %cst_251 : f32 to vector<2x32xf32>
    %560 = arith.addf %559, %558 : vector<2x32xf32>
    %561 = arith.divf %559, %560 : vector<2x32xf32>
    %562 = vector.extract_strided_slice %555 {offsets = [0, 32], sizes = [2, 32], strides = [1, 1]} : vector<2x128xf32> to vector<2x32xf32>
    %563 = arith.negf %562 : vector<2x32xf32>
    %564 = math.exp %563 : vector<2x32xf32>
    %cst_252 = arith.constant 1.000000e+00 : f32
    %565 = vector.broadcast %cst_252 : f32 to vector<2x32xf32>
    %566 = arith.addf %565, %564 : vector<2x32xf32>
    %567 = arith.divf %565, %566 : vector<2x32xf32>
    %568 = vector.extract_strided_slice %555 {offsets = [0, 64], sizes = [2, 32], strides = [1, 1]} : vector<2x128xf32> to vector<2x32xf32>
    %569 = math.tanh %568 : vector<2x32xf32>
    %570 = vector.extract_strided_slice %555 {offsets = [0, 96], sizes = [2, 32], strides = [1, 1]} : vector<2x128xf32> to vector<2x32xf32>
    %571 = arith.negf %570 : vector<2x32xf32>
    %572 = math.exp %571 : vector<2x32xf32>
    %cst_253 = arith.constant 1.000000e+00 : f32
    %573 = vector.broadcast %cst_253 : f32 to vector<2x32xf32>
    %574 = arith.addf %573, %572 : vector<2x32xf32>
    %575 = arith.divf %573, %574 : vector<2x32xf32>
    %576 = arith.mulf %567, %553 : vector<2x32xf32>
    %577 = arith.mulf %561, %569 : vector<2x32xf32>
    %578 = arith.addf %576, %577 : vector<2x32xf32>
    %579 = math.tanh %578 : vector<2x32xf32>
    %580 = arith.mulf %575, %579 : vector<2x32xf32>
    %c0_254 = arith.constant 0 : index
    %c0_255 = arith.constant 0 : index
    %581 = vector.load %arg5[%c0_254, %c0_255] : memref<2x32xf32, #tpu.memory_space<vmem>>, vector<2x32xf32>
    tpu.vector_store %arg5[%c0_254, %c0_255], %580 {strides = array<i32>} : memref<2x32xf32, #tpu.memory_space<vmem>>, vector<2x32xf32>,
    %c0_256 = arith.constant 0 : index
    %c0_257 = arith.constant 0 : index
    %582 = vector.load %arg6[%c0_256, %c0_257] : memref<2x32xf32, #tpu.memory_space<vmem>>, vector<2x32xf32>
    tpu.vector_store %arg6[%c0_256, %c0_257], %578 {strides = array<i32>} : memref<2x32xf32, #tpu.memory_space<vmem>>, vector<2x32xf32>,
    %583 = arith.index_cast %c7_i32_243 : i32 to index
    %c0_258 = arith.constant 0 : index
    %c0_259 = arith.constant 0 : index
    %584 = vector.load %arg4[%583, %c0_258, %c0_259] : memref<8x2x64xf32, #tpu.memory_space<vmem>>, vector<1x2x32xf32>
    %585 = vector.shape_cast %584 : vector<1x2x32xf32> to vector<2x32xf32>
    %586 = vector.shape_cast %580 : vector<2x32xf32> to vector<1x2x32xf32>
    tpu.vector_store %arg4[%583, %c0_258, %c0_259], %586 {strides = array<i32>} : memref<8x2x64xf32, #tpu.memory_space<vmem>>, vector<1x2x32xf32>,
    %c7_i32_260 = arith.constant 7 : i32
    %587 = arith.subi %c7_i32_260, %c7_i32_243 : i32
    %588 = arith.index_cast %587 : i32 to index
    %c0_261 = arith.constant 0 : index
    %c0_262 = arith.constant 0 : index
    %589 = vector.load %arg1[%588, %c0_261, %c0_262] : memref<8x2x128xf32, #tpu.memory_space<vmem>>, vector<1x2x128xf32>
    %590 = vector.shape_cast %589 : vector<1x2x128xf32> to vector<2x128xf32>
    %c0_263 = arith.constant 0 : index
    %c0_264 = arith.constant 0 : index
    %591 = vector.load %arg7[%c0_263, %c0_264] : memref<2x32xf32, #tpu.memory_space<vmem>>, vector<2x32xf32>
    %c0_265 = arith.constant 0 : index
    %c0_266 = arith.constant 0 : index
    %592 = vector.load %arg8[%c0_265, %c0_266] : memref<2x32xf32, #tpu.memory_space<vmem>>, vector<2x32xf32>
    %cst_267 = arith.constant dense<0.000000e+00> : vector<2x128xf32>
    %593 = tpu.matmul %591, %9, %cst_267 {dimension_numbers = #tpu.dot_dimension_numbers<[1], [0], [0], [1], [0, 0, 1, 1], [], []>} : vector<2x32xf32>, vector<32x128xf32>, vector<2x128xf32> -> vector<2x128xf32>
    %594 = arith.addf %590, %593 : vector<2x128xf32>
    %595 = vector.extract_strided_slice %594 {offsets = [0, 0], sizes = [2, 32], strides = [1, 1]} : vector<2x128xf32> to vector<2x32xf32>
    %596 = arith.negf %595 : vector<2x32xf32>
    %597 = math.exp %596 : vector<2x32xf32>
    %cst_268 = arith.constant 1.000000e+00 : f32
    %598 = vector.broadcast %cst_268 : f32 to vector<2x32xf32>
    %599 = arith.addf %598, %597 : vector<2x32xf32>
    %600 = arith.divf %598, %599 : vector<2x32xf32>
    %601 = vector.extract_strided_slice %594 {offsets = [0, 32], sizes = [2, 32], strides = [1, 1]} : vector<2x128xf32> to vector<2x32xf32>
    %602 = arith.negf %601 : vector<2x32xf32>
    %603 = math.exp %602 : vector<2x32xf32>
    %cst_269 = arith.constant 1.000000e+00 : f32
    %604 = vector.broadcast %cst_269 : f32 to vector<2x32xf32>
    %605 = arith.addf %604, %603 : vector<2x32xf32>
    %606 = arith.divf %604, %605 : vector<2x32xf32>
    %607 = vector.extract_strided_slice %594 {offsets = [0, 64], sizes = [2, 32], strides = [1, 1]} : vector<2x128xf32> to vector<2x32xf32>
    %608 = math.tanh %607 : vector<2x32xf32>
    %609 = vector.extract_strided_slice %594 {offsets = [0, 96], sizes = [2, 32], strides = [1, 1]} : vector<2x128xf32> to vector<2x32xf32>
    %610 = arith.negf %609 : vector<2x32xf32>
    %611 = math.exp %610 : vector<2x32xf32>
    %cst_270 = arith.constant 1.000000e+00 : f32
    %612 = vector.broadcast %cst_270 : f32 to vector<2x32xf32>
    %613 = arith.addf %612, %611 : vector<2x32xf32>
    %614 = arith.divf %612, %613 : vector<2x32xf32>
    %615 = arith.mulf %606, %592 : vector<2x32xf32>
    %616 = arith.mulf %600, %608 : vector<2x32xf32>
    %617 = arith.addf %615, %616 : vector<2x32xf32>
    %618 = math.tanh %617 : vector<2x32xf32>
    %619 = arith.mulf %614, %618 : vector<2x32xf32>
    %c0_271 = arith.constant 0 : index
    %c0_272 = arith.constant 0 : index
    %620 = vector.load %arg7[%c0_271, %c0_272] : memref<2x32xf32, #tpu.memory_space<vmem>>, vector<2x32xf32>
    tpu.vector_store %arg7[%c0_271, %c0_272], %619 {strides = array<i32>} : memref<2x32xf32, #tpu.memory_space<vmem>>, vector<2x32xf32>,
    %c0_273 = arith.constant 0 : index
    %c0_274 = arith.constant 0 : index
    %621 = vector.load %arg8[%c0_273, %c0_274] : memref<2x32xf32, #tpu.memory_space<vmem>>, vector<2x32xf32>
    tpu.vector_store %arg8[%c0_273, %c0_274], %617 {strides = array<i32>} : memref<2x32xf32, #tpu.memory_space<vmem>>, vector<2x32xf32>,
    %622 = arith.index_cast %587 : i32 to index
    %c0_275 = arith.constant 0 : index
    %c32_276 = arith.constant 32 : index
    %623 = vector.load %arg4[%622, %c0_275, %c32_276] : memref<8x2x64xf32, #tpu.memory_space<vmem>>, vector<1x2x32xf32>
    %624 = vector.shape_cast %623 : vector<1x2x32xf32> to vector<2x32xf32>
    %625 = vector.shape_cast %619 : vector<2x32xf32> to vector<1x2x32xf32>
    tpu.vector_store %arg4[%622, %c0_275, %c32_276], %625 {strides = array<i32>} : memref<8x2x64xf32, #tpu.memory_space<vmem>>, vector<1x2x32xf32>,
    %c8_i32 = arith.constant 8 : i32
    return
  }
}

</mosaic_0001>

<llo_original>
// kernel: _lambda_.5
$region0: #{_lambda_.5}
  #allocation0 [shape = 'u32[]', space=smem, size = 0x4, offset = 0x4, fixed_abs, tag = 'smem constant byte address 0x4 - core index']
  #allocation1 [shape = 'u32[144,128]{1,0:T(1,128)}', space=vmem, size = 0x12000, scoped, tag = 'internal scratch']
  #allocation2 [shape = 'f32[1,1]{1,0:T(1,128)S(6)}', space=smem, size = 0x200, scoped, tag = 'scoped memory for _lambda_.5']
  #allocation3 [shape = 'f32[1,1]{1,0:T(1,128)S(1)}', space=vmem, size = 0x200, scoped, tag = 'scoped memory for _lambda_.5']
  %s0 = inlined_call_operand.vmem [shape: f32[2,8,64], index: 0, kind: input, shape index: {}]
  %s1 = inlined_call_operand.vmem [shape: f32[1,64], index: 1, kind: input, shape index: {}]
  %s2 = inlined_call_operand.<no memory space> [shape: f32[1,1], index: 2, kind: input, shape index: {}]
  %s3 = inlined_call_operand.vmem [shape: f32[1,8], index: 3, kind: input, shape index: {}]
  %s4 = inlined_call_operand.vmem [shape: f32[64,1], index: 4, kind: input, shape index: {}]
  %s5 = inlined_call_operand.<no memory space> [shape: f32[1,1], index: 5, kind: input, shape index: {}]
  %s6 = inlined_call_operand.vmem [shape: f32[2,1], index: 6, kind: output, shape index: {0}]
  %s7 = inlined_call_operand.hbm [shape: f32[2,8], index: 7, kind: output, shape index: {1}]
  %8 = xla_tuple %s6, %s7
  %s9 = sld [smem:[#allocation0]]
  $region42: #{_lambda_.5} parent=0
    _
  %s11 = ssub.s32 1, %s9
  %s12 = scalar_select 0, %s11, %s9
  %13 = sst [smem:[#allocation2]] %s2
  %v14 = vstv %s5
  %15 = vst [vmem:[#allocation3] sm:$0x1] %v14
  $region1: #{_lambda_.5} parent=0
    #allocation4 [shape = 'u8[1024]{0}', space=vmem, size = 0x400, scoped, tag = 'output window, operand 1, single buffered']
    #allocation5 [shape = 's32[1]{0}', space=sflag, size = 0x4, scoped, tag = 'scoped memory for _lambda_.5']
    %16 = vsyncpa [#allocation5], 0
    // Predicated region
    $region2: #{_lambda_.5} parent=1 // pred_check
      _
    $region3: #{_lambda_.5} parent=1 // pred_check_branch
      %18 = sbr.rel (0) target = $region5
    $region4: #{_lambda_.5} parent=1 // pred_region
      _
    $region5: #{_lambda_.5} parent=1 // pred_fallthru
      _
    // Predicated region
    $region6: #{_lambda_.5} parent=1 // pred_check
      _
    $region7: #{_lambda_.5} parent=1 // pred_check_branch
      %20 = sbr.rel (0) target = $region9
    $region8: #{_lambda_.5} parent=1 // pred_region
      _
    $region9: #{_lambda_.5} parent=1 // pred_fallthru
      _
    // Predicated region
    $region10: #{_lambda_.5} parent=1 // pred_check
      _
    $region11: #{_lambda_.5} parent=1 // pred_check_branch
      %22 = sbr.rel (0) target = $region13
    $region12: #{_lambda_.5} parent=1 // pred_region
      _
    $region13: #{_lambda_.5} parent=1 // pred_fallthru
      _
    // Predicated region
    $region14: #{_lambda_.5} parent=1 // pred_check
      _
    $region15: #{_lambda_.5} parent=1 // pred_check_branch
      %24 = sbr.rel (0) target = $region17
    $region16: #{_lambda_.5} parent=1 // pred_region
      _
    $region17: #{_lambda_.5} parent=1 // pred_fallthru
      _
    // Predicated region
    $region18: #{_lambda_.5} parent=1 // pred_check
      _
    $region19: #{_lambda_.5} parent=1 // pred_check_branch
      %26 = sbr.rel (0) target = $region21
    $region20: #{_lambda_.5} parent=1 // pred_region
      _
    $region21: #{_lambda_.5} parent=1 // pred_fallthru
      _
    // Predicated region
    $region22: #{_lambda_.5} parent=1 // pred_check
      _
    $region23: #{_lambda_.5} parent=1 // pred_check_branch
      %28 = sbr.rel (0) target = $region25
    $region24: #{_lambda_.5} parent=1 // pred_region
      _
    $region25: #{_lambda_.5} parent=1 // pred_fallthru
      _
    %v29 = vld [vmem:[%s0] sm:$0xff]
    %v30 = vld [vmem:[%s0 + $0x8] sm:$0xff]
    %v31 = vld [vmem:[%s1] sm:$0x1]
    %v33 = vlaneseq
    %v34 = vshrl.u32 %v33, 7
    %v35 = vsub.s32 0, %v34
    %v36 = vrot.slane %v31, %v35
    %v38 = vmul.f32 %v29, %v36
    %v39 = vmul.f32 %v30, %v36
    %vm40 = vcmask 523264
    %v41 = vsel %vm40, %v38, 0.0
    %42 = vadd.xlane.f32.xlu0 %v41
    %v43 = vpop.xlane.xlu0 %42
    %v44 = vsel %vm40, %v39, 0.0
    %45 = vadd.xlane.f32.xlu0 %v44
    %v46 = vpop.xlane.xlu0 %45
    %s47 = sld [smem:[#allocation2]]
    %v48 = vstv %s47
    %v49 = vadd.f32 %v43, %v48
    %v50 = vadd.f32 %v46, %v48
    %v53 = vlaneseq
    %v54 = vand.u32 %v53, 127
    %v55 = vlaneseq
    %v56 = vshrl.u32 %v55, 7
    %v57 = vsub.s32 %v54, %v56
    %v58 = vrot.slane %v49, %v57
    %v59 = vlaneseq
    %v60 = vshrl.u32 %v59, 7
    %v61 = vsub.s32 %v54, %v60
    %v62 = vrot.slane %v50, %v61
    %vm63 = vcmask 1041409
    %v64 = vsel %vm63, %v62, %v58
    %vm66 = vcmask 58368
    %v67 = vsel %vm66, %v64, -inf
    %68 = vmax.xlane.f32.xlu0 %v67
    %v69 = vpop.xlane.xlu0 %68
    %v71 = vlaneseq
    %v72 = vshrl.u32 %v71, 7
    %v73 = vsub.s32 0, %v72
    %v74 = vrot.slane %v69, %v73
    %v75 = vlaneseq
    %v76 = vshrl.u32 %v75, 7
    %v77 = vsub.s32 1, %v76
    %v78 = vrot.slane %v69, %v77
    %v81 = vsub.f32 %v49, %v74
    %v82 = vsub.f32 %v50, %v78
    %v83 = vmul.f32 %v81, 1.442695
    %v84 = vpow.pop %v83
    %v85 = vmul.f32 %v82, 1.442695
    %v86 = vpow.pop %v85
    %89 = vset.pattern.permute.xlu0 0
    %90 = vperm.xlu0 %89, %v84
    %v91 = vpop.permute.xlu0 %90
    %92 = vset.pattern.permute.xlu0 0
    %93 = vperm.xlu0 %92, %v86
    %v94 = vpop.permute.xlu0 %93
    %v95 = vlaneseq
    %v96 = vshrl.u32 %v95, 7
    %v97 = vsub.s32 %v54, %v96
    %v98 = vrot.slane %v91, %v97
    %v99 = vlaneseq
    %v100 = vshrl.u32 %v99, 7
    %v101 = vsub.s32 %v54, %v100
    %v102 = vrot.slane %v94, %v101
    %v103 = vsel %vm63, %v102, %v98
    %v105 = vsel %vm66, %v103, 0.0
    %106 = vadd.xlane.f32.xlu0 %v105
    %v107 = vpop.xlane.xlu0 %106
    %v109 = vlaneseq
    %v110 = vshrl.u32 %v109, 7
    %v111 = vsub.s32 0, %v110
    %v112 = vrot.slane %v107, %v111
    %v113 = vlaneseq
    %v114 = vshrl.u32 %v113, 7
    %v115 = vsub.s32 1, %v114
    %v116 = vrot.slane %v107, %v115
    %v119 = vrcp.pop %v112
    %v120 = vmul.f32 %v84, %v119
    %v121 = vrcp.pop %v116
    %v122 = vmul.f32 %v86, %v121
    %v123 = vld [vmem:[%s3] sm:$0x1]
    %v125 = vlaneseq
    %v126 = vshrl.u32 %v125, 7
    %v127 = vsub.s32 0, %v126
    %v128 = vrot.slane %v123, %v127
    %130 = vbcast.lane.b32.xlu0 %v128, 256
    %v131 = vpop.permute.xlu0 %130
    %v133 = vmul.f32 %v120, %v131
    %v134 = vmul.f32 %v122, %v131
    %137 = vset.pattern.permute.xlu0 0
    %138 = vperm.xlu0 %137, %v133
    %v139 = vpop.permute.xlu0 %138
    %140 = vset.pattern.permute.xlu0 0
    %141 = vperm.xlu0 %140, %v134
    %v142 = vpop.permute.xlu0 %141
    %v143 = vlaneseq
    %v144 = vshrl.u32 %v143, 7
    %v145 = vsub.s32 %v54, %v144
    %v146 = vrot.slane %v139, %v145
    %v147 = vlaneseq
    %v148 = vshrl.u32 %v147, 7
    %v149 = vsub.s32 %v54, %v148
    %v150 = vrot.slane %v142, %v149
    %v151 = vsel %vm63, %v150, %v146
    %v153 = vsel %vm66, %v151, 0.0
    %154 = vadd.xlane.f32.xlu0 %v153
    %v155 = vpop.xlane.xlu0 %154
    %v157 = vlaneseq
    %v158 = vshrl.u32 %v157, 7
    %v159 = vsub.s32 0, %v158
    %v160 = vrot.slane %v155, %v159
    %v161 = vlaneseq
    %v162 = vshrl.u32 %v161, 7
    %v163 = vsub.s32 1, %v162
    %v164 = vrot.slane %v155, %v163
    %v167 = vrcp.pop %v160
    %v168 = vmul.f32 %v133, %v167
    %v169 = vrcp.pop %v164
    %v170 = vmul.f32 %v134, %v169
    %172 = vset.pattern.permute.xlu0 0
    %173 = vperm.xlu0 %172, %v168
    %v174 = vpop.permute.xlu0 %173
    %177 = vset.pattern.permute.xlu0 0
    %178 = vperm.xlu0 %177, %v170
    %v179 = vpop.permute.xlu0 %178
    %v181 = vmul.f32 %v174, %v29
    %v182 = vmul.f32 %v179, %v30
    %v183 = vsel %vm40, %v181, 0.0
    %v184 = vrot.slane %v183, 4
    %v185 = vadd.f32 %v183, %v184
    %v186 = vrot.slane %v185, 2
    %v187 = vadd.f32 %v185, %v186
    %v188 = vrot.slane %v187, 1
    %v189 = vadd.f32 %v187, %v188
    %v190 = vsel %vm40, %v182, 0.0
    %v191 = vrot.slane %v190, 4
    %v192 = vadd.f32 %v190, %v191
    %v193 = vrot.slane %v192, 2
    %v194 = vadd.f32 %v192, %v193
    %v195 = vrot.slane %v194, 1
    %v196 = vadd.f32 %v194, %v195
    %v197 = vld [vmem:[%s4] sm:$0xff]
    %v198 = vld [vmem:[%s4 + $0x8] sm:$0xff]
    %v199 = vld [vmem:[%s4 + $0x10] sm:$0xff]
    %v200 = vld [vmem:[%s4 + $0x18] sm:$0xff]
    %v201 = vld [vmem:[%s4 + $0x20] sm:$0xff]
    %v202 = vld [vmem:[%s4 + $0x28] sm:$0xff]
    %v203 = vld [vmem:[%s4 + $0x30] sm:$0xff]
    %v204 = vld [vmem:[%s4 + $0x38] sm:$0xff]
    %v205 = vld [vmem:[#allocation3] sm:$0x1]
    %v207 = vlaneseq
    %v208 = vshrl.u32 %v207, 7
    %v209 = vsub.s32 0, %v208
    %v210 = vrot.slane %v205, %v209
    %v214 = vsel %vm63, %v196, %v189
    %v215 = vsel %vm40, %v214, 0
    %217 = vmatprep.subr.mxu0 0.0
    %218 = vmatpush1.msra.mxu0 %v197
    %219 = vmatprep.subr.mxu0 0.0
    %220 = vmatpush1.msra.mxu0 %v198
    %221 = vmatprep.subr.mxu0 0.0
    %222 = vmatpush1.msra.mxu0 %v199
    %223 = vmatprep.subr.mxu0 0.0
    %224 = vmatpush1.msra.mxu0 %v200
    %225 = vmatprep.subr.mxu0 0.0
    %226 = vmatpush1.msra.mxu0 %v201
    %227 = vmatprep.subr.mxu0 0.0
    %228 = vmatpush1.msra.mxu0 %v202
    %229 = vmatprep.subr.mxu0 0.0
    %230 = vmatpush1.msra.mxu0 %v203
    %231 = vmatprep.subr.mxu0 0.0
    %232 = vmatpush1.msra.mxu0 %v204
    %233 = vmatprep.subr.mxu0 0.0
    %234 = vmatpush1.msra.mxu0 0.0
    %235 = vmatprep.subr.mxu0 0.0
    %236 = vmatpush1.msra.mxu0 0.0
    %237 = vmatprep.subr.mxu0 0.0
    %238 = vmatpush1.msra.mxu0 0.0
    %239 = vmatprep.subr.mxu0 0.0
    %240 = vmatpush1.msra.mxu0 0.0
    %241 = vmatprep.subr.mxu0 0.0
    %242 = vmatpush1.msra.mxu0 0.0
    %243 = vmatprep.subr.mxu0 0.0
    %244 = vmatpush1.msra.mxu0 0.0
    %245 = vmatprep.subr.mxu0 0.0
    %246 = vmatpush1.msra.mxu0 0.0
    %247 = vmatprep.subr.mxu0 0.0
    %248 = vmatpush1.msra.mxu0 0.0
    %249 = vmatprep.subr.mxu0 0.0
    %250 = vmatpush1.msra.mxu0 0.0
    %251 = vmatprep.subr.mxu0 0.0
    %252 = vmatpush1.msra.mxu0 0.0
    %253 = vmatprep.subr.mxu0 0.0
    %254 = vmatpush1.msra.mxu0 0.0
    %255 = vmatprep.subr.mxu0 0.0
    %256 = vmatpush1.msra.mxu0 0.0
    %257 = vmatprep.subr.mxu0 0.0
    %258 = vmatpush1.msra.mxu0 0.0
    %259 = vmatprep.subr.mxu0 0.0
    %260 = vmatpush1.msra.mxu0 0.0
    %261 = vmatprep.subr.mxu0 0.0
    %262 = vmatpush1.msra.mxu0 0.0
    %263 = vmatprep.subr.mxu0 0.0
    %264 = vmatpush1.msra.mxu0 0.0
    %265 = vmatprep.subr.mxu0 0.0
    %266 = vmatpush1.msra.mxu0 0.0
    %267 = vmatprep.subr.mxu0 0.0
    %268 = vmatpush1.msra.mxu0 0.0
    %269 = vmatprep.subr.mxu0 0.0
    %270 = vmatpush1.msra.mxu0 0.0
    %271 = vmatprep.subr.mxu0 0.0
    %272 = vmatpush1.msra.mxu0 0.0
    %273 = vmatprep.subr.mxu0 0.0
    %274 = vmatpush1.msra.mxu0 0.0
    %275 = vmatprep.subr.mxu0 0.0
    %276 = vmatpush1.msra.mxu0 0.0
    %277 = vmatprep.subr.mxu0 0.0
    %278 = vmatpush1.msra.mxu0 0.0
    %279 = vmatprep.subr.mxu0 0.0
    %280 = vmatpush1.msra.mxu0 0.0
    %281 = vmatprep.mubr.f32.mxu0 0.0
    %282 = vmatmul.mubr.f32.gmra.mrb[0].mxu0 %v215
    %v283 = vpop.f32.mrb[0].mxu0
    %v284 = vadd.f32 %v210, %v283
    %v285 = vpop.f32.mrb[0].mxu0
    %286 = vdwg.mxu0
    %vm287 = vcmask 1024
    %288 = vst.msk [vmem:[%s6] sm:$0x3] %vm287, %v284
    %v289 = vlaneseq
    %v290 = vshrl.u32 %v289, 7
    %v291 = vsub.s32 %v54, %v290
    %v292 = vrot.slane %v174, %v291
    %v293 = vlaneseq
    %v294 = vshrl.u32 %v293, 7
    %v295 = vsub.s32 %v54, %v294
    %v296 = vrot.slane %v179, %v295
    %v297 = vsel %vm63, %v296, %v292
    %299 = vst.msk [vmem:[#allocation4] sm:$0x3] %vm66, %v297
    // Predicated region
    $region26: #{_lambda_.5} parent=1 // pred_check
      _
    $region27: #{_lambda_.5} parent=1 // pred_check_branch
      %301 = sbr.rel (0) target = $region29
    $region28: #{_lambda_.5} parent=1 // pred_region
      _
    $region29: #{_lambda_.5} parent=1 // pred_fallthru
      _
    // Predicated region
    $region30: #{_lambda_.5} parent=1 // pred_check
      _
    $region31: #{_lambda_.5} parent=1 // pred_check_branch
      %303 = sbr.rel (0) target = $region33
    $region32: #{_lambda_.5} parent=1 // pred_region
      %s305 = ssub.s32 32, 32
      %306 = vsyncadd [#allocation5], %s305
      %s308 = sshll.u32 [#allocation4], 4
      %s309 = int_to_ptr.vmem [resolvable:$true] %s308
      %311 = dma.vmem_to_hbm [thread:$0]  %s309, 32, %s7, [#allocation5]
    $region33: #{_lambda_.5} parent=1 // pred_fallthru
      _
    // Predicated region
    $region34: #{_lambda_.5} parent=1 // pred_check
      _
    $region35: #{_lambda_.5} parent=1 // pred_check_branch
      %313 = sbr.rel (0) target = $region37
    $region36: #{_lambda_.5} parent=1 // pred_region
      _
    $region37: #{_lambda_.5} parent=1 // pred_fallthru
      _
    // Predicated region
    $region38: #{_lambda_.5} parent=1 // pred_check
      _
    $region39: #{_lambda_.5} parent=1 // pred_check_branch
      %315 = sbr.rel (0) target = $region41
    $region40: #{_lambda_.5} parent=1 // pred_region
      %316 = dma.done [#allocation5], 32
    $region41: #{_lambda_.5} parent=1 // pred_fallthru
      _
    %317 = vsyncpa [#allocation5], 1

// kernel: _lambda_.3
$region0: #{_lambda_.3}
  #allocation0 [shape = 'u32[]', space=smem, size = 0x4, offset = 0x4, fixed_abs, tag = 'smem constant byte address 0x4 - core index']
  #allocation1 [shape = 'u32[144,128]{1,0:T(1,128)}', space=vmem, size = 0x12000, scoped, tag = 'internal scratch']
  #allocation2 [shape = 'f32[2,32]{1,0:T(2,128)}', space=vmem, size = 0x400, scoped, tag = 'scratch operand']
  #allocation3 [shape = 'f32[2,32]{1,0:T(2,128)}', space=vmem, size = 0x400, scoped, tag = 'scratch operand']
  #allocation4 [shape = 'f32[2,32]{1,0:T(2,128)}', space=vmem, size = 0x400, scoped, tag = 'scratch operand']
  #allocation5 [shape = 'f32[2,32]{1,0:T(2,128)}', space=vmem, size = 0x400, scoped, tag = 'scratch operand']
  %s0 = inlined_call_operand.vmem [shape: f32[8,2,128], index: 0, kind: input, shape index: {}]
  %s1 = inlined_call_operand.vmem [shape: f32[8,2,128], index: 1, kind: input, shape index: {}]
  %s2 = inlined_call_operand.vmem [shape: f32[32,128], index: 2, kind: input, shape index: {}]
  %s3 = inlined_call_operand.vmem [shape: f32[32,128], index: 3, kind: input, shape index: {}]
  %s4 = inlined_call_operand.vmem [shape: f32[8,2,64], index: 4, kind: output, shape index: {}]
  %s5 = sld [smem:[#allocation0]]
  $region26: #{_lambda_.3} parent=0
    _
  %s7 = ssub.s32 1, %s5
  %s8 = scalar_select 0, %s7, %s5
  // Predicated region
  $region2: #{_lambda_.3} parent=0 // pred_check
    _
  $region3: #{_lambda_.3} parent=0 // pred_check_branch
    %10 = sbr.rel (0) target = $region5
  $region4: #{_lambda_.3} parent=0 // pred_region
    _
  $region5: #{_lambda_.3} parent=0 // pred_fallthru
    _
  // Predicated region
  $region6: #{_lambda_.3} parent=0 // pred_check
    _
  $region7: #{_lambda_.3} parent=0 // pred_check_branch
    %12 = sbr.rel (0) target = $region9
  $region8: #{_lambda_.3} parent=0 // pred_region
    _
  $region9: #{_lambda_.3} parent=0 // pred_fallthru
    _
  // Predicated region
  $region10: #{_lambda_.3} parent=0 // pred_check
    _
  $region11: #{_lambda_.3} parent=0 // pred_check_branch
    %14 = sbr.rel (0) target = $region13
  $region12: #{_lambda_.3} parent=0 // pred_region
    _
  $region13: #{_lambda_.3} parent=0 // pred_fallthru
    _
  // Predicated region
  $region14: #{_lambda_.3} parent=0 // pred_check
    _
  $region15: #{_lambda_.3} parent=0 // pred_check_branch
    %16 = sbr.rel (0) target = $region17
  $region16: #{_lambda_.3} parent=0 // pred_region
    _
  $region17: #{_lambda_.3} parent=0 // pred_fallthru
    _
  %vm17 = vcmask 254976
  %18 = vst.msk [vmem:[#allocation2] sm:$0x3] %vm17, 0.0
  %19 = vst.msk [vmem:[#allocation3] sm:$0x3] %vm17, 0.0
  %20 = vst.msk [vmem:[#allocation4] sm:$0x3] %vm17, 0.0
  %21 = vst.msk [vmem:[#allocation5] sm:$0x3] %vm17, 0.0
  %v22 = vld [vmem:[%s2] sm:$0xff]
  %v23 = vld [vmem:[%s2 + $0x8] sm:$0xff]
  %v24 = vld [vmem:[%s2 + $0x10] sm:$0xff]
  %v25 = vld [vmem:[%s2 + $0x18] sm:$0xff]
  %v26 = vld [vmem:[%s3] sm:$0xff]
  %v27 = vld [vmem:[%s3 + $0x8] sm:$0xff]
  %v28 = vld [vmem:[%s3 + $0x10] sm:$0xff]
  %v29 = vld [vmem:[%s3 + $0x18] sm:$0xff]
  %v30 = vld [vmem:[%s0] sm:$0x3]
  %v31 = vld [vmem:[#allocation2] sm:$0x3]
  %v32 = vld [vmem:[#allocation3] sm:$0x3]
  %vm33 = vcmask 261120
  %v35 = vsel %vm33, %v31, 0
  %37 = vmatprep.subr.mxu0 0.0
  %38 = vmatpush1.msra.mxu0 %v22
  %39 = vmatprep.subr.mxu0 0.0
  %40 = vmatpush1.msra.mxu0 %v23
  %41 = vmatprep.subr.mxu0 0.0
  %42 = vmatpush1.msra.mxu0 %v24
  %43 = vmatprep.subr.mxu0 0.0
  %44 = vmatpush1.msra.mxu0 %v25
  %45 = vmatprep.subr.mxu0 0.0
  %46 = vmatpush1.msra.mxu0 0.0
  %47 = vmatprep.subr.mxu0 0.0
  %48 = vmatpush1.msra.mxu0 0.0
  %49 = vmatprep.subr.mxu0 0.0
  %50 = vmatpush1.msra.mxu0 0.0
  %51 = vmatprep.subr.mxu0 0.0
  %52 = vmatpush1.msra.mxu0 0.0
  %53 = vmatprep.subr.mxu0 0.0
  %54 = vmatpush1.msra.mxu0 0.0
  %55 = vmatprep.subr.mxu0 0.0
  %56 = vmatpush1.msra.mxu0 0.0
  %57 = vmatprep.subr.mxu0 0.0
  %58 = vmatpush1.msra.mxu0 0.0
  %59 = vmatprep.subr.mxu0 0.0
  %60 = vmatpush1.msra.mxu0 0.0
  %61 = vmatprep.subr.mxu0 0.0
  %62 = vmatpush1.msra.mxu0 0.0
  %63 = vmatprep.subr.mxu0 0.0
  %64 = vmatpush1.msra.mxu0 0.0
  %65 = vmatprep.subr.mxu0 0.0
  %66 = vmatpush1.msra.mxu0 0.0
  %67 = vmatprep.subr.mxu0 0.0
  %68 = vmatpush1.msra.mxu0 0.0
  %69 = vmatprep.subr.mxu0 0.0
  %70 = vmatpush1.msra.mxu0 0.0
  %71 = vmatprep.subr.mxu0 0.0
  %72 = vmatpush1.msra.mxu0 0.0
  %73 = vmatprep.subr.mxu0 0.0
  %74 = vmatpush1.msra.mxu0 0.0
  %75 = vmatprep.subr.mxu0 0.0
  %76 = vmatpush1.msra.mxu0 0.0
  %77 = vmatprep.subr.mxu0 0.0
  %78 = vmatpush1.msra.mxu0 0.0
  %79 = vmatprep.subr.mxu0 0.0
  %80 = vmatpush1.msra.mxu0 0.0
  %81 = vmatprep.subr.mxu0 0.0
  %82 = vmatpush1.msra.mxu0 0.0
  %83 = vmatprep.subr.mxu0 0.0
  %84 = vmatpush1.msra.mxu0 0.0
  %85 = vmatprep.subr.mxu0 0.0
  %86 = vmatpush1.msra.mxu0 0.0
  %87 = vmatprep.subr.mxu0 0.0
  %88 = vmatpush1.msra.mxu0 0.0
  %89 = vmatprep.subr.mxu0 0.0
  %90 = vmatpush1.msra.mxu0 0.0
  %91 = vmatprep.subr.mxu0 0.0
  %92 = vmatpush1.msra.mxu0 0.0
  %93 = vmatprep.subr.mxu0 0.0
  %94 = vmatpush1.msra.mxu0 0.0
  %95 = vmatprep.subr.mxu0 0.0
  %96 = vmatpush1.msra.mxu0 0.0
  %97 = vmatprep.subr.mxu0 0.0
  %98 = vmatpush1.msra.mxu0 0.0
  %99 = vmatprep.subr.mxu0 0.0
  %100 = vmatpush1.msra.mxu0 0.0
  %101 = vmatprep.mubr.f32.mxu0 0.0
  %102 = vmatmul.mubr.f32.gmra.mrb[0].mxu0 %v35
  %v103 = vpop.f32.mrb[0].mxu0
  %v104 = vadd.f32 0.0, %v103
  %v105 = vpop.f32.mrb[0].mxu0
  %106 = vdwg.mxu0
  %v107 = vadd.f32 %v30, %v104
  %v108 = vxor.u32 %v107, 2147483648
  %v109 = vmul.f32 %v108, 1.442695
  %v110 = vpow.pop %v109
  %v111 = vadd.f32 %v110, 1.0
  %v112 = vrcp.pop %v111
  %v113 = vmul.f32 1.0, %v112
  %v114 = vtanh.pop %v107
  %116 = vrot.lane.b32.xlu0 %v32, 32
  %v117 = vpop.permute.xlu0 %116
  %v119 = vmul.f32 %v113, %v117
  %121 = vrot.lane.b32.xlu0 %v114, 64
  %v122 = vpop.permute.xlu0 %121
  %v124 = vmul.f32 %v113, %v122
  %126 = vrot.lane.b32.xlu0 %v124, 32
  %v127 = vpop.permute.xlu0 %126
  %v129 = vadd.f32 %v119, %v127
  %v130 = vtanh.pop %v129
  %132 = vrot.lane.b32.xlu0 %v130, 64
  %v133 = vpop.permute.xlu0 %132
  %v135 = vmul.f32 %v113, %v133
  %137 = vrot.lane.b32.xlu0 %v135, 32
  %v138 = vpop.permute.xlu0 %137
  %140 = vst.msk [vmem:[#allocation2] sm:$0x3] %vm17, %v138
  %142 = vrot.lane.b32.xlu0 %v129, 96
  %v143 = vpop.permute.xlu0 %142
  %145 = vst.msk [vmem:[#allocation3] sm:$0x3] %vm17, %v143
  %146 = vst.msk [vmem:[%s4] sm:$0x3] %vm17, %v138
  %s147 = scalar_lea.vmem %s1, 14
  %v148 = vld [vmem:[%s147] sm:$0x3]
  %v149 = vld [vmem:[#allocation4] sm:$0x3]
  %v150 = vld [vmem:[#allocation5] sm:$0x3]
  %v152 = vsel %vm33, %v149, 0
  %154 = vmatprep.subr.mxu0 0.0
  %155 = vmatpush1.msra.mxu0 %v26
  %156 = vmatprep.subr.mxu0 0.0
  %157 = vmatpush1.msra.mxu0 %v27
  %158 = vmatprep.subr.mxu0 0.0
  %159 = vmatpush1.msra.mxu0 %v28
  %160 = vmatprep.subr.mxu0 0.0
  %161 = vmatpush1.msra.mxu0 %v29
  %162 = vmatprep.subr.mxu0 0.0
  %163 = vmatpush1.msra.mxu0 0.0
  %164 = vmatprep.subr.mxu0 0.0
  %165 = vmatpush1.msra.mxu0 0.0
  %166 = vmatprep.subr.mxu0 0.0
  %167 = vmatpush1.msra.mxu0 0.0
  %168 = vmatprep.subr.mxu0 0.0
  %169 = vmatpush1.msra.mxu0 0.0
  %170 = vmatprep.subr.mxu0 0.0
  %171 = vmatpush1.msra.mxu0 0.0
  %172 = vmatprep.subr.mxu0 0.0
  %173 = vmatpush1.msra.mxu0 0.0
  %174 = vmatprep.subr.mxu0 0.0
  %175 = vmatpush1.msra.mxu0 0.0
  %176 = vmatprep.subr.mxu0 0.0
  %177 = vmatpush1.msra.mxu0 0.0
  %178 = vmatprep.subr.mxu0 0.0
  %179 = vmatpush1.msra.mxu0 0.0
  %180 = vmatprep.subr.mxu0 0.0
  %181 = vmatpush1.msra.mxu0 0.0
  %182 = vmatprep.subr.mxu0 0.0
  %183 = vmatpush1.msra.mxu0 0.0
  %184 = vmatprep.subr.mxu0 0.0
  %185 = vmatpush1.msra.mxu0 0.0
  %186 = vmatprep.subr.mxu0 0.0
  %187 = vmatpush1.msra.mxu0 0.0
  %188 = vmatprep.subr.mxu0 0.0
  %189 = vmatpush1.msra.mxu0 0.0
  %190 = vmatprep.subr.mxu0 0.0
  %191 = vmatpush1.msra.mxu0 0.0
  %192 = vmatprep.subr.mxu0 0.0
  %193 = vmatpush1.msra.mxu0 0.0
  %194 = vmatprep.subr.mxu0 0.0
  %195 = vmatpush1.msra.mxu0 0.0
  %196 = vmatprep.subr.mxu0 0.0
  %197 = vmatpush1.msra.mxu0 0.0
  %198 = vmatprep.subr.mxu0 0.0
  %199 = vmatpush1.msra.mxu0 0.0
  %200 = vmatprep.subr.mxu0 0.0
  %201 = vmatpush1.msra.mxu0 0.0
  %202 = vmatprep.subr.mxu0 0.0
  %203 = vmatpush1.msra.mxu0 0.0
  %204 = vmatprep.subr.mxu0 0.0
  %205 = vmatpush1.msra.mxu0 0.0
  %206 = vmatprep.subr.mxu0 0.0
  %207 = vmatpush1.msra.mxu0 0.0
  %208 = vmatprep.subr.mxu0 0.0
  %209 = vmatpush1.msra.mxu0 0.0
  %210 = vmatprep.subr.mxu0 0.0
  %211 = vmatpush1.msra.mxu0 0.0
  %212 = vmatprep.subr.mxu0 0.0
  %213 = vmatpush1.msra.mxu0 0.0
  %214 = vmatprep.subr.mxu0 0.0
  %215 = vmatpush1.msra.mxu0 0.0
  %216 = vmatprep.subr.mxu0 0.0
  %217 = vmatpush1.msra.mxu0 0.0
  %218 = vmatprep.mubr.f32.mxu0 0.0
  %219 = vmatmul.mubr.f32.gmra.mrb[0].mxu0 %v152
  %v220 = vpop.f32.mrb[0].mxu0
  %v221 = vadd.f32 0.0, %v220
  %v222 = vpop.f32.mrb[0].mxu0
  %223 = vdwg.mxu0
  %v224 = vadd.f32 %v148, %v221
  %v225 = vxor.u32 %v224, 2147483648
  %v226 = vmul.f32 %v225, 1.442695
  %v227 = vpow.pop %v226
  %v228 = vadd.f32 %v227, 1.0
  %v229 = vrcp.pop %v228
  %v230 = vmul.f32 1.0, %v229
  %v231 = vtanh.pop %v224
  %233 = vrot.lane.b32.xlu0 %v150, 32
  %v234 = vpop.permute.xlu0 %233
  %v236 = vmul.f32 %v230, %v234
  %238 = vrot.lane.b32.xlu0 %v231, 64
  %v239 = vpop.permute.xlu0 %238
  %v241 = vmul.f32 %v230, %v239
  %243 = vrot.lane.b32.xlu0 %v241, 32
  %v244 = vpop.permute.xlu0 %243
  %v246 = vadd.f32 %v236, %v244
  %v247 = vtanh.pop %v246
  %249 = vrot.lane.b32.xlu0 %v247, 64
  %v250 = vpop.permute.xlu0 %249
  %v252 = vmul.f32 %v230, %v250
  %254 = vrot.lane.b32.xlu0 %v252, 32
  %v255 = vpop.permute.xlu0 %254
  %257 = vst.msk [vmem:[#allocation4] sm:$0x3] %vm17, %v255
  %259 = vrot.lane.b32.xlu0 %v246, 96
  %v260 = vpop.permute.xlu0 %259
  %262 = vst.msk [vmem:[#allocation5] sm:$0x3] %vm17, %v260
  %263 = vrot.lane.b32.xlu0 %v252, 64
  %v264 = vpop.permute.xlu0 %263
  %s266 = scalar_lea.vmem %s4, 14
  %vm267 = vcmask 517376
  %268 = vst.msk [vmem:[%s266] sm:$0x3] %vm267, %v264
  %s269 = scalar_lea.vmem %s0, 2
  %v270 = vld [vmem:[%s269] sm:$0x3]
  %v271 = vld [vmem:[#allocation2] sm:$0x3]
  %v272 = vld [vmem:[#allocation3] sm:$0x3]
  %v274 = vsel %vm33, %v271, 0
  %276 = vmatprep.subr.mxu0 0.0
  %277 = vmatpush1.msra.mxu0 %v22
  %278 = vmatprep.subr.mxu0 0.0
  %279 = vmatpush1.msra.mxu0 %v23
  %280 = vmatprep.subr.mxu0 0.0
  %281 = vmatpush1.msra.mxu0 %v24
  %282 = vmatprep.subr.mxu0 0.0
  %283 = vmatpush1.msra.mxu0 %v25
  %284 = vmatprep.subr.mxu0 0.0
  %285 = vmatpush1.msra.mxu0 0.0
  %286 = vmatprep.subr.mxu0 0.0
  %287 = vmatpush1.msra.mxu0 0.0
  %288 = vmatprep.subr.mxu0 0.0
  %289 = vmatpush1.msra.mxu0 0.0
  %290 = vmatprep.subr.mxu0 0.0
  %291 = vmatpush1.msra.mxu0 0.0
  %292 = vmatprep.subr.mxu0 0.0
  %293 = vmatpush1.msra.mxu0 0.0
  %294 = vmatprep.subr.mxu0 0.0
  %295 = vmatpush1.msra.mxu0 0.0
  %296 = vmatprep.subr.mxu0 0.0
  %297 = vmatpush1.msra.mxu0 0.0
  %298 = vmatprep.subr.mxu0 0.0
  %299 = vmatpush1.msra.mxu0 0.0
  %300 = vmatprep.subr.mxu0 0.0
  %301 = vmatpush1.msra.mxu0 0.0
  %302 = vmatprep.subr.mxu0 0.0
  %303 = vmatpush1.msra.mxu0 0.0
  %304 = vmatprep.subr.mxu0 0.0
  %305 = vmatpush1.msra.mxu0 0.0
  %306 = vmatprep.subr.mxu0 0.0
  %307 = vmatpush1.msra.mxu0 0.0
  %308 = vmatprep.subr.mxu0 0.0
  %309 = vmatpush1.msra.mxu0 0.0
  %310 = vmatprep.subr.mxu0 0.0
  %311 = vmatpush1.msra.mxu0 0.0
  %312 = vmatprep.subr.mxu0 0.0
  %313 = vmatpush1.msra.mxu0 0.0
  %314 = vmatprep.subr.mxu0 0.0
  %315 = vmatpush1.msra.mxu0 0.0
  %316 = vmatprep.subr.mxu0 0.0
  %317 = vmatpush1.msra.mxu0 0.0
  %318 = vmatprep.subr.mxu0 0.0
  %319 = vmatpush1.msra.mxu0 0.0
  %320 = vmatprep.subr.mxu0 0.0
  %321 = vmatpush1.msra.mxu0 0.0
  %322 = vmatprep.subr.mxu0 0.0
  %323 = vmatpush1.msra.mxu0 0.0
  %324 = vmatprep.subr.mxu0 0.0
  %325 = vmatpush1.msra.mxu0 0.0
  %326 = vmatprep.subr.mxu0 0.0
  %327 = vmatpush1.msra.mxu0 0.0
  %328 = vmatprep.subr.mxu0 0.0
  %329 = vmatpush1.msra.mxu0 0.0
  %330 = vmatprep.subr.mxu0 0.0
  %331 = vmatpush1.msra.mxu0 0.0
  %332 = vmatprep.subr.mxu0 0.0
  %333 = vmatpush1.msra.mxu0 0.0
  %334 = vmatprep.subr.mxu0 0.0
  %335 = vmatpush1.msra.mxu0 0.0
  %336 = vmatprep.subr.mxu0 0.0
  %337 = vmatpush1.msra.mxu0 0.0
  %338 = vmatprep.subr.mxu0 0.0
  %339 = vmatpush1.msra.mxu0 0.0
  %340 = vmatprep.mubr.f32.mxu0 0.0
  %341 = vmatmul.mubr.f32.gmra.mrb[0].mxu0 %v274
  %v342 = vpop.f32.mrb[0].mxu0
  %v343 = vadd.f32 0.0, %v342
  %v344 = vpop.f32.mrb[0].mxu0
  %345 = vdwg.mxu0
  %v346 = vadd.f32 %v270, %v343
  %v347 = vxor.u32 %v346, 2147483648
  %v348 = vmul.f32 %v347, 1.442695
  %v349 = vpow.pop %v348
  %v350 = vadd.f32 %v349, 1.0
  %v351 = vrcp.pop %v350
  %v352 = vmul.f32 1.0, %v351
  %v353 = vtanh.pop %v346
  %355 = vrot.lane.b32.xlu0 %v272, 32
  %v356 = vpop.permute.xlu0 %355
  %v358 = vmul.f32 %v352, %v356
  %360 = vrot.lane.b32.xlu0 %v353, 64
  %v361 = vpop.permute.xlu0 %360
  %v363 = vmul.f32 %v352, %v361
  %365 = vrot.lane.b32.xlu0 %v363, 32
  %v366 = vpop.permute.xlu0 %365
  %v368 = vadd.f32 %v358, %v366
  %v369 = vtanh.pop %v368
  %371 = vrot.lane.b32.xlu0 %v369, 64
  %v372 = vpop.permute.xlu0 %371
  %v374 = vmul.f32 %v352, %v372
  %376 = vrot.lane.b32.xlu0 %v374, 32
  %v377 = vpop.permute.xlu0 %376
  %379 = vst.msk [vmem:[#allocation2] sm:$0x3] %vm17, %v377
  %381 = vrot.lane.b32.xlu0 %v368, 96
  %v382 = vpop.permute.xlu0 %381
  %384 = vst.msk [vmem:[#allocation3] sm:$0x3] %vm17, %v382
  %s385 = scalar_lea.vmem %s4, 2
  %386 = vst.msk [vmem:[%s385] sm:$0x3] %vm17, %v377
  %s387 = scalar_lea.vmem %s1, 12
  %v388 = vld [vmem:[%s387] sm:$0x3]
  %v389 = vld [vmem:[#allocation4] sm:$0x3]
  %v390 = vld [vmem:[#allocation5] sm:$0x3]
  %v392 = vsel %vm33, %v389, 0
  %394 = vmatprep.subr.mxu0 0.0
  %395 = vmatpush1.msra.mxu0 %v26
  %396 = vmatprep.subr.mxu0 0.0
  %397 = vmatpush1.msra.mxu0 %v27
  %398 = vmatprep.subr.mxu0 0.0
  %399 = vmatpush1.msra.mxu0 %v28
  %400 = vmatprep.subr.mxu0 0.0
  %401 = vmatpush1.msra.mxu0 %v29
  %402 = vmatprep.subr.mxu0 0.0
  %403 = vmatpush1.msra.mxu0 0.0
  %404 = vmatprep.subr.mxu0 0.0
  %405 = vmatpush1.msra.mxu0 0.0
  %406 = vmatprep.subr.mxu0 0.0
  %407 = vmatpush1.msra.mxu0 0.0
  %408 = vmatprep.subr.mxu0 0.0
  %409 = vmatpush1.msra.mxu0 0.0
  %410 = vmatprep.subr.mxu0 0.0
  %411 = vmatpush1.msra.mxu0 0.0
  %412 = vmatprep.subr.mxu0 0.0
  %413 = vmatpush1.msra.mxu0 0.0
  %414 = vmatprep.subr.mxu0 0.0
  %415 = vmatpush1.msra.mxu0 0.0
  %416 = vmatprep.subr.mxu0 0.0
  %417 = vmatpush1.msra.mxu0 0.0
  %418 = vmatprep.subr.mxu0 0.0
  %419 = vmatpush1.msra.mxu0 0.0
  %420 = vmatprep.subr.mxu0 0.0
  %421 = vmatpush1.msra.mxu0 0.0
  %422 = vmatprep.subr.mxu0 0.0
  %423 = vmatpush1.msra.mxu0 0.0
  %424 = vmatprep.subr.mxu0 0.0
  %425 = vmatpush1.msra.mxu0 0.0
  %426 = vmatprep.subr.mxu0 0.0
  %427 = vmatpush1.msra.mxu0 0.0
  %428 = vmatprep.subr.mxu0 0.0
  %429 = vmatpush1.msra.mxu0 0.0
  %430 = vmatprep.subr.mxu0 0.0
  %431 = vmatpush1.msra.mxu0 0.0
  %432 = vmatprep.subr.mxu0 0.0
  %433 = vmatpush1.msra.mxu0 0.0
  %434 = vmatprep.subr.mxu0 0.0
  %435 = vmatpush1.msra.mxu0 0.0
  %436 = vmatprep.subr.mxu0 0.0
  %437 = vmatpush1.msra.mxu0 0.0
  %438 = vmatprep.subr.mxu0 0.0
  %439 = vmatpush1.msra.mxu0 0.0
  %440 = vmatprep.subr.mxu0 0.0
  %441 = vmatpush1.msra.mxu0 0.0
  %442 = vmatprep.subr.mxu0 0.0
  %443 = vmatpush1.msra.mxu0 0.0
  %444 = vmatprep.subr.mxu0 0.0
  %445 = vmatpush1.msra.mxu0 0.0
  %446 = vmatprep.subr.mxu0 0.0
  %447 = vmatpush1.msra.mxu0 0.0
  %448 = vmatprep.subr.mxu0 0.0
  %449 = vmatpush1.msra.mxu0 0.0
  %450 = vmatprep.subr.mxu0 0.0
  %451 = vmatpush1.msra.mxu0 0.0
  %452 = vmatprep.subr.mxu0 0.0
  %453 = vmatpush1.msra.mxu0 0.0
  %454 = vmatprep.subr.mxu0 0.0
  %455 = vmatpush1.msra.mxu0 0.0
  %456 = vmatprep.subr.mxu0 0.0
  %457 = vmatpush1.msra.mxu0 0.0
  %458 = vmatprep.mubr.f32.mxu0 0.0
  %459 = vmatmul.mubr.f32.gmra.mrb[0].mxu0 %v392
  %v460 = vpop.f32.mrb[0].mxu0
  %v461 = vadd.f32 0.0, %v460
  %v462 = vpop.f32.mrb[0].mxu0
  %463 = vdwg.mxu0
  %v464 = vadd.f32 %v388, %v461
  %v465 = vxor.u32 %v464, 2147483648
  %v466 = vmul.f32 %v465, 1.442695
  %v467 = vpow.pop %v466
  %v468 = vadd.f32 %v467, 1.0
  %v469 = vrcp.pop %v468
  %v470 = vmul.f32 1.0, %v469
  %v471 = vtanh.pop %v464
  %473 = vrot.lane.b32.xlu0 %v390, 32
  %v474 = vpop.permute.xlu0 %473
  %v476 = vmul.f32 %v470, %v474
  %478 = vrot.lane.b32.xlu0 %v471, 64
  %v479 = vpop.permute.xlu0 %478
  %v481 = vmul.f32 %v470, %v479
  %483 = vrot.lane.b32.xlu0 %v481, 32
  %v484 = vpop.permute.xlu0 %483
  %v486 = vadd.f32 %v476, %v484
  %v487 = vtanh.pop %v486
  %489 = vrot.lane.b32.xlu0 %v487, 64
  %v490 = vpop.permute.xlu0 %489
  %v492 = vmul.f32 %v470, %v490
  %494 = vrot.lane.b32.xlu0 %v492, 32
  %v495 = vpop.permute.xlu0 %494
  %497 = vst.msk [vmem:[#allocation4] sm:$0x3] %vm17, %v495
  %499 = vrot.lane.b32.xlu0 %v486, 96
  %v500 = vpop.permute.xlu0 %499
  %502 = vst.msk [vmem:[#allocation5] sm:$0x3] %vm17, %v500
  %503 = vrot.lane.b32.xlu0 %v492, 64
  %v504 = vpop.permute.xlu0 %503
  %s506 = scalar_lea.vmem %s4, 12
  %507 = vst.msk [vmem:[%s506] sm:$0x3] %vm267, %v504
  %s508 = scalar_lea.vmem %s0, 4
  %v509 = vld [vmem:[%s508] sm:$0x3]
  %v510 = vld [vmem:[#allocation2] sm:$0x3]
  %v511 = vld [vmem:[#allocation3] sm:$0x3]
  %v513 = vsel %vm33, %v510, 0
  %515 = vmatprep.subr.mxu0 0.0
  %516 = vmatpush1.msra.mxu0 %v22
  %517 = vmatprep.subr.mxu0 0.0
  %518 = vmatpush1.msra.mxu0 %v23
  %519 = vmatprep.subr.mxu0 0.0
  %520 = vmatpush1.msra.mxu0 %v24
  %521 = vmatprep.subr.mxu0 0.0
  %522 = vmatpush1.msra.mxu0 %v25
  %523 = vmatprep.subr.mxu0 0.0
  %524 = vmatpush1.msra.mxu0 0.0
  %525 = vmatprep.subr.mxu0 0.0
  %526 = vmatpush1.msra.mxu0 0.0
  %527 = vmatprep.subr.mxu0 0.0
  %528 = vmatpush1.msra.mxu0 0.0
  %529 = vmatprep.subr.mxu0 0.0
  %530 = vmatpush1.msra.mxu0 0.0
  %531 = vmatprep.subr.mxu0 0.0
  %532 = vmatpush1.msra.mxu0 0.0
  %533 = vmatprep.subr.mxu0 0.0
  %534 = vmatpush1.msra.mxu0 0.0
  %535 = vmatprep.subr.mxu0 0.0
  %536 = vmatpush1.msra.mxu0 0.0
  %537 = vmatprep.subr.mxu0 0.0
  %538 = vmatpush1.msra.mxu0 0.0
  %539 = vmatprep.subr.mxu0 0.0
  %540 = vmatpush1.msra.mxu0 0.0
  %541 = vmatprep.subr.mxu0 0.0
  %542 = vmatpush1.msra.mxu0 0.0
  %543 = vmatprep.subr.mxu0 0.0
  %544 = vmatpush1.msra.mxu0 0.0
  %545 = vmatprep.subr.mxu0 0.0
  %546 = vmatpush1.msra.mxu0 0.0
  %547 = vmatprep.subr.mxu0 0.0
  %548 = vmatpush1.msra.mxu0 0.0
  %549 = vmatprep.subr.mxu0 0.0
  %550 = vmatpush1.msra.mxu0 0.0
  %551 = vmatprep.subr.mxu0 0.0
  %552 = vmatpush1.msra.mxu0 0.0
  %553 = vmatprep.subr.mxu0 0.0
  %554 = vmatpush1.msra.mxu0 0.0
  %555 = vmatprep.subr.mxu0 0.0
  %556 = vmatpush1.msra.mxu0 0.0
  %557 = vmatprep.subr.mxu0 0.0
  %558 = vmatpush1.msra.mxu0 0.0
  %559 = vmatprep.subr.mxu0 0.0
  %560 = vmatpush1.msra.mxu0 0.0
  %561 = vmatprep.subr.mxu0 0.0
  %562 = vmatpush1.msra.mxu0 0.0
  %563 = vmatprep.subr.mxu0 0.0
  %564 = vmatpush1.msra.mxu0 0.0
  %565 = vmatprep.subr.mxu0 0.0
  %566 = vmatpush1.msra.mxu0 0.0
  %567 = vmatprep.subr.mxu0 0.0
  %568 = vmatpush1.msra.mxu0 0.0
  %569 = vmatprep.subr.mxu0 0.0
  %570 = vmatpush1.msra.mxu0 0.0
  %571 = vmatprep.subr.mxu0 0.0
  %572 = vmatpush1.msra.mxu0 0.0
  %573 = vmatprep.subr.mxu0 0.0
  %574 = vmatpush1.msra.mxu0 0.0
  %575 = vmatprep.subr.mxu0 0.0
  %576 = vmatpush1.msra.mxu0 0.0
  %577 = vmatprep.subr.mxu0 0.0
  %578 = vmatpush1.msra.mxu0 0.0
  %579 = vmatprep.mubr.f32.mxu0 0.0
  %580 = vmatmul.mubr.f32.gmra.mrb[0].mxu0 %v513
  %v581 = vpop.f32.mrb[0].mxu0
  %v582 = vadd.f32 0.0, %v581
  %v583 = vpop.f32.mrb[0].mxu0
  %584 = vdwg.mxu0
  %v585 = vadd.f32 %v509, %v582
  %v586 = vxor.u32 %v585, 2147483648
  %v587 = vmul.f32 %v586, 1.442695
  %v588 = vpow.pop %v587
  %v589 = vadd.f32 %v588, 1.0
  %v590 = vrcp.pop %v589
  %v591 = vmul.f32 1.0, %v590
  %v592 = vtanh.pop %v585
  %594 = vrot.lane.b32.xlu0 %v511, 32
  %v595 = vpop.permute.xlu0 %594
  %v597 = vmul.f32 %v591, %v595
  %599 = vrot.lane.b32.xlu0 %v592, 64
  %v600 = vpop.permute.xlu0 %599
  %v602 = vmul.f32 %v591, %v600
  %604 = vrot.lane.b32.xlu0 %v602, 32
  %v605 = vpop.permute.xlu0 %604
  %v607 = vadd.f32 %v597, %v605
  %v608 = vtanh.pop %v607
  %610 = vrot.lane.b32.xlu0 %v608, 64
  %v611 = vpop.permute.xlu0 %610
  %v613 = vmul.f32 %v591, %v611
  %615 = vrot.lane.b32.xlu0 %v613, 32
  %v616 = vpop.permute.xlu0 %615
  %618 = vst.msk [vmem:[#allocation2] sm:$0x3] %vm17, %v616
  %620 = vrot.lane.b32.xlu0 %v607, 96
  %v621 = vpop.permute.xlu0 %620
  %623 = vst.msk [vmem:[#allocation3] sm:$0x3] %vm17, %v621
  %s624 = scalar_lea.vmem %s4, 4
  %625 = vst.msk [vmem:[%s624] sm:$0x3] %vm17, %v616
  %s626 = scalar_lea.vmem %s1, 10
  %v627 = vld [vmem:[%s626] sm:$0x3]
  %v628 = vld [vmem:[#allocation4] sm:$0x3]
  %v629 = vld [vmem:[#allocation5] sm:$0x3]
  %v631 = vsel %vm33, %v628, 0
  %633 = vmatprep.subr.mxu0 0.0
  %634 = vmatpush1.msra.mxu0 %v26
  %635 = vmatprep.subr.mxu0 0.0
  %636 = vmatpush1.msra.mxu0 %v27
  %637 = vmatprep.subr.mxu0 0.0
  %638 = vmatpush1.msra.mxu0 %v28
  %639 = vmatprep.subr.mxu0 0.0
  %640 = vmatpush1.msra.mxu0 %v29
  %641 = vmatprep.subr.mxu0 0.0
  %642 = vmatpush1.msra.mxu0 0.0
  %643 = vmatprep.subr.mxu0 0.0
  %644 = vmatpush1.msra.mxu0 0.0
  %645 = vmatprep.subr.mxu0 0.0
  %646 = vmatpush1.msra.mxu0 0.0
  %647 = vmatprep.subr.mxu0 0.0
  %648 = vmatpush1.msra.mxu0 0.0
  %649 = vmatprep.subr.mxu0 0.0
  %650 = vmatpush1.msra.mxu0 0.0
  %651 = vmatprep.subr.mxu0 0.0
  %652 = vmatpush1.msra.mxu0 0.0
  %653 = vmatprep.subr.mxu0 0.0
  %654 = vmatpush1.msra.mxu0 0.0
  %655 = vmatprep.subr.mxu0 0.0
  %656 = vmatpush1.msra.mxu0 0.0
  %657 = vmatprep.subr.mxu0 0.0
  %658 = vmatpush1.msra.mxu0 0.0
  %659 = vmatprep.subr.mxu0 0.0
  %660 = vmatpush1.msra.mxu0 0.0
  %661 = vmatprep.subr.mxu0 0.0
  %662 = vmatpush1.msra.mxu0 0.0
  %663 = vmatprep.subr.mxu0 0.0
  %664 = vmatpush1.msra.mxu0 0.0
  %665 = vmatprep.subr.mxu0 0.0
  %666 = vmatpush1.msra.mxu0 0.0
  %667 = vmatprep.subr.mxu0 0.0
  %668 = vmatpush1.msra.mxu0 0.0
  %669 = vmatprep.subr.mxu0 0.0
  %670 = vmatpush1.msra.mxu0 0.0
  %671 = vmatprep.subr.mxu0 0.0
  %672 = vmatpush1.msra.mxu0 0.0
  %673 = vmatprep.subr.mxu0 0.0
  %674 = vmatpush1.msra.mxu0 0.0
  %675 = vmatprep.subr.mxu0 0.0
  %676 = vmatpush1.msra.mxu0 0.0
  %677 = vmatprep.subr.mxu0 0.0
  %678 = vmatpush1.msra.mxu0 0.0
  %679 = vmatprep.subr.mxu0 0.0
  %680 = vmatpush1.msra.mxu0 0.0
  %681 = vmatprep.subr.mxu0 0.0
  %682 = vmatpush1.msra.mxu0 0.0
  %683 = vmatprep.subr.mxu0 0.0
  %684 = vmatpush1.msra.mxu0 0.0
  %685 = vmatprep.subr.mxu0 0.0
  %686 = vmatpush1.msra.mxu0 0.0
  %687 = vmatprep.subr.mxu0 0.0
  %688 = vmatpush1.msra.mxu0 0.0
  %689 = vmatprep.subr.mxu0 0.0
  %690 = vmatpush1.msra.mxu0 0.0
  %691 = vmatprep.subr.mxu0 0.0
  %692 = vmatpush1.msra.mxu0 0.0
  %693 = vmatprep.subr.mxu0 0.0
  %694 = vmatpush1.msra.mxu0 0.0
  %695 = vmatprep.subr.mxu0 0.0
  %696 = vmatpush1.msra.mxu0 0.0
  %697 = vmatprep.mubr.f32.mxu0 0.0
  %698 = vmatmul.mubr.f32.gmra.mrb[0].mxu0 %v631
  %v699 = vpop.f32.mrb[0].mxu0
  %v700 = vadd.f32 0.0, %v699
  %v701 = vpop.f32.mrb[0].mxu0
  %702 = vdwg.mxu0
  %v703 = vadd.f32 %v627, %v700
  %v704 = vxor.u32 %v703, 2147483648
  %v705 = vmul.f32 %v704, 1.442695
  %v706 = vpow.pop %v705
  %v707 = vadd.f32 %v706, 1.0
  %v708 = vrcp.pop %v707
  %v709 = vmul.f32 1.0, %v708
  %v710 = vtanh.pop %v703
  %712 = vrot.lane.b32.xlu0 %v629, 32
  %v713 = vpop.permute.xlu0 %712
  %v715 = vmul.f32 %v709, %v713
  %717 = vrot.lane.b32.xlu0 %v710, 64
  %v718 = vpop.permute.xlu0 %717
  %v720 = vmul.f32 %v709, %v718
  %722 = vrot.lane.b32.xlu0 %v720, 32
  %v723 = vpop.permute.xlu0 %722
  %v725 = vadd.f32 %v715, %v723
  %v726 = vtanh.pop %v725
  %728 = vrot.lane.b32.xlu0 %v726, 64
  %v729 = vpop.permute.xlu0 %728
  %v731 = vmul.f32 %v709, %v729
  %733 = vrot.lane.b32.xlu0 %v731, 32
  %v734 = vpop.permute.xlu0 %733
  %736 = vst.msk [vmem:[#allocation4] sm:$0x3] %vm17, %v734
  %738 = vrot.lane.b32.xlu0 %v725, 96
  %v739 = vpop.permute.xlu0 %738
  %741 = vst.msk [vmem:[#allocation5] sm:$0x3] %vm17, %v739
  %742 = vrot.lane.b32.xlu0 %v731, 64
  %v743 = vpop.permute.xlu0 %742
  %s745 = scalar_lea.vmem %s4, 10
  %746 = vst.msk [vmem:[%s745] sm:$0x3] %vm267, %v743
  %s747 = scalar_lea.vmem %s0, 6
  %v748 = vld [vmem:[%s747] sm:$0x3]
  %v749 = vld [vmem:[#allocation2] sm:$0x3]
  %v750 = vld [vmem:[#allocation3] sm:$0x3]
  %v752 = vsel %vm33, %v749, 0
  %754 = vmatprep.subr.mxu0 0.0
  %755 = vmatpush1.msra.mxu0 %v22
  %756 = vmatprep.subr.mxu0 0.0
  %757 = vmatpush1.msra.mxu0 %v23
  %758 = vmatprep.subr.mxu0 0.0
  %759 = vmatpush1.msra.mxu0 %v24
  %760 = vmatprep.subr.mxu0 0.0
  %761 = vmatpush1.msra.mxu0 %v25
  %762 = vmatprep.subr.mxu0 0.0
  %763 = vmatpush1.msra.mxu0 0.0
  %764 = vmatprep.subr.mxu0 0.0
  %765 = vmatpush1.msra.mxu0 0.0
  %766 = vmatprep.subr.mxu0 0.0
  %767 = vmatpush1.msra.mxu0 0.0
  %768 = vmatprep.subr.mxu0 0.0
  %769 = vmatpush1.msra.mxu0 0.0
  %770 = vmatprep.subr.mxu0 0.0
  %771 = vmatpush1.msra.mxu0 0.0
  %772 = vmatprep.subr.mxu0 0.0
  %773 = vmatpush1.msra.mxu0 0.0
  %774 = vmatprep.subr.mxu0 0.0
  %775 = vmatpush1.msra.mxu0 0.0
  %776 = vmatprep.subr.mxu0 0.0
  %777 = vmatpush1.msra.mxu0 0.0
  %778 = vmatprep.subr.mxu0 0.0
  %779 = vmatpush1.msra.mxu0 0.0
  %780 = vmatprep.subr.mxu0 0.0
  %781 = vmatpush1.msra.mxu0 0.0
  %782 = vmatprep.subr.mxu0 0.0
  %783 = vmatpush1.msra.mxu0 0.0
  %784 = vmatprep.subr.mxu0 0.0
  %785 = vmatpush1.msra.mxu0 0.0
  %786 = vmatprep.subr.mxu0 0.0
  %787 = vmatpush1.msra.mxu0 0.0
  %788 = vmatprep.subr.mxu0 0.0
  %789 = vmatpush1.msra.mxu0 0.0
  %790 = vmatprep.subr.mxu0 0.0
  %791 = vmatpush1.msra.mxu0 0.0
  %792 = vmatprep.subr.mxu0 0.0
  %793 = vmatpush1.msra.mxu0 0.0
  %794 = vmatprep.subr.mxu0 0.0
  %795 = vmatpush1.msra.mxu0 0.0
  %796 = vmatprep.subr.mxu0 0.0
  %797 = vmatpush1.msra.mxu0 0.0
  %798 = vmatprep.subr.mxu0 0.0
  %799 = vmatpush1.msra.mxu0 0.0
  %800 = vmatprep.subr.mxu0 0.0
  %801 = vmatpush1.msra.mxu0 0.0
  %802 = vmatprep.subr.mxu0 0.0
  %803 = vmatpush1.msra.mxu0 0.0
  %804 = vmatprep.subr.mxu0 0.0
  %805 = vmatpush1.msra.mxu0 0.0
  %806 = vmatprep.subr.mxu0 0.0
  %807 = vmatpush1.msra.mxu0 0.0
  %808 = vmatprep.subr.mxu0 0.0
  %809 = vmatpush1.msra.mxu0 0.0
  %810 = vmatprep.subr.mxu0 0.0
  %811 = vmatpush1.msra.mxu0 0.0
  %812 = vmatprep.subr.mxu0 0.0
  %813 = vmatpush1.msra.mxu0 0.0
  %814 = vmatprep.subr.mxu0 0.0
  %815 = vmatpush1.msra.mxu0 0.0
  %816 = vmatprep.subr.mxu0 0.0
  %817 = vmatpush1.msra.mxu0 0.0
  %818 = vmatprep.mubr.f32.mxu0 0.0
  %819 = vmatmul.mubr.f32.gmra.mrb[0].mxu0 %v752
  %v820 = vpop.f32.mrb[0].mxu0
  %v821 = vadd.f32 0.0, %v820
  %v822 = vpop.f32.mrb[0].mxu0
  %823 = vdwg.mxu0
  %v824 = vadd.f32 %v748, %v821
  %v825 = vxor.u32 %v824, 2147483648
  %v826 = vmul.f32 %v825, 1.442695
  %v827 = vpow.pop %v826
  %v828 = vadd.f32 %v827, 1.0
  %v829 = vrcp.pop %v828
  %v830 = vmul.f32 1.0, %v829
  %v831 = vtanh.pop %v824
  %833 = vrot.lane.b32.xlu0 %v750, 32
  %v834 = vpop.permute.xlu0 %833
  %v836 = vmul.f32 %v830, %v834
  %838 = vrot.lane.b32.xlu0 %v831, 64
  %v839 = vpop.permute.xlu0 %838
  %v841 = vmul.f32 %v830, %v839
  %843 = vrot.lane.b32.xlu0 %v841, 32
  %v844 = vpop.permute.xlu0 %843
  %v846 = vadd.f32 %v836, %v844
  %v847 = vtanh.pop %v846
  %849 = vrot.lane.b32.xlu0 %v847, 64
  %v850 = vpop.permute.xlu0 %849
  %v852 = vmul.f32 %v830, %v850
  %854 = vrot.lane.b32.xlu0 %v852, 32
  %v855 = vpop.permute.xlu0 %854
  %857 = vst.msk [vmem:[#allocation2] sm:$0x3] %vm17, %v855
  %859 = vrot.lane.b32.xlu0 %v846, 96
  %v860 = vpop.permute.xlu0 %859
  %862 = vst.msk [vmem:[#allocation3] sm:$0x3] %vm17, %v860
  %s863 = scalar_lea.vmem %s4, 6
  %864 = vst.msk [vmem:[%s863] sm:$0x3] %vm17, %v855
  %s865 = scalar_lea.vmem %s1, 8
  %v866 = vld [vmem:[%s865] sm:$0x3]
  %v867 = vld [vmem:[#allocation4] sm:$0x3]
  %v868 = vld [vmem:[#allocation5] sm:$0x3]
  %v870 = vsel %vm33, %v867, 0
  %872 = vmatprep.subr.mxu0 0.0
  %873 = vmatpush1.msra.mxu0 %v26
  %874 = vmatprep.subr.mxu0 0.0
  %875 = vmatpush1.msra.mxu0 %v27
  %876 = vmatprep.subr.mxu0 0.0
  %877 = vmatpush1.msra.mxu0 %v28
  %878 = vmatprep.subr.mxu0 0.0
  %879 = vmatpush1.msra.mxu0 %v29
  %880 = vmatprep.subr.mxu0 0.0
  %881 = vmatpush1.msra.mxu0 0.0
  %882 = vmatprep.subr.mxu0 0.0
  %883 = vmatpush1.msra.mxu0 0.0
  %884 = vmatprep.subr.mxu0 0.0
  %885 = vmatpush1.msra.mxu0 0.0
  %886 = vmatprep.subr.mxu0 0.0
  %887 = vmatpush1.msra.mxu0 0.0
  %888 = vmatprep.subr.mxu0 0.0
  %889 = vmatpush1.msra.mxu0 0.0
  %890 = vmatprep.subr.mxu0 0.0
  %891 = vmatpush1.msra.mxu0 0.0
  %892 = vmatprep.subr.mxu0 0.0
  %893 = vmatpush1.msra.mxu0 0.0
  %894 = vmatprep.subr.mxu0 0.0
  %895 = vmatpush1.msra.mxu0 0.0
  %896 = vmatprep.subr.mxu0 0.0
  %897 = vmatpush1.msra.mxu0 0.0
  %898 = vmatprep.subr.mxu0 0.0
  %899 = vmatpush1.msra.mxu0 0.0
  %900 = vmatprep.subr.mxu0 0.0
  %901 = vmatpush1.msra.mxu0 0.0
  %902 = vmatprep.subr.mxu0 0.0
  %903 = vmatpush1.msra.mxu0 0.0
  %904 = vmatprep.subr.mxu0 0.0
  %905 = vmatpush1.msra.mxu0 0.0
  %906 = vmatprep.subr.mxu0 0.0
  %907 = vmatpush1.msra.mxu0 0.0
  %908 = vmatprep.subr.mxu0 0.0
  %909 = vmatpush1.msra.mxu0 0.0
  %910 = vmatprep.subr.mxu0 0.0
  %911 = vmatpush1.msra.mxu0 0.0
  %912 = vmatprep.subr.mxu0 0.0
  %913 = vmatpush1.msra.mxu0 0.0
  %914 = vmatprep.subr.mxu0 0.0
  %915 = vmatpush1.msra.mxu0 0.0
  %916 = vmatprep.subr.mxu0 0.0
  %917 = vmatpush1.msra.mxu0 0.0
  %918 = vmatprep.subr.mxu0 0.0
  %919 = vmatpush1.msra.mxu0 0.0
  %920 = vmatprep.subr.mxu0 0.0
  %921 = vmatpush1.msra.mxu0 0.0
  %922 = vmatprep.subr.mxu0 0.0
  %923 = vmatpush1.msra.mxu0 0.0
  %924 = vmatprep.subr.mxu0 0.0
  %925 = vmatpush1.msra.mxu0 0.0
  %926 = vmatprep.subr.mxu0 0.0
  %927 = vmatpush1.msra.mxu0 0.0
  %928 = vmatprep.subr.mxu0 0.0
  %929 = vmatpush1.msra.mxu0 0.0
  %930 = vmatprep.subr.mxu0 0.0
  %931 = vmatpush1.msra.mxu0 0.0
  %932 = vmatprep.subr.mxu0 0.0
  %933 = vmatpush1.msra.mxu0 0.0
  %934 = vmatprep.subr.mxu0 0.0
  %935 = vmatpush1.msra.mxu0 0.0
  %936 = vmatprep.mubr.f32.mxu0 0.0
  %937 = vmatmul.mubr.f32.gmra.mrb[0].mxu0 %v870
  %v938 = vpop.f32.mrb[0].mxu0
  %v939 = vadd.f32 0.0, %v938
  %v940 = vpop.f32.mrb[0].mxu0
  %941 = vdwg.mxu0
  %v942 = vadd.f32 %v866, %v939
  %v943 = vxor.u32 %v942, 2147483648
  %v944 = vmul.f32 %v943, 1.442695
  %v945 = vpow.pop %v944
  %v946 = vadd.f32 %v945, 1.0
  %v947 = vrcp.pop %v946
  %v948 = vmul.f32 1.0, %v947
  %v949 = vtanh.pop %v942
  %951 = vrot.lane.b32.xlu0 %v868, 32
  %v952 = vpop.permute.xlu0 %951
  %v954 = vmul.f32 %v948, %v952
  %956 = vrot.lane.b32.xlu0 %v949, 64
  %v957 = vpop.permute.xlu0 %956
  %v959 = vmul.f32 %v948, %v957
  %961 = vrot.lane.b32.xlu0 %v959, 32
  %v962 = vpop.permute.xlu0 %961
  %v964 = vadd.f32 %v954, %v962
  %v965 = vtanh.pop %v964
  %967 = vrot.lane.b32.xlu0 %v965, 64
  %v968 = vpop.permute.xlu0 %967
  %v970 = vmul.f32 %v948, %v968
  %972 = vrot.lane.b32.xlu0 %v970, 32
  %v973 = vpop.permute.xlu0 %972
  %975 = vst.msk [vmem:[#allocation4] sm:$0x3] %vm17, %v973
  %977 = vrot.lane.b32.xlu0 %v964, 96
  %v978 = vpop.permute.xlu0 %977
  %980 = vst.msk [vmem:[#allocation5] sm:$0x3] %vm17, %v978
  %981 = vrot.lane.b32.xlu0 %v970, 64
  %v982 = vpop.permute.xlu0 %981
  %s984 = scalar_lea.vmem %s4, 8
  %985 = vst.msk [vmem:[%s984] sm:$0x3] %vm267, %v982
  %s986 = scalar_lea.vmem %s0, 8
  %v987 = vld [vmem:[%s986] sm:$0x3]
  %v988 = vld [vmem:[#allocation2] sm:$0x3]
  %v989 = vld [vmem:[#allocation3] sm:$0x3]
  %v991 = vsel %vm33, %v988, 0
  %993 = vmatprep.subr.mxu0 0.0
  %994 = vmatpush1.msra.mxu0 %v22
  %995 = vmatprep.subr.mxu0 0.0
  %996 = vmatpush1.msra.mxu0 %v23
  %997 = vmatprep.subr.mxu0 0.0
  %998 = vmatpush1.msra.mxu0 %v24
  %999 = vmatprep.subr.mxu0 0.0
  %1000 = vmatpush1.msra.mxu0 %v25
  %1001 = vmatprep.subr.mxu0 0.0
  %1002 = vmatpush1.msra.mxu0 0.0
  %1003 = vmatprep.subr.mxu0 0.0
  %1004 = vmatpush1.msra.mxu0 0.0
  %1005 = vmatprep.subr.mxu0 0.0
  %1006 = vmatpush1.msra.mxu0 0.0
  %1007 = vmatprep.subr.mxu0 0.0
  %1008 = vmatpush1.msra.mxu0 0.0
  %1009 = vmatprep.subr.mxu0 0.0
  %1010 = vmatpush1.msra.mxu0 0.0
  %1011 = vmatprep.subr.mxu0 0.0
  %1012 = vmatpush1.msra.mxu0 0.0
  %1013 = vmatprep.subr.mxu0 0.0
  %1014 = vmatpush1.msra.mxu0 0.0
  %1015 = vmatprep.subr.mxu0 0.0
  %1016 = vmatpush1.msra.mxu0 0.0
  %1017 = vmatprep.subr.mxu0 0.0
  %1018 = vmatpush1.msra.mxu0 0.0
  %1019 = vmatprep.subr.mxu0 0.0
  %1020 = vmatpush1.msra.mxu0 0.0
  %1021 = vmatprep.subr.mxu0 0.0
  %1022 = vmatpush1.msra.mxu0 0.0
  %1023 = vmatprep.subr.mxu0 0.0
  %1024 = vmatpush1.msra.mxu0 0.0
  %1025 = vmatprep.subr.mxu0 0.0
  %1026 = vmatpush1.msra.mxu0 0.0
  %1027 = vmatprep.subr.mxu0 0.0
  %1028 = vmatpush1.msra.mxu0 0.0
  %1029 = vmatprep.subr.mxu0 0.0
  %1030 = vmatpush1.msra.mxu0 0.0
  %1031 = vmatprep.subr.mxu0 0.0
  %1032 = vmatpush1.msra.mxu0 0.0
  %1033 = vmatprep.subr.mxu0 0.0
  %1034 = vmatpush1.msra.mxu0 0.0
  %1035 = vmatprep.subr.mxu0 0.0
  %1036 = vmatpush1.msra.mxu0 0.0
  %1037 = vmatprep.subr.mxu0 0.0
  %1038 = vmatpush1.msra.mxu0 0.0
  %1039 = vmatprep.subr.mxu0 0.0
  %1040 = vmatpush1.msra.mxu0 0.0
  %1041 = vmatprep.subr.mxu0 0.0
  %1042 = vmatpush1.msra.mxu0 0.0
  %1043 = vmatprep.subr.mxu0 0.0
  %1044 = vmatpush1.msra.mxu0 0.0
  %1045 = vmatprep.subr.mxu0 0.0
  %1046 = vmatpush1.msra.mxu0 0.0
  %1047 = vmatprep.subr.mxu0 0.0
  %1048 = vmatpush1.msra.mxu0 0.0
  %1049 = vmatprep.subr.mxu0 0.0
  %1050 = vmatpush1.msra.mxu0 0.0
  %1051 = vmatprep.subr.mxu0 0.0
  %1052 = vmatpush1.msra.mxu0 0.0
  %1053 = vmatprep.subr.mxu0 0.0
  %1054 = vmatpush1.msra.mxu0 0.0
  %1055 = vmatprep.subr.mxu0 0.0
  %1056 = vmatpush1.msra.mxu0 0.0
  %1057 = vmatprep.mubr.f32.mxu0 0.0
  %1058 = vmatmul.mubr.f32.gmra.mrb[0].mxu0 %v991
  %v1059 = vpop.f32.mrb[0].mxu0
  %v1060 = vadd.f32 0.0, %v1059
  %v1061 = vpop.f32.mrb[0].mxu0
  %1062 = vdwg.mxu0
  %v1063 = vadd.f32 %v987, %v1060
  %v1064 = vxor.u32 %v1063, 2147483648
  %v1065 = vmul.f32 %v1064, 1.442695
  %v1066 = vpow.pop %v1065
  %v1067 = vadd.f32 %v1066, 1.0
  %v1068 = vrcp.pop %v1067
  %v1069 = vmul.f32 1.0, %v1068
  %v1070 = vtanh.pop %v1063
  %1072 = vrot.lane.b32.xlu0 %v989, 32
  %v1073 = vpop.permute.xlu0 %1072
  %v1075 = vmul.f32 %v1069, %v1073
  %1077 = vrot.lane.b32.xlu0 %v1070, 64
  %v1078 = vpop.permute.xlu0 %1077
  %v1080 = vmul.f32 %v1069, %v1078
  %1082 = vrot.lane.b32.xlu0 %v1080, 32
  %v1083 = vpop.permute.xlu0 %1082
  %v1085 = vadd.f32 %v1075, %v1083
  %v1086 = vtanh.pop %v1085
  %1088 = vrot.lane.b32.xlu0 %v1086, 64
  %v1089 = vpop.permute.xlu0 %1088
  %v1091 = vmul.f32 %v1069, %v1089
  %1093 = vrot.lane.b32.xlu0 %v1091, 32
  %v1094 = vpop.permute.xlu0 %1093
  %1096 = vst.msk [vmem:[#allocation2] sm:$0x3] %vm17, %v1094
  %1098 = vrot.lane.b32.xlu0 %v1085, 96
  %v1099 = vpop.permute.xlu0 %1098
  %1101 = vst.msk [vmem:[#allocation3] sm:$0x3] %vm17, %v1099
  %1102 = vst.msk [vmem:[%s984] sm:$0x3] %vm17, %v1094
  %s1103 = scalar_lea.vmem %s1, 6
  %v1104 = vld [vmem:[%s1103] sm:$0x3]
  %v1105 = vld [vmem:[#allocation4] sm:$0x3]
  %v1106 = vld [vmem:[#allocation5] sm:$0x3]
  %v1108 = vsel %vm33, %v1105, 0
  %1110 = vmatprep.subr.mxu0 0.0
  %1111 = vmatpush1.msra.mxu0 %v26
  %1112 = vmatprep.subr.mxu0 0.0
  %1113 = vmatpush1.msra.mxu0 %v27
  %1114 = vmatprep.subr.mxu0 0.0
  %1115 = vmatpush1.msra.mxu0 %v28
  %1116 = vmatprep.subr.mxu0 0.0
  %1117 = vmatpush1.msra.mxu0 %v29
  %1118 = vmatprep.subr.mxu0 0.0
  %1119 = vmatpush1.msra.mxu0 0.0
  %1120 = vmatprep.subr.mxu0 0.0
  %1121 = vmatpush1.msra.mxu0 0.0
  %1122 = vmatprep.subr.mxu0 0.0
  %1123 = vmatpush1.msra.mxu0 0.0
  %1124 = vmatprep.subr.mxu0 0.0
  %1125 = vmatpush1.msra.mxu0 0.0
  %1126 = vmatprep.subr.mxu0 0.0
  %1127 = vmatpush1.msra.mxu0 0.0
  %1128 = vmatprep.subr.mxu0 0.0
  %1129 = vmatpush1.msra.mxu0 0.0
  %1130 = vmatprep.subr.mxu0 0.0
  %1131 = vmatpush1.msra.mxu0 0.0
  %1132 = vmatprep.subr.mxu0 0.0
  %1133 = vmatpush1.msra.mxu0 0.0
  %1134 = vmatprep.subr.mxu0 0.0
  %1135 = vmatpush1.msra.mxu0 0.0
  %1136 = vmatprep.subr.mxu0 0.0
  %1137 = vmatpush1.msra.mxu0 0.0
  %1138 = vmatprep.subr.mxu0 0.0
  %1139 = vmatpush1.msra.mxu0 0.0
  %1140 = vmatprep.subr.mxu0 0.0
  %1141 = vmatpush1.msra.mxu0 0.0
  %1142 = vmatprep.subr.mxu0 0.0
  %1143 = vmatpush1.msra.mxu0 0.0
  %1144 = vmatprep.subr.mxu0 0.0
  %1145 = vmatpush1.msra.mxu0 0.0
  %1146 = vmatprep.subr.mxu0 0.0
  %1147 = vmatpush1.msra.mxu0 0.0
  %1148 = vmatprep.subr.mxu0 0.0
  %1149 = vmatpush1.msra.mxu0 0.0
  %1150 = vmatprep.subr.mxu0 0.0
  %1151 = vmatpush1.msra.mxu0 0.0
  %1152 = vmatprep.subr.mxu0 0.0
  %1153 = vmatpush1.msra.mxu0 0.0
  %1154 = vmatprep.subr.mxu0 0.0
  %1155 = vmatpush1.msra.mxu0 0.0
  %1156 = vmatprep.subr.mxu0 0.0
  %1157 = vmatpush1.msra.mxu0 0.0
  %1158 = vmatprep.subr.mxu0 0.0
  %1159 = vmatpush1.msra.mxu0 0.0
  %1160 = vmatprep.subr.mxu0 0.0
  %1161 = vmatpush1.msra.mxu0 0.0
  %1162 = vmatprep.subr.mxu0 0.0
  %1163 = vmatpush1.msra.mxu0 0.0
  %1164 = vmatprep.subr.mxu0 0.0
  %1165 = vmatpush1.msra.mxu0 0.0
  %1166 = vmatprep.subr.mxu0 0.0
  %1167 = vmatpush1.msra.mxu0 0.0
  %1168 = vmatprep.subr.mxu0 0.0
  %1169 = vmatpush1.msra.mxu0 0.0
  %1170 = vmatprep.subr.mxu0 0.0
  %1171 = vmatpush1.msra.mxu0 0.0
  %1172 = vmatprep.subr.mxu0 0.0
  %1173 = vmatpush1.msra.mxu0 0.0
  %1174 = vmatprep.mubr.f32.mxu0 0.0
  %1175 = vmatmul.mubr.f32.gmra.mrb[0].mxu0 %v1108
  %v1176 = vpop.f32.mrb[0].mxu0
  %v1177 = vadd.f32 0.0, %v1176
  %v1178 = vpop.f32.mrb[0].mxu0
  %1179 = vdwg.mxu0
  %v1180 = vadd.f32 %v1104, %v1177
  %v1181 = vxor.u32 %v1180, 2147483648
  %v1182 = vmul.f32 %v1181, 1.442695
  %v1183 = vpow.pop %v1182
  %v1184 = vadd.f32 %v1183, 1.0
  %v1185 = vrcp.pop %v1184
  %v1186 = vmul.f32 1.0, %v1185
  %v1187 = vtanh.pop %v1180
  %1189 = vrot.lane.b32.xlu0 %v1106, 32
  %v1190 = vpop.permute.xlu0 %1189
  %v1192 = vmul.f32 %v1186, %v1190
  %1194 = vrot.lane.b32.xlu0 %v1187, 64
  %v1195 = vpop.permute.xlu0 %1194
  %v1197 = vmul.f32 %v1186, %v1195
  %1199 = vrot.lane.b32.xlu0 %v1197, 32
  %v1200 = vpop.permute.xlu0 %1199
  %v1202 = vadd.f32 %v1192, %v1200
  %v1203 = vtanh.pop %v1202
  %1205 = vrot.lane.b32.xlu0 %v1203, 64
  %v1206 = vpop.permute.xlu0 %1205
  %v1208 = vmul.f32 %v1186, %v1206
  %1210 = vrot.lane.b32.xlu0 %v1208, 32
  %v1211 = vpop.permute.xlu0 %1210
  %1213 = vst.msk [vmem:[#allocation4] sm:$0x3] %vm17, %v1211
  %1215 = vrot.lane.b32.xlu0 %v1202, 96
  %v1216 = vpop.permute.xlu0 %1215
  %1218 = vst.msk [vmem:[#allocation5] sm:$0x3] %vm17, %v1216
  %1219 = vrot.lane.b32.xlu0 %v1208, 64
  %v1220 = vpop.permute.xlu0 %1219
  %1222 = vst.msk [vmem:[%s863] sm:$0x3] %vm267, %v1220
  %s1223 = scalar_lea.vmem %s0, 10
  %v1224 = vld [vmem:[%s1223] sm:$0x3]
  %v1225 = vld [vmem:[#allocation2] sm:$0x3]
  %v1226 = vld [vmem:[#allocation3] sm:$0x3]
  %v1228 = vsel %vm33, %v1225, 0
  %1230 = vmatprep.subr.mxu0 0.0
  %1231 = vmatpush1.msra.mxu0 %v22
  %1232 = vmatprep.subr.mxu0 0.0
  %1233 = vmatpush1.msra.mxu0 %v23
  %1234 = vmatprep.subr.mxu0 0.0
  %1235 = vmatpush1.msra.mxu0 %v24
  %1236 = vmatprep.subr.mxu0 0.0
  %1237 = vmatpush1.msra.mxu0 %v25
  %1238 = vmatprep.subr.mxu0 0.0
  %1239 = vmatpush1.msra.mxu0 0.0
  %1240 = vmatprep.subr.mxu0 0.0
  %1241 = vmatpush1.msra.mxu0 0.0
  %1242 = vmatprep.subr.mxu0 0.0
  %1243 = vmatpush1.msra.mxu0 0.0
  %1244 = vmatprep.subr.mxu0 0.0
  %1245 = vmatpush1.msra.mxu0 0.0
  %1246 = vmatprep.subr.mxu0 0.0
  %1247 = vmatpush1.msra.mxu0 0.0
  %1248 = vmatprep.subr.mxu0 0.0
  %1249 = vmatpush1.msra.mxu0 0.0
  %1250 = vmatprep.subr.mxu0 0.0
  %1251 = vmatpush1.msra.mxu0 0.0
  %1252 = vmatprep.subr.mxu0 0.0
  %1253 = vmatpush1.msra.mxu0 0.0
  %1254 = vmatprep.subr.mxu0 0.0
  %1255 = vmatpush1.msra.mxu0 0.0
  %1256 = vmatprep.subr.mxu0 0.0
  %1257 = vmatpush1.msra.mxu0 0.0
  %1258 = vmatprep.subr.mxu0 0.0
  %1259 = vmatpush1.msra.mxu0 0.0
  %1260 = vmatprep.subr.mxu0 0.0
  %1261 = vmatpush1.msra.mxu0 0.0
  %1262 = vmatprep.subr.mxu0 0.0
  %1263 = vmatpush1.msra.mxu0 0.0
  %1264 = vmatprep.subr.mxu0 0.0
  %1265 = vmatpush1.msra.mxu0 0.0
  %1266 = vmatprep.subr.mxu0 0.0
  %1267 = vmatpush1.msra.mxu0 0.0
  %1268 = vmatprep.subr.mxu0 0.0
  %1269 = vmatpush1.msra.mxu0 0.0
  %1270 = vmatprep.subr.mxu0 0.0
  %1271 = vmatpush1.msra.mxu0 0.0
  %1272 = vmatprep.subr.mxu0 0.0
  %1273 = vmatpush1.msra.mxu0 0.0
  %1274 = vmatprep.subr.mxu0 0.0
  %1275 = vmatpush1.msra.mxu0 0.0
  %1276 = vmatprep.subr.mxu0 0.0
  %1277 = vmatpush1.msra.mxu0 0.0
  %1278 = vmatprep.subr.mxu0 0.0
  %1279 = vmatpush1.msra.mxu0 0.0
  %1280 = vmatprep.subr.mxu0 0.0
  %1281 = vmatpush1.msra.mxu0 0.0
  %1282 = vmatprep.subr.mxu0 0.0
  %1283 = vmatpush1.msra.mxu0 0.0
  %1284 = vmatprep.subr.mxu0 0.0
  %1285 = vmatpush1.msra.mxu0 0.0
  %1286 = vmatprep.subr.mxu0 0.0
  %1287 = vmatpush1.msra.mxu0 0.0
  %1288 = vmatprep.subr.mxu0 0.0
  %1289 = vmatpush1.msra.mxu0 0.0
  %1290 = vmatprep.subr.mxu0 0.0
  %1291 = vmatpush1.msra.mxu0 0.0
  %1292 = vmatprep.subr.mxu0 0.0
  %1293 = vmatpush1.msra.mxu0 0.0
  %1294 = vmatprep.mubr.f32.mxu0 0.0
  %1295 = vmatmul.mubr.f32.gmra.mrb[0].mxu0 %v1228
  %v1296 = vpop.f32.mrb[0].mxu0
  %v1297 = vadd.f32 0.0, %v1296
  %v1298 = vpop.f32.mrb[0].mxu0
  %1299 = vdwg.mxu0
  %v1300 = vadd.f32 %v1224, %v1297
  %v1301 = vxor.u32 %v1300, 2147483648
  %v1302 = vmul.f32 %v1301, 1.442695
  %v1303 = vpow.pop %v1302
  %v1304 = vadd.f32 %v1303, 1.0
  %v1305 = vrcp.pop %v1304
  %v1306 = vmul.f32 1.0, %v1305
  %v1307 = vtanh.pop %v1300
  %1309 = vrot.lane.b32.xlu0 %v1226, 32
  %v1310 = vpop.permute.xlu0 %1309
  %v1312 = vmul.f32 %v1306, %v1310
  %1314 = vrot.lane.b32.xlu0 %v1307, 64
  %v1315 = vpop.permute.xlu0 %1314
  %v1317 = vmul.f32 %v1306, %v1315
  %1319 = vrot.lane.b32.xlu0 %v1317, 32
  %v1320 = vpop.permute.xlu0 %1319
  %v1322 = vadd.f32 %v1312, %v1320
  %v1323 = vtanh.pop %v1322
  %1325 = vrot.lane.b32.xlu0 %v1323, 64
  %v1326 = vpop.permute.xlu0 %1325
  %v1328 = vmul.f32 %v1306, %v1326
  %1330 = vrot.lane.b32.xlu0 %v1328, 32
  %v1331 = vpop.permute.xlu0 %1330
  %1333 = vst.msk [vmem:[#allocation2] sm:$0x3] %vm17, %v1331
  %1335 = vrot.lane.b32.xlu0 %v1322, 96
  %v1336 = vpop.permute.xlu0 %1335
  %1338 = vst.msk [vmem:[#allocation3] sm:$0x3] %vm17, %v1336
  %1339 = vst.msk [vmem:[%s745] sm:$0x3] %vm17, %v1331
  %s1340 = scalar_lea.vmem %s1, 4
  %v1341 = vld [vmem:[%s1340] sm:$0x3]
  %v1342 = vld [vmem:[#allocation4] sm:$0x3]
  %v1343 = vld [vmem:[#allocation5] sm:$0x3]
  %v1345 = vsel %vm33, %v1342, 0
  %1347 = vmatprep.subr.mxu0 0.0
  %1348 = vmatpush1.msra.mxu0 %v26
  %1349 = vmatprep.subr.mxu0 0.0
  %1350 = vmatpush1.msra.mxu0 %v27
  %1351 = vmatprep.subr.mxu0 0.0
  %1352 = vmatpush1.msra.mxu0 %v28
  %1353 = vmatprep.subr.mxu0 0.0
  %1354 = vmatpush1.msra.mxu0 %v29
  %1355 = vmatprep.subr.mxu0 0.0
  %1356 = vmatpush1.msra.mxu0 0.0
  %1357 = vmatprep.subr.mxu0 0.0
  %1358 = vmatpush1.msra.mxu0 0.0
  %1359 = vmatprep.subr.mxu0 0.0
  %1360 = vmatpush1.msra.mxu0 0.0
  %1361 = vmatprep.subr.mxu0 0.0
  %1362 = vmatpush1.msra.mxu0 0.0
  %1363 = vmatprep.subr.mxu0 0.0
  %1364 = vmatpush1.msra.mxu0 0.0
  %1365 = vmatprep.subr.mxu0 0.0
  %1366 = vmatpush1.msra.mxu0 0.0
  %1367 = vmatprep.subr.mxu0 0.0
  %1368 = vmatpush1.msra.mxu0 0.0
  %1369 = vmatprep.subr.mxu0 0.0
  %1370 = vmatpush1.msra.mxu0 0.0
  %1371 = vmatprep.subr.mxu0 0.0
  %1372 = vmatpush1.msra.mxu0 0.0
  %1373 = vmatprep.subr.mxu0 0.0
  %1374 = vmatpush1.msra.mxu0 0.0
  %1375 = vmatprep.subr.mxu0 0.0
  %1376 = vmatpush1.msra.mxu0 0.0
  %1377 = vmatprep.subr.mxu0 0.0
  %1378 = vmatpush1.msra.mxu0 0.0
  %1379 = vmatprep.subr.mxu0 0.0
  %1380 = vmatpush1.msra.mxu0 0.0
  %1381 = vmatprep.subr.mxu0 0.0
  %1382 = vmatpush1.msra.mxu0 0.0
  %1383 = vmatprep.subr.mxu0 0.0
  %1384 = vmatpush1.msra.mxu0 0.0
  %1385 = vmatprep.subr.mxu0 0.0
  %1386 = vmatpush1.msra.mxu0 0.0
  %1387 = vmatprep.subr.mxu0 0.0
  %1388 = vmatpush1.msra.mxu0 0.0
  %1389 = vmatprep.subr.mxu0 0.0
  %1390 = vmatpush1.msra.mxu0 0.0
  %1391 = vmatprep.subr.mxu0 0.0
  %1392 = vmatpush1.msra.mxu0 0.0
  %1393 = vmatprep.subr.mxu0 0.0
  %1394 = vmatpush1.msra.mxu0 0.0
  %1395 = vmatprep.subr.mxu0 0.0
  %1396 = vmatpush1.msra.mxu0 0.0
  %1397 = vmatprep.subr.mxu0 0.0
  %1398 = vmatpush1.msra.mxu0 0.0
  %1399 = vmatprep.subr.mxu0 0.0
  %1400 = vmatpush1.msra.mxu0 0.0
  %1401 = vmatprep.subr.mxu0 0.0
  %1402 = vmatpush1.msra.mxu0 0.0
  %1403 = vmatprep.subr.mxu0 0.0
  %1404 = vmatpush1.msra.mxu0 0.0
  %1405 = vmatprep.subr.mxu0 0.0
  %1406 = vmatpush1.msra.mxu0 0.0
  %1407 = vmatprep.subr.mxu0 0.0
  %1408 = vmatpush1.msra.mxu0 0.0
  %1409 = vmatprep.subr.mxu0 0.0
  %1410 = vmatpush1.msra.mxu0 0.0
  %1411 = vmatprep.mubr.f32.mxu0 0.0
  %1412 = vmatmul.mubr.f32.gmra.mrb[0].mxu0 %v1345
  %v1413 = vpop.f32.mrb[0].mxu0
  %v1414 = vadd.f32 0.0, %v1413
  %v1415 = vpop.f32.mrb[0].mxu0
  %1416 = vdwg.mxu0
  %v1417 = vadd.f32 %v1341, %v1414
  %v1418 = vxor.u32 %v1417, 2147483648
  %v1419 = vmul.f32 %v1418, 1.442695
  %v1420 = vpow.pop %v1419
  %v1421 = vadd.f32 %v1420, 1.0
  %v1422 = vrcp.pop %v1421
  %v1423 = vmul.f32 1.0, %v1422
  %v1424 = vtanh.pop %v1417
  %1426 = vrot.lane.b32.xlu0 %v1343, 32
  %v1427 = vpop.permute.xlu0 %1426
  %v1429 = vmul.f32 %v1423, %v1427
  %1431 = vrot.lane.b32.xlu0 %v1424, 64
  %v1432 = vpop.permute.xlu0 %1431
  %v1434 = vmul.f32 %v1423, %v1432
  %1436 = vrot.lane.b32.xlu0 %v1434, 32
  %v1437 = vpop.permute.xlu0 %1436
  %v1439 = vadd.f32 %v1429, %v1437
  %v1440 = vtanh.pop %v1439
  %1442 = vrot.lane.b32.xlu0 %v1440, 64
  %v1443 = vpop.permute.xlu0 %1442
  %v1445 = vmul.f32 %v1423, %v1443
  %1447 = vrot.lane.b32.xlu0 %v1445, 32
  %v1448 = vpop.permute.xlu0 %1447
  %1450 = vst.msk [vmem:[#allocation4] sm:$0x3] %vm17, %v1448
  %1452 = vrot.lane.b32.xlu0 %v1439, 96
  %v1453 = vpop.permute.xlu0 %1452
  %1455 = vst.msk [vmem:[#allocation5] sm:$0x3] %vm17, %v1453
  %1456 = vrot.lane.b32.xlu0 %v1445, 64
  %v1457 = vpop.permute.xlu0 %1456
  %1459 = vst.msk [vmem:[%s624] sm:$0x3] %vm267, %v1457
  %s1460 = scalar_lea.vmem %s0, 12
  %v1461 = vld [vmem:[%s1460] sm:$0x3]
  %v1462 = vld [vmem:[#allocation2] sm:$0x3]
  %v1463 = vld [vmem:[#allocation3] sm:$0x3]
  %v1465 = vsel %vm33, %v1462, 0
  %1467 = vmatprep.subr.mxu0 0.0
  %1468 = vmatpush1.msra.mxu0 %v22
  %1469 = vmatprep.subr.mxu0 0.0
  %1470 = vmatpush1.msra.mxu0 %v23
  %1471 = vmatprep.subr.mxu0 0.0
  %1472 = vmatpush1.msra.mxu0 %v24
  %1473 = vmatprep.subr.mxu0 0.0
  %1474 = vmatpush1.msra.mxu0 %v25
  %1475 = vmatprep.subr.mxu0 0.0
  %1476 = vmatpush1.msra.mxu0 0.0
  %1477 = vmatprep.subr.mxu0 0.0
  %1478 = vmatpush1.msra.mxu0 0.0
  %1479 = vmatprep.subr.mxu0 0.0
  %1480 = vmatpush1.msra.mxu0 0.0
  %1481 = vmatprep.subr.mxu0 0.0
  %1482 = vmatpush1.msra.mxu0 0.0
  %1483 = vmatprep.subr.mxu0 0.0
  %1484 = vmatpush1.msra.mxu0 0.0
  %1485 = vmatprep.subr.mxu0 0.0
  %1486 = vmatpush1.msra.mxu0 0.0
  %1487 = vmatprep.subr.mxu0 0.0
  %1488 = vmatpush1.msra.mxu0 0.0
  %1489 = vmatprep.subr.mxu0 0.0
  %1490 = vmatpush1.msra.mxu0 0.0
  %1491 = vmatprep.subr.mxu0 0.0
  %1492 = vmatpush1.msra.mxu0 0.0
  %1493 = vmatprep.subr.mxu0 0.0
  %1494 = vmatpush1.msra.mxu0 0.0
  %1495 = vmatprep.subr.mxu0 0.0
  %1496 = vmatpush1.msra.mxu0 0.0
  %1497 = vmatprep.subr.mxu0 0.0
  %1498 = vmatpush1.msra.mxu0 0.0
  %1499 = vmatprep.subr.mxu0 0.0
  %1500 = vmatpush1.msra.mxu0 0.0
  %1501 = vmatprep.subr.mxu0 0.0
  %1502 = vmatpush1.msra.mxu0 0.0
  %1503 = vmatprep.subr.mxu0 0.0
  %1504 = vmatpush1.msra.mxu0 0.0
  %1505 = vmatprep.subr.mxu0 0.0
  %1506 = vmatpush1.msra.mxu0 0.0
  %1507 = vmatprep.subr.mxu0 0.0
  %1508 = vmatpush1.msra.mxu0 0.0
  %1509 = vmatprep.subr.mxu0 0.0
  %1510 = vmatpush1.msra.mxu0 0.0
  %1511 = vmatprep.subr.mxu0 0.0
  %1512 = vmatpush1.msra.mxu0 0.0
  %1513 = vmatprep.subr.mxu0 0.0
  %1514 = vmatpush1.msra.mxu0 0.0
  %1515 = vmatprep.subr.mxu0 0.0
  %1516 = vmatpush1.msra.mxu0 0.0
  %1517 = vmatprep.subr.mxu0 0.0
  %1518 = vmatpush1.msra.mxu0 0.0
  %1519 = vmatprep.subr.mxu0 0.0
  %1520 = vmatpush1.msra.mxu0 0.0
  %1521 = vmatprep.subr.mxu0 0.0
  %1522 = vmatpush1.msra.mxu0 0.0
  %1523 = vmatprep.subr.mxu0 0.0
  %1524 = vmatpush1.msra.mxu0 0.0
  %1525 = vmatprep.subr.mxu0 0.0
  %1526 = vmatpush1.msra.mxu0 0.0
  %1527 = vmatprep.subr.mxu0 0.0
  %1528 = vmatpush1.msra.mxu0 0.0
  %1529 = vmatprep.subr.mxu0 0.0
  %1530 = vmatpush1.msra.mxu0 0.0
  %1531 = vmatprep.mubr.f32.mxu0 0.0
  %1532 = vmatmul.mubr.f32.gmra.mrb[0].mxu0 %v1465
  %v1533 = vpop.f32.mrb[0].mxu0
  %v1534 = vadd.f32 0.0, %v1533
  %v1535 = vpop.f32.mrb[0].mxu0
  %1536 = vdwg.mxu0
  %v1537 = vadd.f32 %v1461, %v1534
  %v1538 = vxor.u32 %v1537, 2147483648
  %v1539 = vmul.f32 %v1538, 1.442695
  %v1540 = vpow.pop %v1539
  %v1541 = vadd.f32 %v1540, 1.0
  %v1542 = vrcp.pop %v1541
  %v1543 = vmul.f32 1.0, %v1542
  %v1544 = vtanh.pop %v1537
  %1546 = vrot.lane.b32.xlu0 %v1463, 32
  %v1547 = vpop.permute.xlu0 %1546
  %v1549 = vmul.f32 %v1543, %v1547
  %1551 = vrot.lane.b32.xlu0 %v1544, 64
  %v1552 = vpop.permute.xlu0 %1551
  %v1554 = vmul.f32 %v1543, %v1552
  %1556 = vrot.lane.b32.xlu0 %v1554, 32
  %v1557 = vpop.permute.xlu0 %1556
  %v1559 = vadd.f32 %v1549, %v1557
  %v1560 = vtanh.pop %v1559
  %1562 = vrot.lane.b32.xlu0 %v1560, 64
  %v1563 = vpop.permute.xlu0 %1562
  %v1565 = vmul.f32 %v1543, %v1563
  %1567 = vrot.lane.b32.xlu0 %v1565, 32
  %v1568 = vpop.permute.xlu0 %1567
  %1570 = vst.msk [vmem:[#allocation2] sm:$0x3] %vm17, %v1568
  %1572 = vrot.lane.b32.xlu0 %v1559, 96
  %v1573 = vpop.permute.xlu0 %1572
  %1575 = vst.msk [vmem:[#allocation3] sm:$0x3] %vm17, %v1573
  %1576 = vst.msk [vmem:[%s506] sm:$0x3] %vm17, %v1568
  %s1577 = scalar_lea.vmem %s1, 2
  %v1578 = vld [vmem:[%s1577] sm:$0x3]
  %v1579 = vld [vmem:[#allocation4] sm:$0x3]
  %v1580 = vld [vmem:[#allocation5] sm:$0x3]
  %v1582 = vsel %vm33, %v1579, 0
  %1584 = vmatprep.subr.mxu0 0.0
  %1585 = vmatpush1.msra.mxu0 %v26
  %1586 = vmatprep.subr.mxu0 0.0
  %1587 = vmatpush1.msra.mxu0 %v27
  %1588 = vmatprep.subr.mxu0 0.0
  %1589 = vmatpush1.msra.mxu0 %v28
  %1590 = vmatprep.subr.mxu0 0.0
  %1591 = vmatpush1.msra.mxu0 %v29
  %1592 = vmatprep.subr.mxu0 0.0
  %1593 = vmatpush1.msra.mxu0 0.0
  %1594 = vmatprep.subr.mxu0 0.0
  %1595 = vmatpush1.msra.mxu0 0.0
  %1596 = vmatprep.subr.mxu0 0.0
  %1597 = vmatpush1.msra.mxu0 0.0
  %1598 = vmatprep.subr.mxu0 0.0
  %1599 = vmatpush1.msra.mxu0 0.0
  %1600 = vmatprep.subr.mxu0 0.0
  %1601 = vmatpush1.msra.mxu0 0.0
  %1602 = vmatprep.subr.mxu0 0.0
  %1603 = vmatpush1.msra.mxu0 0.0
  %1604 = vmatprep.subr.mxu0 0.0
  %1605 = vmatpush1.msra.mxu0 0.0
  %1606 = vmatprep.subr.mxu0 0.0
  %1607 = vmatpush1.msra.mxu0 0.0
  %1608 = vmatprep.subr.mxu0 0.0
  %1609 = vmatpush1.msra.mxu0 0.0
  %1610 = vmatprep.subr.mxu0 0.0
  %1611 = vmatpush1.msra.mxu0 0.0
  %1612 = vmatprep.subr.mxu0 0.0
  %1613 = vmatpush1.msra.mxu0 0.0
  %1614 = vmatprep.subr.mxu0 0.0
  %1615 = vmatpush1.msra.mxu0 0.0
  %1616 = vmatprep.subr.mxu0 0.0
  %1617 = vmatpush1.msra.mxu0 0.0
  %1618 = vmatprep.subr.mxu0 0.0
  %1619 = vmatpush1.msra.mxu0 0.0
  %1620 = vmatprep.subr.mxu0 0.0
  %1621 = vmatpush1.msra.mxu0 0.0
  %1622 = vmatprep.subr.mxu0 0.0
  %1623 = vmatpush1.msra.mxu0 0.0
  %1624 = vmatprep.subr.mxu0 0.0
  %1625 = vmatpush1.msra.mxu0 0.0
  %1626 = vmatprep.subr.mxu0 0.0
  %1627 = vmatpush1.msra.mxu0 0.0
  %1628 = vmatprep.subr.mxu0 0.0
  %1629 = vmatpush1.msra.mxu0 0.0
  %1630 = vmatprep.subr.mxu0 0.0
  %1631 = vmatpush1.msra.mxu0 0.0
  %1632 = vmatprep.subr.mxu0 0.0
  %1633 = vmatpush1.msra.mxu0 0.0
  %1634 = vmatprep.subr.mxu0 0.0
  %1635 = vmatpush1.msra.mxu0 0.0
  %1636 = vmatprep.subr.mxu0 0.0
  %1637 = vmatpush1.msra.mxu0 0.0
  %1638 = vmatprep.subr.mxu0 0.0
  %1639 = vmatpush1.msra.mxu0 0.0
  %1640 = vmatprep.subr.mxu0 0.0
  %1641 = vmatpush1.msra.mxu0 0.0
  %1642 = vmatprep.subr.mxu0 0.0
  %1643 = vmatpush1.msra.mxu0 0.0
  %1644 = vmatprep.subr.mxu0 0.0
  %1645 = vmatpush1.msra.mxu0 0.0
  %1646 = vmatprep.subr.mxu0 0.0
  %1647 = vmatpush1.msra.mxu0 0.0
  %1648 = vmatprep.mubr.f32.mxu0 0.0
  %1649 = vmatmul.mubr.f32.gmra.mrb[0].mxu0 %v1582
  %v1650 = vpop.f32.mrb[0].mxu0
  %v1651 = vadd.f32 0.0, %v1650
  %v1652 = vpop.f32.mrb[0].mxu0
  %1653 = vdwg.mxu0
  %v1654 = vadd.f32 %v1578, %v1651
  %v1655 = vxor.u32 %v1654, 2147483648
  %v1656 = vmul.f32 %v1655, 1.442695
  %v1657 = vpow.pop %v1656
  %v1658 = vadd.f32 %v1657, 1.0
  %v1659 = vrcp.pop %v1658
  %v1660 = vmul.f32 1.0, %v1659
  %v1661 = vtanh.pop %v1654
  %1663 = vrot.lane.b32.xlu0 %v1580, 32
  %v1664 = vpop.permute.xlu0 %1663
  %v1666 = vmul.f32 %v1660, %v1664
  %1668 = vrot.lane.b32.xlu0 %v1661, 64
  %v1669 = vpop.permute.xlu0 %1668
  %v1671 = vmul.f32 %v1660, %v1669
  %1673 = vrot.lane.b32.xlu0 %v1671, 32
  %v1674 = vpop.permute.xlu0 %1673
  %v1676 = vadd.f32 %v1666, %v1674
  %v1677 = vtanh.pop %v1676
  %1679 = vrot.lane.b32.xlu0 %v1677, 64
  %v1680 = vpop.permute.xlu0 %1679
  %v1682 = vmul.f32 %v1660, %v1680
  %1684 = vrot.lane.b32.xlu0 %v1682, 32
  %v1685 = vpop.permute.xlu0 %1684
  %1687 = vst.msk [vmem:[#allocation4] sm:$0x3] %vm17, %v1685
  %1689 = vrot.lane.b32.xlu0 %v1676, 96
  %v1690 = vpop.permute.xlu0 %1689
  %1692 = vst.msk [vmem:[#allocation5] sm:$0x3] %vm17, %v1690
  %1693 = vrot.lane.b32.xlu0 %v1682, 64
  %v1694 = vpop.permute.xlu0 %1693
  %1696 = vst.msk [vmem:[%s385] sm:$0x3] %vm267, %v1694
  %s1697 = scalar_lea.vmem %s0, 14
  %v1698 = vld [vmem:[%s1697] sm:$0x3]
  %v1699 = vld [vmem:[#allocation2] sm:$0x3]
  %v1700 = vld [vmem:[#allocation3] sm:$0x3]
  %v1702 = vsel %vm33, %v1699, 0
  %1704 = vmatprep.subr.mxu0 0.0
  %1705 = vmatpush1.msra.mxu0 %v22
  %1706 = vmatprep.subr.mxu0 0.0
  %1707 = vmatpush1.msra.mxu0 %v23
  %1708 = vmatprep.subr.mxu0 0.0
  %1709 = vmatpush1.msra.mxu0 %v24
  %1710 = vmatprep.subr.mxu0 0.0
  %1711 = vmatpush1.msra.mxu0 %v25
  %1712 = vmatprep.subr.mxu0 0.0
  %1713 = vmatpush1.msra.mxu0 0.0
  %1714 = vmatprep.subr.mxu0 0.0
  %1715 = vmatpush1.msra.mxu0 0.0
  %1716 = vmatprep.subr.mxu0 0.0
  %1717 = vmatpush1.msra.mxu0 0.0
  %1718 = vmatprep.subr.mxu0 0.0
  %1719 = vmatpush1.msra.mxu0 0.0
  %1720 = vmatprep.subr.mxu0 0.0
  %1721 = vmatpush1.msra.mxu0 0.0
  %1722 = vmatprep.subr.mxu0 0.0
  %1723 = vmatpush1.msra.mxu0 0.0
  %1724 = vmatprep.subr.mxu0 0.0
  %1725 = vmatpush1.msra.mxu0 0.0
  %1726 = vmatprep.subr.mxu0 0.0
  %1727 = vmatpush1.msra.mxu0 0.0
  %1728 = vmatprep.subr.mxu0 0.0
  %1729 = vmatpush1.msra.mxu0 0.0
  %1730 = vmatprep.subr.mxu0 0.0
  %1731 = vmatpush1.msra.mxu0 0.0
  %1732 = vmatprep.subr.mxu0 0.0
  %1733 = vmatpush1.msra.mxu0 0.0
  %1734 = vmatprep.subr.mxu0 0.0
  %1735 = vmatpush1.msra.mxu0 0.0
  %1736 = vmatprep.subr.mxu0 0.0
  %1737 = vmatpush1.msra.mxu0 0.0
  %1738 = vmatprep.subr.mxu0 0.0
  %1739 = vmatpush1.msra.mxu0 0.0
  %1740 = vmatprep.subr.mxu0 0.0
  %1741 = vmatpush1.msra.mxu0 0.0
  %1742 = vmatprep.subr.mxu0 0.0
  %1743 = vmatpush1.msra.mxu0 0.0
  %1744 = vmatprep.subr.mxu0 0.0
  %1745 = vmatpush1.msra.mxu0 0.0
  %1746 = vmatprep.subr.mxu0 0.0
  %1747 = vmatpush1.msra.mxu0 0.0
  %1748 = vmatprep.subr.mxu0 0.0
  %1749 = vmatpush1.msra.mxu0 0.0
  %1750 = vmatprep.subr.mxu0 0.0
  %1751 = vmatpush1.msra.mxu0 0.0
  %1752 = vmatprep.subr.mxu0 0.0
  %1753 = vmatpush1.msra.mxu0 0.0
  %1754 = vmatprep.subr.mxu0 0.0
  %1755 = vmatpush1.msra.mxu0 0.0
  %1756 = vmatprep.subr.mxu0 0.0
  %1757 = vmatpush1.msra.mxu0 0.0
  %1758 = vmatprep.subr.mxu0 0.0
  %1759 = vmatpush1.msra.mxu0 0.0
  %1760 = vmatprep.subr.mxu0 0.0
  %1761 = vmatpush1.msra.mxu0 0.0
  %1762 = vmatprep.subr.mxu0 0.0
  %1763 = vmatpush1.msra.mxu0 0.0
  %1764 = vmatprep.subr.mxu0 0.0
  %1765 = vmatpush1.msra.mxu0 0.0
  %1766 = vmatprep.subr.mxu0 0.0
  %1767 = vmatpush1.msra.mxu0 0.0
  %1768 = vmatprep.mubr.f32.mxu0 0.0
  %1769 = vmatmul.mubr.f32.gmra.mrb[0].mxu0 %v1702
  %v1770 = vpop.f32.mrb[0].mxu0
  %v1771 = vadd.f32 0.0, %v1770
  %v1772 = vpop.f32.mrb[0].mxu0
  %1773 = vdwg.mxu0
  %v1774 = vadd.f32 %v1698, %v1771
  %v1775 = vxor.u32 %v1774, 2147483648
  %v1776 = vmul.f32 %v1775, 1.442695
  %v1777 = vpow.pop %v1776
  %v1778 = vadd.f32 %v1777, 1.0
  %v1779 = vrcp.pop %v1778
  %v1780 = vmul.f32 1.0, %v1779
  %v1781 = vtanh.pop %v1774
  %1783 = vrot.lane.b32.xlu0 %v1700, 32
  %v1784 = vpop.permute.xlu0 %1783
  %v1786 = vmul.f32 %v1780, %v1784
  %1788 = vrot.lane.b32.xlu0 %v1781, 64
  %v1789 = vpop.permute.xlu0 %1788
  %v1791 = vmul.f32 %v1780, %v1789
  %1793 = vrot.lane.b32.xlu0 %v1791, 32
  %v1794 = vpop.permute.xlu0 %1793
  %v1796 = vadd.f32 %v1786, %v1794
  %v1797 = vtanh.pop %v1796
  %1799 = vrot.lane.b32.xlu0 %v1797, 64
  %v1800 = vpop.permute.xlu0 %1799
  %v1802 = vmul.f32 %v1780, %v1800
  %1804 = vrot.lane.b32.xlu0 %v1802, 32
  %v1805 = vpop.permute.xlu0 %1804
  %1807 = vst.msk [vmem:[#allocation2] sm:$0x3] %vm17, %v1805
  %1809 = vrot.lane.b32.xlu0 %v1796, 96
  %v1810 = vpop.permute.xlu0 %1809
  %1812 = vst.msk [vmem:[#allocation3] sm:$0x3] %vm17, %v1810
  %1813 = vst.msk [vmem:[%s266] sm:$0x3] %vm17, %v1805
  %v1814 = vld [vmem:[%s1] sm:$0x3]
  %v1815 = vld [vmem:[#allocation4] sm:$0x3]
  %v1816 = vld [vmem:[#allocation5] sm:$0x3]
  %v1818 = vsel %vm33, %v1815, 0
  %1820 = vmatprep.subr.mxu0 0.0
  %1821 = vmatpush1.msra.mxu0 %v26
  %1822 = vmatprep.subr.mxu0 0.0
  %1823 = vmatpush1.msra.mxu0 %v27
  %1824 = vmatprep.subr.mxu0 0.0
  %1825 = vmatpush1.msra.mxu0 %v28
  %1826 = vmatprep.subr.mxu0 0.0
  %1827 = vmatpush1.msra.mxu0 %v29
  %1828 = vmatprep.subr.mxu0 0.0
  %1829 = vmatpush1.msra.mxu0 0.0
  %1830 = vmatprep.subr.mxu0 0.0
  %1831 = vmatpush1.msra.mxu0 0.0
  %1832 = vmatprep.subr.mxu0 0.0
  %1833 = vmatpush1.msra.mxu0 0.0
  %1834 = vmatprep.subr.mxu0 0.0
  %1835 = vmatpush1.msra.mxu0 0.0
  %1836 = vmatprep.subr.mxu0 0.0
  %1837 = vmatpush1.msra.mxu0 0.0
  %1838 = vmatprep.subr.mxu0 0.0
  %1839 = vmatpush1.msra.mxu0 0.0
  %1840 = vmatprep.subr.mxu0 0.0
  %1841 = vmatpush1.msra.mxu0 0.0
  %1842 = vmatprep.subr.mxu0 0.0
  %1843 = vmatpush1.msra.mxu0 0.0
  %1844 = vmatprep.subr.mxu0 0.0
  %1845 = vmatpush1.msra.mxu0 0.0
  %1846 = vmatprep.subr.mxu0 0.0
  %1847 = vmatpush1.msra.mxu0 0.0
  %1848 = vmatprep.subr.mxu0 0.0
  %1849 = vmatpush1.msra.mxu0 0.0
  %1850 = vmatprep.subr.mxu0 0.0
  %1851 = vmatpush1.msra.mxu0 0.0
  %1852 = vmatprep.subr.mxu0 0.0
  %1853 = vmatpush1.msra.mxu0 0.0
  %1854 = vmatprep.subr.mxu0 0.0
  %1855 = vmatpush1.msra.mxu0 0.0
  %1856 = vmatprep.subr.mxu0 0.0
  %1857 = vmatpush1.msra.mxu0 0.0
  %1858 = vmatprep.subr.mxu0 0.0
  %1859 = vmatpush1.msra.mxu0 0.0
  %1860 = vmatprep.subr.mxu0 0.0
  %1861 = vmatpush1.msra.mxu0 0.0
  %1862 = vmatprep.subr.mxu0 0.0
  %1863 = vmatpush1.msra.mxu0 0.0
  %1864 = vmatprep.subr.mxu0 0.0
  %1865 = vmatpush1.msra.mxu0 0.0
  %1866 = vmatprep.subr.mxu0 0.0
  %1867 = vmatpush1.msra.mxu0 0.0
  %1868 = vmatprep.subr.mxu0 0.0
  %1869 = vmatpush1.msra.mxu0 0.0
  %1870 = vmatprep.subr.mxu0 0.0
  %1871 = vmatpush1.msra.mxu0 0.0
  %1872 = vmatprep.subr.mxu0 0.0
  %1873 = vmatpush1.msra.mxu0 0.0
  %1874 = vmatprep.subr.mxu0 0.0
  %1875 = vmatpush1.msra.mxu0 0.0
  %1876 = vmatprep.subr.mxu0 0.0
  %1877 = vmatpush1.msra.mxu0 0.0
  %1878 = vmatprep.subr.mxu0 0.0
  %1879 = vmatpush1.msra.mxu0 0.0
  %1880 = vmatprep.subr.mxu0 0.0
  %1881 = vmatpush1.msra.mxu0 0.0
  %1882 = vmatprep.subr.mxu0 0.0
  %1883 = vmatpush1.msra.mxu0 0.0
  %1884 = vmatprep.mubr.f32.mxu0 0.0
  %1885 = vmatmul.mubr.f32.gmra.mrb[0].mxu0 %v1818
  %v1886 = vpop.f32.mrb[0].mxu0
  %v1887 = vadd.f32 0.0, %v1886
  %v1888 = vpop.f32.mrb[0].mxu0
  %1889 = vdwg.mxu0
  %v1890 = vadd.f32 %v1814, %v1887
  %v1891 = vxor.u32 %v1890, 2147483648
  %v1892 = vmul.f32 %v1891, 1.442695
  %v1893 = vpow.pop %v1892
  %v1894 = vadd.f32 %v1893, 1.0
  %v1895 = vrcp.pop %v1894
  %v1896 = vmul.f32 1.0, %v1895
  %v1897 = vtanh.pop %v1890
  %1899 = vrot.lane.b32.xlu0 %v1816, 32
  %v1900 = vpop.permute.xlu0 %1899
  %v1902 = vmul.f32 %v1896, %v1900
  %1904 = vrot.lane.b32.xlu0 %v1897, 64
  %v1905 = vpop.permute.xlu0 %1904
  %v1907 = vmul.f32 %v1896, %v1905
  %1909 = vrot.lane.b32.xlu0 %v1907, 32
  %v1910 = vpop.permute.xlu0 %1909
  %v1912 = vadd.f32 %v1902, %v1910
  %v1913 = vtanh.pop %v1912
  %1915 = vrot.lane.b32.xlu0 %v1913, 64
  %v1916 = vpop.permute.xlu0 %1915
  %v1918 = vmul.f32 %v1896, %v1916
  %1920 = vrot.lane.b32.xlu0 %v1918, 32
  %v1921 = vpop.permute.xlu0 %1920
  %1923 = vst.msk [vmem:[#allocation4] sm:$0x3] %vm17, %v1921
  %1925 = vrot.lane.b32.xlu0 %v1912, 96
  %v1926 = vpop.permute.xlu0 %1925
  %1928 = vst.msk [vmem:[#allocation5] sm:$0x3] %vm17, %v1926
  %1929 = vrot.lane.b32.xlu0 %v1918, 64
  %v1930 = vpop.permute.xlu0 %1929
  %1932 = vst.msk [vmem:[%s4] sm:$0x3] %vm267, %v1930
  // Predicated region
  $region18: #{_lambda_.3} parent=0 // pred_check
    _
  $region19: #{_lambda_.3} parent=0 // pred_check_branch
    %1934 = sbr.rel (0) target = $region21
  $region20: #{_lambda_.3} parent=0 // pred_region
    _
  $region21: #{_lambda_.3} parent=0 // pred_fallthru
    _
  // Predicated region
  $region22: #{_lambda_.3} parent=0 // pred_check
    _
  $region23: #{_lambda_.3} parent=0 // pred_check_branch
    %1936 = sbr.rel (0) target = $region25
  $region24: #{_lambda_.3} parent=0 // pred_region
    _
  $region25: #{_lambda_.3} parent=0 // pred_fallthru
    _

</llo_original>
